<compile_context>
chip_gen: v5e
topology: v5e:2x2
jax: 0.10.0
libtpu: 0.0.40
codegen_flags: <defaults>
</compile_context>

<pallas_src>
import jax
import jax.numpy as jnp
from jax.experimental import pallas as pl
from jax.experimental.pallas import tpu as pltpu


# ----------------------------- XLA glue: im2col ------------------------------
def _im2col_nchw(x, kh, kw, stride):
    """(N,C,H,W) -> (N, OH*OW, C*KH*KW); K order = ci*KH*KW + ky*KW + kx (PyTorch)."""
    N, C, H, W = x.shape
    oh = (H - kh) // stride + 1
    ow = (W - kw) // stride + 1
    cols = []
    for ky in range(kh):
        for kx in range(kw):
            cols.append(x[:, :, ky:ky + stride * oh:stride, kx:kx + stride * ow:stride])
    p = jnp.stack(cols, axis=2)                                   # (N, C, KH*KW, OH, OW)
    p = p.reshape(N, C * kh * kw, oh * ow).transpose(0, 2, 1)     # (N, P, K)
    return p, oh, ow


def _im2col_nhwc(x, kh, kw, stride):
    """(N,H,W,C) -> (N, OH*OW, KH*KW*C); K order = (ky*KW + kx)*C + ci."""
    N, H, W, C = x.shape
    oh = (H - kh) // stride + 1
    ow = (W - kw) // stride + 1
    cols = []
    for ky in range(kh):
        for kx in range(kw):
            cols.append(x[:, ky:ky + stride * oh:stride, kx:kx + stride * ow:stride, :])
    p = jnp.stack(cols, axis=3)                                   # (N, OH, OW, KH*KW, C)
    return p.reshape(N, oh * ow, kh * kw * C), oh, ow


# -------------------- kernel 1: matmul + bias + relu (convs) -----------------
def _matmul_bias_relu_kernel(x_ref, w_ref, b_ref, o_ref):
    # x: (TM, K) bf16, w: (K, Cout) bf16, b: (1, Cout) f32, o: (TM, Cout) bf16
    acc = jnp.dot(x_ref[...], w_ref[...], preferred_element_type=jnp.float32)
    acc = acc + b_ref[...]
    o_ref[...] = jnp.maximum(acc, 0.0).astype(o_ref.dtype)


def _matmul_bias_relu(x, w, b, *, row_cap):
    """Batch-folded conv-as-matmul: relu(x @ w + b), x (M, K) bf16 -> (M, Cout) bf16."""
    M, K = x.shape
    Cout = w.shape[1]
    tm = M if M <= row_cap else row_cap        # row_cap is a multiple of 16 (bf16 packing)
    return pl.pallas_call(
        _matmul_bias_relu_kernel,
        out_shape=jax.ShapeDtypeStruct((M, Cout), jnp.bfloat16),
        grid_spec=pltpu.PrefetchScalarGridSpec(
            num_scalar_prefetch=0,
            grid=(pl.cdiv(M, tm),),
            in_specs=[
                pl.BlockSpec((tm, K), lambda i: (i, 0)),     # patch row tile
                pl.BlockSpec((K, Cout), lambda i: (0, 0)),   # weight: fetched once
                pl.BlockSpec((1, Cout), lambda i: (0, 0)),   # bias:   fetched once
            ],
            out_specs=pl.BlockSpec((tm, Cout), lambda i: (i, 0)),
        ),
        compiler_params=pltpu.CompilerParams(dimension_semantics=("parallel",)),
    )(x, w, b)


# ------------- kernel 2: fc1 -> relu -> fc2 -> softmax (fused head) ----------
def _head_kernel(x_ref, w1_ref, b1_ref, w2_ref, b2_ref, o_ref):
    # x: (TN, D) bf16, w1: (D, H) bf16, b1: (1, H) f32,
    # w2: (H, CP) bf16 zero-padded cols, b2: (1, CP) f32 with -1e30 in padded cols.
    h = jnp.dot(x_ref[...], w1_ref[...], preferred_element_type=jnp.float32)
    h = jnp.maximum(h + b1_ref[...], 0.0).astype(jnp.bfloat16)
    logits = jnp.dot(h, w2_ref[...], preferred_element_type=jnp.float32) + b2_ref[...]
    # softmax over the full 128-lane padded class dim (padded lanes contribute 0)
    m = jnp.max(logits, axis=1, keepdims=True)
    e = jnp.exp(logits - m)
    probs = e / jnp.sum(e, axis=1, keepdims=True)
    o_ref[...] = probs[:, : o_ref.shape[1]].astype(o_ref.dtype)


def _mlp_head(x, w1, b1, w2, b2, *, row_cap=512):
    N, D = x.shape
    H = w1.shape[1]
    C = w2.shape[1]
    CP = max(128, ((C + 127) // 128) * 128)          # lane-pad the class dim
    w2p = jnp.zeros((H, CP), w2.dtype).at[:, :C].set(w2)
    b2p = jnp.full((1, CP), -1e30, jnp.float32).at[:, :C].set(b2)
    tn = N if N <= row_cap else row_cap
    return pl.pallas_call(
        _head_kernel,
        out_shape=jax.ShapeDtypeStruct((N, C), jnp.float32),
        grid_spec=pltpu.PrefetchScalarGridSpec(
            num_scalar_prefetch=0,
            grid=(pl.cdiv(N, tn),),
            in_specs=[
                pl.BlockSpec((tn, D), lambda i: (i, 0)),
                pl.BlockSpec((D, H), lambda i: (0, 0)),
                pl.BlockSpec((1, H), lambda i: (0, 0)),
                pl.BlockSpec((H, CP), lambda i: (0, 0)),
                pl.BlockSpec((1, CP), lambda i: (0, 0)),
            ],
            out_specs=pl.BlockSpec((tn, C), lambda i: (i, 0)),
        ),
        compiler_params=pltpu.CompilerParams(dimension_semantics=("parallel",)),
    )(x, w1, b1, w2p, b2p)


# ------------------------------ full forward ---------------------------------
@jax.jit
def simple_cnn_actor_forward(x, kp):
    N = x.shape[0]
    # conv1: 4 -> 16, k=8, s=4  (84 -> 20); batch folded into the matmul M dim.
    p1, oh1, ow1 = _im2col_nchw(x, 8, 8, 4)
    p1 = p1.reshape(N * oh1 * ow1, -1).astype(jnp.bfloat16)        # (N*400, 256)
    h1 = _matmul_bias_relu(p1, kp["w1"], kp["b1"], row_cap=4096)   # (N*400, 16) bf16
    h1 = h1.reshape(N, oh1, ow1, -1)                               # NHWC, no transpose
    # conv2: 16 -> 32, k=4, s=2 (20 -> 9)
    p2, oh2, ow2 = _im2col_nhwc(h1, 4, 4, 2)                       # (N, 81, 256) bf16
    p2 = p2.reshape(N * oh2 * ow2, -1)
    h2 = _matmul_bias_relu(p2, kp["w2"], kp["b2"], row_cap=2048)   # (N*81, 32) bf16
    # flatten: free row-major reshape; the PyTorch CHW flatten order is already
    # baked into the permuted fc1 weight rows.
    xf = h2.reshape(N, -1)                                         # (N, 2592) bf16
    # fused fc1 -> relu -> fc2 -> softmax
    return _mlp_head(xf, kp["wf1"], kp["bf1"], kp["wf2"], kp["bf2"])


# ------------------------------- parameters ----------------------------------
def init_params(key, num_classes):
    """Raw parameters in PyTorch layouts (fc weights stored as (in, out))."""
    ks = jax.random.split(key, 8)

    def u(k, shape, fan_in):
        bound = 1.0 / jnp.sqrt(fan_in)
        return jax.random.uniform(k, shape, jnp.float32, -bound, bound)

    return {
        "w_conv1": u(ks[0], (16, 4, 8, 8), 4 * 8 * 8),
        "b_conv1": u(ks[1], (16,), 4 * 8 * 8),
        "w_conv2": u(ks[2], (32, 16, 4, 4), 16 * 4 * 4),
        "b_conv2": u(ks[3], (32,), 16 * 4 * 4),
        "w_fc1":   u(ks[4], (2592, 256), 2592),   # rows in PyTorch CHW flatten order
        "b_fc1":   u(ks[5], (256,), 2592),
        "w_fc2":   u(ks[6], (256, num_classes), 256),
        "b_fc2":   u(ks[7], (num_classes,), 256),
    }
    # TODO(synk): self.pool (MaxPool2d) and self.tanh are defined in __init__ but
    # unused in forward(), so they are intentionally not implemented.


def prepare_params(params):
    """One-time host-side repack: matmul layouts, flatten-order permutation, bf16."""
    bf16, f32 = jnp.bfloat16, jnp.float32
    co1 = params["w_conv1"].shape[0]
    co2 = params["w_conv2"].shape[0]
    # conv1 weight: K order ci*KH*KW + ky*KW + kx (matches _im2col_nchw)
    w1 = params["w_conv1"].reshape(co1, -1).T.astype(bf16)                      # (256, 16)
    # conv2 weight: K order (ky*KW + kx)*Cin + ci (matches _im2col_nhwc)
    w2 = params["w_conv2"].transpose(2, 3, 1, 0).reshape(-1, co2).astype(bf16)  # (256, 32)
    # fc1: permute rows CHW -> HWC so the channels-last flatten needs no transpose
    wf1 = params["w_fc1"]
    p2 = wf1.shape[0] // co2                                                    # 81 positions
    wf1 = wf1.reshape(co2, p2, -1).transpose(1, 0, 2).reshape(wf1.shape[0], -1).astype(bf16)
    return {
        "w1": w1, "b1": params["b_conv1"].reshape(1, -1).astype(f32),
        "w2": w2, "b2": params["b_conv2"].reshape(1, -1).astype(f32),
        "wf1": wf1, "bf1": params["b_fc1"].reshape(1, -1).astype(f32),
        "wf2": params["w_fc2"].astype(bf16),
        "bf2": params["b_fc2"].reshape(1, -1).astype(f32),
    }


if __name__ == "__main__":
    num_classes = 6
    key = jax.random.PRNGKey(0)
    k_x, k_p = jax.random.split(key)
    # fc1 expects 2592 = 32*9*9  =>  input spatial must be 84x84 (Atari-style).
    x = jax.random.normal(k_x, (2, 4, 84, 84), jnp.float32)
    params = init_params(k_p, num_classes)
    kparams = prepare_params(params)

    out = simple_cnn_actor_forward(x, kparams)
    out = jax.block_until_ready(out)

    assert out.shape == (2, num_classes)
    assert bool(jnp.all(jnp.isfinite(out)))
    assert bool(jnp.allclose(jnp.sum(out, axis=1), 1.0, atol=1e-5))
    print("KERNEL_OK")
</pallas_src>

<mosaic_0001>
module attributes {stable_mosaic.version = 11 : i64} {
  func.func @_matmul_bias_relu_kernel(%arg0: i32, %arg1: memref<800x256xbf16, #tpu.memory_space<vmem>>, %arg2: memref<256x16xbf16, #tpu.memory_space<vmem>>, %arg3: memref<1x16xf32, #tpu.memory_space<vmem>>, %arg4: memref<800x16xbf16, #tpu.memory_space<vmem>>) attributes {dimension_semantics = [#tpu.dimension_semantics<parallel>], iteration_bounds = array<i64: 1>, scalar_prefetch = 0 : i64, scratch_operands = 0 : i64, tpu.core_type = #tpu.core_type<tc>, window_params = [{transform_indices = @transform_0, window_bounds = array<i64: 800, 256>}, {pipeline_mode = #tpu.pipeline_mode<synchronous>, transform_indices = @transform_1, window_bounds = array<i64: 256, 16>}, {pipeline_mode = #tpu.pipeline_mode<synchronous>, transform_indices = @transform_2, window_bounds = array<i64: 1, 16>}, {transform_indices = @transform_3, window_bounds = array<i64: 800, 16>}]} {
    %c0 = arith.constant 0 : index
    %c0_0 = arith.constant 0 : index
    %0 = vector.load %arg1[%c0, %c0_0] : memref<800x256xbf16, #tpu.memory_space<vmem>>, vector<800x256xbf16>
    %c0_1 = arith.constant 0 : index
    %c0_2 = arith.constant 0 : index
    %1 = vector.load %arg2[%c0_1, %c0_2] : memref<256x16xbf16, #tpu.memory_space<vmem>>, vector<256x16xbf16>
    %cst = arith.constant dense<0.000000e+00> : vector<800x16xf32>
    %2 = tpu.matmul %0, %1, %cst {dimension_numbers = #tpu.dot_dimension_numbers<[1], [0], [0], [1], [0, 0, 1, 1], [], []>} : vector<800x256xbf16>, vector<256x16xbf16>, vector<800x16xf32> -> vector<800x16xf32>
    %c0_3 = arith.constant 0 : index
    %c0_4 = arith.constant 0 : index
    %3 = vector.load %arg3[%c0_3, %c0_4] : memref<1x16xf32, #tpu.memory_space<vmem>>, vector<1x16xf32>
    %4 = vector.broadcast %3 : vector<1x16xf32> to vector<800x16xf32>
    %5 = arith.addf %2, %4 : vector<800x16xf32>
    %cst_5 = arith.constant 0.000000e+00 : f32
    %6 = vector.broadcast %cst_5 : f32 to vector<800x16xf32>
    %7 = arith.maximumf %5, %6 : vector<800x16xf32>
    %8 = arith.truncf %7 : vector<800x16xf32> to vector<800x16xbf16>
    %c0_6 = arith.constant 0 : index
    %c0_7 = arith.constant 0 : index
    %9 = vector.load %arg4[%c0_6, %c0_7] : memref<800x16xbf16, #tpu.memory_space<vmem>>, vector<800x16xbf16>
    tpu.vector_store %arg4[%c0_6, %c0_7], %8 {strides = array<i32>} : memref<800x16xbf16, #tpu.memory_space<vmem>>, vector<800x16xbf16>,
    return
  }
  func.func @transform_0(%arg0: i32) -> (i32, i32) {
    %c0_i32 = arith.constant 0 : i32
    %c0_i32_0 = arith.constant 0 : i32
    return %arg0, %c0_i32 : i32, i32
  }
  func.func @transform_1(%arg0: i32) -> (i32, i32) {
    %c0_i32 = arith.constant 0 : i32
    %c0_i32_0 = arith.constant 0 : i32
    %c0_i32_1 = arith.constant 0 : i32
    return %c0_i32, %c0_i32_0 : i32, i32
  }
  func.func @transform_2(%arg0: i32) -> (i32, i32) {
    %c0_i32 = arith.constant 0 : i32
    %c0_i32_0 = arith.constant 0 : i32
    %c0_i32_1 = arith.constant 0 : i32
    return %c0_i32, %c0_i32_0 : i32, i32
  }
  func.func @transform_3(%arg0: i32) -> (i32, i32) {
    %c0_i32 = arith.constant 0 : i32
    %c0_i32_0 = arith.constant 0 : i32
    return %arg0, %c0_i32 : i32, i32
  }
}

module attributes {stable_mosaic.version = 11 : i64} {
  func.func @_matmul_bias_relu_kernel(%arg0: i32, %arg1: memref<162x256xbf16, #tpu.memory_space<vmem>>, %arg2: memref<256x32xbf16, #tpu.memory_space<vmem>>, %arg3: memref<1x32xf32, #tpu.memory_space<vmem>>, %arg4: memref<162x32xbf16, #tpu.memory_space<vmem>>) attributes {dimension_semantics = [#tpu.dimension_semantics<parallel>], iteration_bounds = array<i64: 1>, scalar_prefetch = 0 : i64, scratch_operands = 0 : i64, tpu.core_type = #tpu.core_type<tc>, window_params = [{transform_indices = @transform_0, window_bounds = array<i64: 162, 256>}, {pipeline_mode = #tpu.pipeline_mode<synchronous>, transform_indices = @transform_1, window_bounds = array<i64: 256, 32>}, {pipeline_mode = #tpu.pipeline_mode<synchronous>, transform_indices = @transform_2, window_bounds = array<i64: 1, 32>}, {transform_indices = @transform_3, window_bounds = array<i64: 162, 32>}]} {
    %c0 = arith.constant 0 : index
    %c0_0 = arith.constant 0 : index
    %0 = vector.load %arg1[%c0, %c0_0] : memref<162x256xbf16, #tpu.memory_space<vmem>>, vector<162x256xbf16>
    %c0_1 = arith.constant 0 : index
    %c0_2 = arith.constant 0 : index
    %1 = vector.load %arg2[%c0_1, %c0_2] : memref<256x32xbf16, #tpu.memory_space<vmem>>, vector<256x32xbf16>
    %cst = arith.constant dense<0.000000e+00> : vector<162x32xf32>
    %2 = tpu.matmul %0, %1, %cst {dimension_numbers = #tpu.dot_dimension_numbers<[1], [0], [0], [1], [0, 0, 1, 1], [], []>} : vector<162x256xbf16>, vector<256x32xbf16>, vector<162x32xf32> -> vector<162x32xf32>
    %c0_3 = arith.constant 0 : index
    %c0_4 = arith.constant 0 : index
    %3 = vector.load %arg3[%c0_3, %c0_4] : memref<1x32xf32, #tpu.memory_space<vmem>>, vector<1x32xf32>
    %4 = vector.broadcast %3 : vector<1x32xf32> to vector<162x32xf32>
    %5 = arith.addf %2, %4 : vector<162x32xf32>
    %cst_5 = arith.constant 0.000000e+00 : f32
    %6 = vector.broadcast %cst_5 : f32 to vector<162x32xf32>
    %7 = arith.maximumf %5, %6 : vector<162x32xf32>
    %8 = arith.truncf %7 : vector<162x32xf32> to vector<162x32xbf16>
    %c0_6 = arith.constant 0 : index
    %c0_7 = arith.constant 0 : index
    %9 = vector.load %arg4[%c0_6, %c0_7] : memref<162x32xbf16, #tpu.memory_space<vmem>>, vector<162x32xbf16>
    tpu.vector_store %arg4[%c0_6, %c0_7], %8 {strides = array<i32>} : memref<162x32xbf16, #tpu.memory_space<vmem>>, vector<162x32xbf16>,
    return
  }
  func.func @transform_0(%arg0: i32) -> (i32, i32) {
    %c0_i32 = arith.constant 0 : i32
    %c0_i32_0 = arith.constant 0 : i32
    return %arg0, %c0_i32 : i32, i32
  }
  func.func @transform_1(%arg0: i32) -> (i32, i32) {
    %c0_i32 = arith.constant 0 : i32
    %c0_i32_0 = arith.constant 0 : i32
    %c0_i32_1 = arith.constant 0 : i32
    return %c0_i32, %c0_i32_0 : i32, i32
  }
  func.func @transform_2(%arg0: i32) -> (i32, i32) {
    %c0_i32 = arith.constant 0 : i32
    %c0_i32_0 = arith.constant 0 : i32
    %c0_i32_1 = arith.constant 0 : i32
    return %c0_i32, %c0_i32_0 : i32, i32
  }
  func.func @transform_3(%arg0: i32) -> (i32, i32) {
    %c0_i32 = arith.constant 0 : i32
    %c0_i32_0 = arith.constant 0 : i32
    return %arg0, %c0_i32 : i32, i32
  }
}

module attributes {stable_mosaic.version = 11 : i64} {
  func.func @_head_kernel(%arg0: i32, %arg1: memref<2x2592xbf16, #tpu.memory_space<vmem>>, %arg2: memref<2592x256xbf16, #tpu.memory_space<vmem>>, %arg3: memref<1x256xf32, #tpu.memory_space<vmem>>, %arg4: memref<256x128xbf16, #tpu.memory_space<vmem>>, %arg5: memref<1x128xf32, #tpu.memory_space<vmem>>, %arg6: memref<2x6xf32, #tpu.memory_space<vmem>>) attributes {dimension_semantics = [#tpu.dimension_semantics<parallel>], iteration_bounds = array<i64: 1>, scalar_prefetch = 0 : i64, scratch_operands = 0 : i64, tpu.core_type = #tpu.core_type<tc>, window_params = [{transform_indices = @transform_0, window_bounds = array<i64: 2, 2592>}, {pipeline_mode = #tpu.pipeline_mode<synchronous>, transform_indices = @transform_1, window_bounds = array<i64: 2592, 256>}, {pipeline_mode = #tpu.pipeline_mode<synchronous>, transform_indices = @transform_2, window_bounds = array<i64: 1, 256>}, {pipeline_mode = #tpu.pipeline_mode<synchronous>, transform_indices = @transform_3, window_bounds = array<i64: 256, 128>}, {pipeline_mode = #tpu.pipeline_mode<synchronous>, transform_indices = @transform_4, window_bounds = array<i64: 1, 128>}, {transform_indices = @transform_5, window_bounds = array<i64: 2, 6>}]} {
    %c0 = arith.constant 0 : index
    %c0_0 = arith.constant 0 : index
    %0 = vector.load %arg1[%c0, %c0_0] : memref<2x2592xbf16, #tpu.memory_space<vmem>>, vector<2x2592xbf16>
    %c0_1 = arith.constant 0 : index
    %c0_2 = arith.constant 0 : index
    %1 = vector.load %arg2[%c0_1, %c0_2] : memref<2592x256xbf16, #tpu.memory_space<vmem>>, vector<2592x256xbf16>
    %cst = arith.constant dense<0.000000e+00> : vector<2x256xf32>
    %2 = tpu.matmul %0, %1, %cst {dimension_numbers = #tpu.dot_dimension_numbers<[1], [0], [0], [1], [0, 0, 1, 1], [], []>} : vector<2x2592xbf16>, vector<2592x256xbf16>, vector<2x256xf32> -> vector<2x256xf32>
    %c0_3 = arith.constant 0 : index
    %c0_4 = arith.constant 0 : index
    %3 = vector.load %arg3[%c0_3, %c0_4] : memref<1x256xf32, #tpu.memory_space<vmem>>, vector<1x256xf32>
    %4 = vector.broadcast %3 : vector<1x256xf32> to vector<2x256xf32>
    %5 = arith.addf %2, %4 : vector<2x256xf32>
    %cst_5 = arith.constant 0.000000e+00 : f32
    %6 = vector.broadcast %cst_5 : f32 to vector<2x256xf32>
    %7 = arith.maximumf %5, %6 : vector<2x256xf32>
    %8 = arith.truncf %7 : vector<2x256xf32> to vector<2x256xbf16>
    %c0_6 = arith.constant 0 : index
    %c0_7 = arith.constant 0 : index
    %9 = vector.load %arg4[%c0_6, %c0_7] : memref<256x128xbf16, #tpu.memory_space<vmem>>, vector<256x128xbf16>
    %cst_8 = arith.constant dense<0.000000e+00> : vector<2x128xf32>
    %10 = tpu.matmul %8, %9, %cst_8 {dimension_numbers = #tpu.dot_dimension_numbers<[1], [0], [0], [1], [0, 0, 1, 1], [], []>} : vector<2x256xbf16>, vector<256x128xbf16>, vector<2x128xf32> -> vector<2x128xf32>
    %c0_9 = arith.constant 0 : index
    %c0_10 = arith.constant 0 : index
    %11 = vector.load %arg5[%c0_9, %c0_10] : memref<1x128xf32, #tpu.memory_space<vmem>>, vector<1x128xf32>
    %12 = vector.broadcast %11 : vector<1x128xf32> to vector<2x128xf32>
    %13 = arith.addf %10, %12 : vector<2x128xf32>
    %cst_11 = arith.constant dense<0xFF800000> : vector<2xf32>
    %14 = vector.multi_reduction <maximumf>, %13, %cst_11 [1] : vector<2x128xf32> to vector<2xf32>
    %15 = vector.shape_cast %14 : vector<2xf32> to vector<2x1xf32>
    %16 = vector.broadcast %15 : vector<2x1xf32> to vector<2x128xf32>
    %17 = arith.subf %13, %16 : vector<2x128xf32>
    %18 = math.exp %17 : vector<2x128xf32>
    %cst_12 = arith.constant dense<0.000000e+00> : vector<2xf32>
    %19 = vector.multi_reduction <add>, %18, %cst_12 [1] : vector<2x128xf32> to vector<2xf32>
    %20 = vector.shape_cast %19 : vector<2xf32> to vector<2x1xf32>
    %21 = vector.broadcast %20 : vector<2x1xf32> to vector<2x128xf32>
    %22 = arith.divf %18, %21 : vector<2x128xf32>
    %23 = vector.extract_strided_slice %22 {offsets = [0, 0], sizes = [2, 6], strides = [1, 1]} : vector<2x128xf32> to vector<2x6xf32>
    %c0_13 = arith.constant 0 : index
    %c0_14 = arith.constant 0 : index
    %24 = vector.load %arg6[%c0_13, %c0_14] : memref<2x6xf32, #tpu.memory_space<vmem>>, vector<2x6xf32>
    tpu.vector_store %arg6[%c0_13, %c0_14], %23 {strides = array<i32>} : memref<2x6xf32, #tpu.memory_space<vmem>>, vector<2x6xf32>,
    return
  }
  func.func @transform_0(%arg0: i32) -> (i32, i32) {
    %c0_i32 = arith.constant 0 : i32
    %c0_i32_0 = arith.constant 0 : i32
    return %arg0, %c0_i32 : i32, i32
  }
  func.func @transform_1(%arg0: i32) -> (i32, i32) {
    %c0_i32 = arith.constant 0 : i32
    %c0_i32_0 = arith.constant 0 : i32
    %c0_i32_1 = arith.constant 0 : i32
    return %c0_i32, %c0_i32_0 : i32, i32
  }
  func.func @transform_2(%arg0: i32) -> (i32, i32) {
    %c0_i32 = arith.constant 0 : i32
    %c0_i32_0 = arith.constant 0 : i32
    %c0_i32_1 = arith.constant 0 : i32
    return %c0_i32, %c0_i32_0 : i32, i32
  }
  func.func @transform_3(%arg0: i32) -> (i32, i32) {
    %c0_i32 = arith.constant 0 : i32
    %c0_i32_0 = arith.constant 0 : i32
    %c0_i32_1 = arith.constant 0 : i32
    return %c0_i32, %c0_i32_0 : i32, i32
  }
  func.func @transform_4(%arg0: i32) -> (i32, i32) {
    %c0_i32 = arith.constant 0 : i32
    %c0_i32_0 = arith.constant 0 : i32
    %c0_i32_1 = arith.constant 0 : i32
    return %c0_i32, %c0_i32_0 : i32, i32
  }
  func.func @transform_5(%arg0: i32) -> (i32, i32) {
    %c0_i32 = arith.constant 0 : i32
    %c0_i32_0 = arith.constant 0 : i32
    return %arg0, %c0_i32 : i32, i32
  }
}

</mosaic_0001>

<llo_original>
// kernel: simple_cnn_actor_forward.3
$region0: #{simple_cnn_actor_forward.3}
  #allocation0 [shape = 'u32[]', space=smem, size = 0x4, offset = 0x4, fixed_abs, tag = 'smem constant byte address 0x4 - core index']
  #allocation1 [shape = 'u32[72,128]{1,0:T(1,128)}', space=vmem, size = 0x9000, scoped, tag = 'internal scratch']
  %s0 = inlined_call_operand.vmem [shape: bf16[800,256], index: 0, kind: input, shape index: {}]
  %s1 = inlined_call_operand.vmem [shape: bf16[256,16], index: 1, kind: input, shape index: {}]
  %s2 = inlined_call_operand.vmem [shape: f32[1,16], index: 2, kind: input, shape index: {}]
  %s3 = inlined_call_operand.vmem [shape: bf16[800,16], index: 3, kind: output, shape index: {}]
  %s4 = sld [smem:[#allocation0]]
  $region22: #{simple_cnn_actor_forward.3} parent=0
    _
  %s6 = ssub.s32 1, %s4
  %s7 = scalar_select 0, %s6, %s4
  // Predicated region
  $region2: #{simple_cnn_actor_forward.3} parent=0 // pred_check
    _
  $region3: #{simple_cnn_actor_forward.3} parent=0 // pred_check_branch
    %9 = sbr.rel (0) target = $region5
  $region4: #{simple_cnn_actor_forward.3} parent=0 // pred_region
    _
  $region5: #{simple_cnn_actor_forward.3} parent=0 // pred_fallthru
    _
  // Predicated region
  $region6: #{simple_cnn_actor_forward.3} parent=0 // pred_check
    _
  $region7: #{simple_cnn_actor_forward.3} parent=0 // pred_check_branch
    %11 = sbr.rel (0) target = $region9
  $region8: #{simple_cnn_actor_forward.3} parent=0 // pred_region
    _
  $region9: #{simple_cnn_actor_forward.3} parent=0 // pred_fallthru
    _
  // Predicated region
  $region10: #{simple_cnn_actor_forward.3} parent=0 // pred_check
    _
  $region11: #{simple_cnn_actor_forward.3} parent=0 // pred_check_branch
    %13 = sbr.rel (0) target = $region13
  $region12: #{simple_cnn_actor_forward.3} parent=0 // pred_region
    _
  $region13: #{simple_cnn_actor_forward.3} parent=0 // pred_fallthru
    _
  %v14 = vld [vmem:[%s0] sm:$0xff]
  %v15 = vld [vmem:[%s0 + $0x8] sm:$0xff]
  %v16 = vld [vmem:[%s0 + $0x10] sm:$0xff]
  %v17 = vld [vmem:[%s0 + $0x18] sm:$0xff]
  %v18 = vld [vmem:[%s0 + $0x20] sm:$0xff]
  %v19 = vld [vmem:[%s0 + $0x28] sm:$0xff]
  %v20 = vld [vmem:[%s0 + $0x30] sm:$0xff]
  %v21 = vld [vmem:[%s0 + $0x38] sm:$0xff]
  %v22 = vld [vmem:[%s0 + $0x40] sm:$0xff]
  %v23 = vld [vmem:[%s0 + $0x48] sm:$0xff]
  %v24 = vld [vmem:[%s0 + $0x50] sm:$0xff]
  %v25 = vld [vmem:[%s0 + $0x58] sm:$0xff]
  %v26 = vld [vmem:[%s0 + $0x60] sm:$0xff]
  %v27 = vld [vmem:[%s0 + $0x68] sm:$0xff]
  %v28 = vld [vmem:[%s0 + $0x70] sm:$0xff]
  %v29 = vld [vmem:[%s0 + $0x78] sm:$0xff]
  %v30 = vld [vmem:[%s0 + $0x80] sm:$0xff]
  %v31 = vld [vmem:[%s0 + $0x88] sm:$0xff]
  %v32 = vld [vmem:[%s0 + $0x90] sm:$0xff]
  %v33 = vld [vmem:[%s0 + $0x98] sm:$0xff]
  %v34 = vld [vmem:[%s0 + $0xa0] sm:$0xff]
  %v35 = vld [vmem:[%s0 + $0xa8] sm:$0xff]
  %v36 = vld [vmem:[%s0 + $0xb0] sm:$0xff]
  %v37 = vld [vmem:[%s0 + $0xb8] sm:$0xff]
  %v38 = vld [vmem:[%s0 + $0xc0] sm:$0xff]
  %v39 = vld [vmem:[%s0 + $0xc8] sm:$0xff]
  %v40 = vld [vmem:[%s0 + $0xd0] sm:$0xff]
  %v41 = vld [vmem:[%s0 + $0xd8] sm:$0xff]
  %v42 = vld [vmem:[%s0 + $0xe0] sm:$0xff]
  %v43 = vld [vmem:[%s0 + $0xe8] sm:$0xff]
  %v44 = vld [vmem:[%s0 + $0xf0] sm:$0xff]
  %v45 = vld [vmem:[%s0 + $0xf8] sm:$0xff]
  %v46 = vld [vmem:[%s0 + $0x100] sm:$0xff]
  %v47 = vld [vmem:[%s0 + $0x108] sm:$0xff]
  %v48 = vld [vmem:[%s0 + $0x110] sm:$0xff]
  %v49 = vld [vmem:[%s0 + $0x118] sm:$0xff]
  %v50 = vld [vmem:[%s0 + $0x120] sm:$0xff]
  %v51 = vld [vmem:[%s0 + $0x128] sm:$0xff]
  %v52 = vld [vmem:[%s0 + $0x130] sm:$0xff]
  %v53 = vld [vmem:[%s0 + $0x138] sm:$0xff]
  %v54 = vld [vmem:[%s0 + $0x140] sm:$0xff]
  %v55 = vld [vmem:[%s0 + $0x148] sm:$0xff]
  %v56 = vld [vmem:[%s0 + $0x150] sm:$0xff]
  %v57 = vld [vmem:[%s0 + $0x158] sm:$0xff]
  %v58 = vld [vmem:[%s0 + $0x160] sm:$0xff]
  %v59 = vld [vmem:[%s0 + $0x168] sm:$0xff]
  %v60 = vld [vmem:[%s0 + $0x170] sm:$0xff]
  %v61 = vld [vmem:[%s0 + $0x178] sm:$0xff]
  %v62 = vld [vmem:[%s0 + $0x180] sm:$0xff]
  %v63 = vld [vmem:[%s0 + $0x188] sm:$0xff]
  %v64 = vld [vmem:[%s0 + $0x190] sm:$0xff]
  %v65 = vld [vmem:[%s0 + $0x198] sm:$0xff]
  %v66 = vld [vmem:[%s0 + $0x1a0] sm:$0xff]
  %v67 = vld [vmem:[%s0 + $0x1a8] sm:$0xff]
  %v68 = vld [vmem:[%s0 + $0x1b0] sm:$0xff]
  %v69 = vld [vmem:[%s0 + $0x1b8] sm:$0xff]
  %v70 = vld [vmem:[%s0 + $0x1c0] sm:$0xff]
  %v71 = vld [vmem:[%s0 + $0x1c8] sm:$0xff]
  %v72 = vld [vmem:[%s0 + $0x1d0] sm:$0xff]
  %v73 = vld [vmem:[%s0 + $0x1d8] sm:$0xff]
  %v74 = vld [vmem:[%s0 + $0x1e0] sm:$0xff]
  %v75 = vld [vmem:[%s0 + $0x1e8] sm:$0xff]
  %v76 = vld [vmem:[%s0 + $0x1f0] sm:$0xff]
  %v77 = vld [vmem:[%s0 + $0x1f8] sm:$0xff]
  %v78 = vld [vmem:[%s0 + $0x200] sm:$0xff]
  %v79 = vld [vmem:[%s0 + $0x208] sm:$0xff]
  %v80 = vld [vmem:[%s0 + $0x210] sm:$0xff]
  %v81 = vld [vmem:[%s0 + $0x218] sm:$0xff]
  %v82 = vld [vmem:[%s0 + $0x220] sm:$0xff]
  %v83 = vld [vmem:[%s0 + $0x228] sm:$0xff]
  %v84 = vld [vmem:[%s0 + $0x230] sm:$0xff]
  %v85 = vld [vmem:[%s0 + $0x238] sm:$0xff]
  %v86 = vld [vmem:[%s0 + $0x240] sm:$0xff]
  %v87 = vld [vmem:[%s0 + $0x248] sm:$0xff]
  %v88 = vld [vmem:[%s0 + $0x250] sm:$0xff]
  %v89 = vld [vmem:[%s0 + $0x258] sm:$0xff]
  %v90 = vld [vmem:[%s0 + $0x260] sm:$0xff]
  %v91 = vld [vmem:[%s0 + $0x268] sm:$0xff]
  %v92 = vld [vmem:[%s0 + $0x270] sm:$0xff]
  %v93 = vld [vmem:[%s0 + $0x278] sm:$0xff]
  %v94 = vld [vmem:[%s0 + $0x280] sm:$0xff]
  %v95 = vld [vmem:[%s0 + $0x288] sm:$0xff]
  %v96 = vld [vmem:[%s0 + $0x290] sm:$0xff]
  %v97 = vld [vmem:[%s0 + $0x298] sm:$0xff]
  %v98 = vld [vmem:[%s0 + $0x2a0] sm:$0xff]
  %v99 = vld [vmem:[%s0 + $0x2a8] sm:$0xff]
  %v100 = vld [vmem:[%s0 + $0x2b0] sm:$0xff]
  %v101 = vld [vmem:[%s0 + $0x2b8] sm:$0xff]
  %v102 = vld [vmem:[%s0 + $0x2c0] sm:$0xff]
  %v103 = vld [vmem:[%s0 + $0x2c8] sm:$0xff]
  %v104 = vld [vmem:[%s0 + $0x2d0] sm:$0xff]
  %v105 = vld [vmem:[%s0 + $0x2d8] sm:$0xff]
  %v106 = vld [vmem:[%s0 + $0x2e0] sm:$0xff]
  %v107 = vld [vmem:[%s0 + $0x2e8] sm:$0xff]
  %v108 = vld [vmem:[%s0 + $0x2f0] sm:$0xff]
  %v109 = vld [vmem:[%s0 + $0x2f8] sm:$0xff]
  %v110 = vld [vmem:[%s0 + $0x300] sm:$0xff]
  %v111 = vld [vmem:[%s0 + $0x308] sm:$0xff]
  %v112 = vld [vmem:[%s0 + $0x310] sm:$0xff]
  %v113 = vld [vmem:[%s0 + $0x318] sm:$0xff]
  %v114 = vld [vmem:[%s1] sm:$0xf]
  %v115 = vld [vmem:[%s1 + $0x4] sm:$0xf]
  %v116 = vld [vmem:[%s1 + $0x8] sm:$0xf]
  %v117 = vld [vmem:[%s1 + $0xc] sm:$0xf]
  %v118 = vld [vmem:[%s1 + $0x10] sm:$0xf]
  %v119 = vld [vmem:[%s1 + $0x14] sm:$0xf]
  %v120 = vld [vmem:[%s1 + $0x18] sm:$0xf]
  %v121 = vld [vmem:[%s1 + $0x1c] sm:$0xf]
  %v122 = vld [vmem:[%s1 + $0x20] sm:$0xf]
  %v123 = vld [vmem:[%s1 + $0x24] sm:$0xf]
  %v124 = vld [vmem:[%s1 + $0x28] sm:$0xf]
  %v125 = vld [vmem:[%s1 + $0x2c] sm:$0xf]
  %v126 = vld [vmem:[%s1 + $0x30] sm:$0xf]
  %v127 = vld [vmem:[%s1 + $0x34] sm:$0xf]
  %v128 = vld [vmem:[%s1 + $0x38] sm:$0xf]
  %v129 = vld [vmem:[%s1 + $0x3c] sm:$0xf]
  %v130 = vld [vmem:[%s1 + $0x40] sm:$0xf]
  %v131 = vld [vmem:[%s1 + $0x44] sm:$0xf]
  %v132 = vld [vmem:[%s1 + $0x48] sm:$0xf]
  %v133 = vld [vmem:[%s1 + $0x4c] sm:$0xf]
  %v134 = vld [vmem:[%s1 + $0x50] sm:$0xf]
  %v135 = vld [vmem:[%s1 + $0x54] sm:$0xf]
  %v136 = vld [vmem:[%s1 + $0x58] sm:$0xf]
  %v137 = vld [vmem:[%s1 + $0x5c] sm:$0xf]
  %v138 = vld [vmem:[%s1 + $0x60] sm:$0xf]
  %v139 = vld [vmem:[%s1 + $0x64] sm:$0xf]
  %v140 = vld [vmem:[%s1 + $0x68] sm:$0xf]
  %v141 = vld [vmem:[%s1 + $0x6c] sm:$0xf]
  %v142 = vld [vmem:[%s1 + $0x70] sm:$0xf]
  %v143 = vld [vmem:[%s1 + $0x74] sm:$0xf]
  %v144 = vld [vmem:[%s1 + $0x78] sm:$0xf]
  %v145 = vld [vmem:[%s1 + $0x7c] sm:$0xf]
  %v146 = vld [vmem:[%s2] sm:$0x1]
  %v148 = vperm.slane %v146, 0
  %v250 = vunpack.c.l.b16 %v14
  %v251 = vunpack.c.h.b16 %v14
  %v252 = vunpack.c.l.b16 %v15
  %v253 = vunpack.c.h.b16 %v15
  %v254 = vunpack.c.l.b16 %v16
  %v255 = vunpack.c.h.b16 %v16
  %v256 = vunpack.c.l.b16 %v17
  %v257 = vunpack.c.h.b16 %v17
  %v258 = vunpack.c.l.b16 %v18
  %v259 = vunpack.c.h.b16 %v18
  %v260 = vunpack.c.l.b16 %v19
  %v261 = vunpack.c.h.b16 %v19
  %v262 = vunpack.c.l.b16 %v20
  %v263 = vunpack.c.h.b16 %v20
  %v264 = vunpack.c.l.b16 %v21
  %v265 = vunpack.c.h.b16 %v21
  %v266 = vunpack.c.l.b16 %v22
  %v267 = vunpack.c.h.b16 %v22
  %v268 = vunpack.c.l.b16 %v23
  %v269 = vunpack.c.h.b16 %v23
  %v270 = vunpack.c.l.b16 %v24
  %v271 = vunpack.c.h.b16 %v24
  %v272 = vunpack.c.l.b16 %v25
  %v273 = vunpack.c.h.b16 %v25
  %v274 = vunpack.c.l.b16 %v26
  %v275 = vunpack.c.h.b16 %v26
  %v276 = vunpack.c.l.b16 %v27
  %v277 = vunpack.c.h.b16 %v27
  %v278 = vunpack.c.l.b16 %v28
  %v279 = vunpack.c.h.b16 %v28
  %v280 = vunpack.c.l.b16 %v29
  %v281 = vunpack.c.h.b16 %v29
  %v282 = vunpack.c.l.b16 %v30
  %v283 = vunpack.c.h.b16 %v30
  %v284 = vunpack.c.l.b16 %v31
  %v285 = vunpack.c.h.b16 %v31
  %v286 = vunpack.c.l.b16 %v32
  %v287 = vunpack.c.h.b16 %v32
  %v288 = vunpack.c.l.b16 %v33
  %v289 = vunpack.c.h.b16 %v33
  %v290 = vunpack.c.l.b16 %v34
  %v291 = vunpack.c.h.b16 %v34
  %v292 = vunpack.c.l.b16 %v35
  %v293 = vunpack.c.h.b16 %v35
  %v294 = vunpack.c.l.b16 %v36
  %v295 = vunpack.c.h.b16 %v36
  %v296 = vunpack.c.l.b16 %v37
  %v297 = vunpack.c.h.b16 %v37
  %v298 = vunpack.c.l.b16 %v38
  %v299 = vunpack.c.h.b16 %v38
  %v300 = vunpack.c.l.b16 %v39
  %v301 = vunpack.c.h.b16 %v39
  %v302 = vunpack.c.l.b16 %v40
  %v303 = vunpack.c.h.b16 %v40
  %v304 = vunpack.c.l.b16 %v41
  %v305 = vunpack.c.h.b16 %v41
  %v306 = vunpack.c.l.b16 %v42
  %v307 = vunpack.c.h.b16 %v42
  %v308 = vunpack.c.l.b16 %v43
  %v309 = vunpack.c.h.b16 %v43
  %v310 = vunpack.c.l.b16 %v44
  %v311 = vunpack.c.h.b16 %v44
  %v312 = vunpack.c.l.b16 %v45
  %v313 = vunpack.c.h.b16 %v45
  %v314 = vunpack.c.l.b16 %v46
  %v315 = vunpack.c.h.b16 %v46
  %v316 = vunpack.c.l.b16 %v47
  %v317 = vunpack.c.h.b16 %v47
  %v318 = vunpack.c.l.b16 %v48
  %v319 = vunpack.c.h.b16 %v48
  %v320 = vunpack.c.l.b16 %v49
  %v321 = vunpack.c.h.b16 %v49
  %v322 = vunpack.c.l.b16 %v50
  %v323 = vunpack.c.h.b16 %v50
  %v324 = vunpack.c.l.b16 %v51
  %v325 = vunpack.c.h.b16 %v51
  %v326 = vunpack.c.l.b16 %v52
  %v327 = vunpack.c.h.b16 %v52
  %v328 = vunpack.c.l.b16 %v53
  %v329 = vunpack.c.h.b16 %v53
  %v330 = vunpack.c.l.b16 %v54
  %v331 = vunpack.c.h.b16 %v54
  %v332 = vunpack.c.l.b16 %v55
  %v333 = vunpack.c.h.b16 %v55
  %v334 = vunpack.c.l.b16 %v56
  %v335 = vunpack.c.h.b16 %v56
  %v336 = vunpack.c.l.b16 %v57
  %v337 = vunpack.c.h.b16 %v57
  %v338 = vunpack.c.l.b16 %v58
  %v339 = vunpack.c.h.b16 %v58
  %v340 = vunpack.c.l.b16 %v59
  %v341 = vunpack.c.h.b16 %v59
  %v342 = vunpack.c.l.b16 %v60
  %v343 = vunpack.c.h.b16 %v60
  %v344 = vunpack.c.l.b16 %v61
  %v345 = vunpack.c.h.b16 %v61
  %v346 = vunpack.c.l.b16 %v62
  %v347 = vunpack.c.h.b16 %v62
  %v348 = vunpack.c.l.b16 %v63
  %v349 = vunpack.c.h.b16 %v63
  %v350 = vunpack.c.l.b16 %v64
  %v351 = vunpack.c.h.b16 %v64
  %v352 = vunpack.c.l.b16 %v65
  %v353 = vunpack.c.h.b16 %v65
  %v354 = vunpack.c.l.b16 %v66
  %v355 = vunpack.c.h.b16 %v66
  %v356 = vunpack.c.l.b16 %v67
  %v357 = vunpack.c.h.b16 %v67
  %v358 = vunpack.c.l.b16 %v68
  %v359 = vunpack.c.h.b16 %v68
  %v360 = vunpack.c.l.b16 %v69
  %v361 = vunpack.c.h.b16 %v69
  %v362 = vunpack.c.l.b16 %v70
  %v363 = vunpack.c.h.b16 %v70
  %v364 = vunpack.c.l.b16 %v71
  %v365 = vunpack.c.h.b16 %v71
  %v366 = vunpack.c.l.b16 %v72
  %v367 = vunpack.c.h.b16 %v72
  %v368 = vunpack.c.l.b16 %v73
  %v369 = vunpack.c.h.b16 %v73
  %v370 = vunpack.c.l.b16 %v74
  %v371 = vunpack.c.h.b16 %v74
  %v372 = vunpack.c.l.b16 %v75
  %v373 = vunpack.c.h.b16 %v75
  %v374 = vunpack.c.l.b16 %v76
  %v375 = vunpack.c.h.b16 %v76
  %v376 = vunpack.c.l.b16 %v77
  %v377 = vunpack.c.h.b16 %v77
  %v378 = vunpack.c.l.b16 %v78
  %v379 = vunpack.c.h.b16 %v78
  %v380 = vunpack.c.l.b16 %v79
  %v381 = vunpack.c.h.b16 %v79
  %v382 = vunpack.c.l.b16 %v80
  %v383 = vunpack.c.h.b16 %v80
  %v384 = vunpack.c.l.b16 %v81
  %v385 = vunpack.c.h.b16 %v81
  %v386 = vunpack.c.l.b16 %v82
  %v387 = vunpack.c.h.b16 %v82
  %v388 = vunpack.c.l.b16 %v83
  %v389 = vunpack.c.h.b16 %v83
  %v390 = vunpack.c.l.b16 %v84
  %v391 = vunpack.c.h.b16 %v84
  %v392 = vunpack.c.l.b16 %v85
  %v393 = vunpack.c.h.b16 %v85
  %v394 = vunpack.c.l.b16 %v86
  %v395 = vunpack.c.h.b16 %v86
  %v396 = vunpack.c.l.b16 %v87
  %v397 = vunpack.c.h.b16 %v87
  %v398 = vunpack.c.l.b16 %v88
  %v399 = vunpack.c.h.b16 %v88
  %v400 = vunpack.c.l.b16 %v89
  %v401 = vunpack.c.h.b16 %v89
  %v402 = vunpack.c.l.b16 %v90
  %v403 = vunpack.c.h.b16 %v90
  %v404 = vunpack.c.l.b16 %v91
  %v405 = vunpack.c.h.b16 %v91
  %v406 = vunpack.c.l.b16 %v92
  %v407 = vunpack.c.h.b16 %v92
  %v408 = vunpack.c.l.b16 %v93
  %v409 = vunpack.c.h.b16 %v93
  %v410 = vunpack.c.l.b16 %v94
  %v411 = vunpack.c.h.b16 %v94
  %v412 = vunpack.c.l.b16 %v95
  %v413 = vunpack.c.h.b16 %v95
  %v414 = vunpack.c.l.b16 %v96
  %v415 = vunpack.c.h.b16 %v96
  %v416 = vunpack.c.l.b16 %v97
  %v417 = vunpack.c.h.b16 %v97
  %v418 = vunpack.c.l.b16 %v98
  %v419 = vunpack.c.h.b16 %v98
  %v420 = vunpack.c.l.b16 %v99
  %v421 = vunpack.c.h.b16 %v99
  %v422 = vunpack.c.l.b16 %v100
  %v423 = vunpack.c.h.b16 %v100
  %v424 = vunpack.c.l.b16 %v101
  %v425 = vunpack.c.h.b16 %v101
  %v426 = vunpack.c.l.b16 %v102
  %v427 = vunpack.c.h.b16 %v102
  %v428 = vunpack.c.l.b16 %v103
  %v429 = vunpack.c.h.b16 %v103
  %v430 = vunpack.c.l.b16 %v104
  %v431 = vunpack.c.h.b16 %v104
  %v432 = vunpack.c.l.b16 %v105
  %v433 = vunpack.c.h.b16 %v105
  %v434 = vunpack.c.l.b16 %v106
  %v435 = vunpack.c.h.b16 %v106
  %v436 = vunpack.c.l.b16 %v107
  %v437 = vunpack.c.h.b16 %v107
  %v438 = vunpack.c.l.b16 %v108
  %v439 = vunpack.c.h.b16 %v108
  %v440 = vunpack.c.l.b16 %v109
  %v441 = vunpack.c.h.b16 %v109
  %v442 = vunpack.c.l.b16 %v110
  %v443 = vunpack.c.h.b16 %v110
  %v444 = vunpack.c.l.b16 %v111
  %v445 = vunpack.c.h.b16 %v111
  %v446 = vunpack.c.l.b16 %v112
  %v447 = vunpack.c.h.b16 %v112
  %v448 = vunpack.c.l.b16 %v113
  %v449 = vunpack.c.h.b16 %v113
  %v450 = vpack.c.b16 %v252, %v250
  %v451 = vpack.c.b16 %v253, %v251
  %v452 = vpack.c.b16 %v256, %v254
  %v453 = vpack.c.b16 %v257, %v255
  %v454 = vpack.c.b16 %v260, %v258
  %v455 = vpack.c.b16 %v261, %v259
  %v456 = vpack.c.b16 %v264, %v262
  %v457 = vpack.c.b16 %v265, %v263
  %v458 = vpack.c.b16 %v268, %v266
  %v459 = vpack.c.b16 %v269, %v267
  %v460 = vpack.c.b16 %v272, %v270
  %v461 = vpack.c.b16 %v273, %v271
  %v462 = vpack.c.b16 %v276, %v274
  %v463 = vpack.c.b16 %v277, %v275
  %v464 = vpack.c.b16 %v280, %v278
  %v465 = vpack.c.b16 %v281, %v279
  %v466 = vpack.c.b16 %v284, %v282
  %v467 = vpack.c.b16 %v285, %v283
  %v468 = vpack.c.b16 %v288, %v286
  %v469 = vpack.c.b16 %v289, %v287
  %v470 = vpack.c.b16 %v292, %v290
  %v471 = vpack.c.b16 %v293, %v291
  %v472 = vpack.c.b16 %v296, %v294
  %v473 = vpack.c.b16 %v297, %v295
  %v474 = vpack.c.b16 %v300, %v298
  %v475 = vpack.c.b16 %v301, %v299
  %v476 = vpack.c.b16 %v304, %v302
  %v477 = vpack.c.b16 %v305, %v303
  %v478 = vpack.c.b16 %v308, %v306
  %v479 = vpack.c.b16 %v309, %v307
  %v480 = vpack.c.b16 %v312, %v310
  %v481 = vpack.c.b16 %v313, %v311
  %v482 = vpack.c.b16 %v316, %v314
  %v483 = vpack.c.b16 %v317, %v315
  %v484 = vpack.c.b16 %v320, %v318
  %v485 = vpack.c.b16 %v321, %v319
  %v486 = vpack.c.b16 %v324, %v322
  %v487 = vpack.c.b16 %v325, %v323
  %v488 = vpack.c.b16 %v328, %v326
  %v489 = vpack.c.b16 %v329, %v327
  %v490 = vpack.c.b16 %v332, %v330
  %v491 = vpack.c.b16 %v333, %v331
  %v492 = vpack.c.b16 %v336, %v334
  %v493 = vpack.c.b16 %v337, %v335
  %v494 = vpack.c.b16 %v340, %v338
  %v495 = vpack.c.b16 %v341, %v339
  %v496 = vpack.c.b16 %v344, %v342
  %v497 = vpack.c.b16 %v345, %v343
  %v498 = vpack.c.b16 %v348, %v346
  %v499 = vpack.c.b16 %v349, %v347
  %v500 = vpack.c.b16 %v352, %v350
  %v501 = vpack.c.b16 %v353, %v351
  %v502 = vpack.c.b16 %v356, %v354
  %v503 = vpack.c.b16 %v357, %v355
  %v504 = vpack.c.b16 %v360, %v358
  %v505 = vpack.c.b16 %v361, %v359
  %v506 = vpack.c.b16 %v364, %v362
  %v507 = vpack.c.b16 %v365, %v363
  %v508 = vpack.c.b16 %v368, %v366
  %v509 = vpack.c.b16 %v369, %v367
  %v510 = vpack.c.b16 %v372, %v370
  %v511 = vpack.c.b16 %v373, %v371
  %v512 = vpack.c.b16 %v376, %v374
  %v513 = vpack.c.b16 %v377, %v375
  %v514 = vpack.c.b16 %v380, %v378
  %v515 = vpack.c.b16 %v381, %v379
  %v516 = vpack.c.b16 %v384, %v382
  %v517 = vpack.c.b16 %v385, %v383
  %v518 = vpack.c.b16 %v388, %v386
  %v519 = vpack.c.b16 %v389, %v387
  %v520 = vpack.c.b16 %v392, %v390
  %v521 = vpack.c.b16 %v393, %v391
  %v522 = vpack.c.b16 %v396, %v394
  %v523 = vpack.c.b16 %v397, %v395
  %v524 = vpack.c.b16 %v400, %v398
  %v525 = vpack.c.b16 %v401, %v399
  %v526 = vpack.c.b16 %v404, %v402
  %v527 = vpack.c.b16 %v405, %v403
  %v528 = vpack.c.b16 %v408, %v406
  %v529 = vpack.c.b16 %v409, %v407
  %v530 = vpack.c.b16 %v412, %v410
  %v531 = vpack.c.b16 %v413, %v411
  %v532 = vpack.c.b16 %v416, %v414
  %v533 = vpack.c.b16 %v417, %v415
  %v534 = vpack.c.b16 %v420, %v418
  %v535 = vpack.c.b16 %v421, %v419
  %v536 = vpack.c.b16 %v424, %v422
  %v537 = vpack.c.b16 %v425, %v423
  %v538 = vpack.c.b16 %v428, %v426
  %v539 = vpack.c.b16 %v429, %v427
  %v540 = vpack.c.b16 %v432, %v430
  %v541 = vpack.c.b16 %v433, %v431
  %v542 = vpack.c.b16 %v436, %v434
  %v543 = vpack.c.b16 %v437, %v435
  %v544 = vpack.c.b16 %v440, %v438
  %v545 = vpack.c.b16 %v441, %v439
  %v546 = vpack.c.b16 %v444, %v442
  %v547 = vpack.c.b16 %v445, %v443
  %v548 = vpack.c.b16 %v448, %v446
  %v549 = vpack.c.b16 %v449, %v447
  %v682 = vunpack.c.l.b16 %v114
  %v683 = vunpack.c.l.b16 %v115
  %v684 = vunpack.c.l.b16 %v116
  %v685 = vunpack.c.l.b16 %v117
  %v686 = vunpack.c.l.b16 %v118
  %v687 = vunpack.c.l.b16 %v119
  %v688 = vunpack.c.l.b16 %v120
  %v689 = vunpack.c.l.b16 %v121
  %v690 = vunpack.c.l.b16 %v122
  %v691 = vunpack.c.l.b16 %v123
  %v692 = vunpack.c.l.b16 %v124
  %v693 = vunpack.c.l.b16 %v125
  %v694 = vunpack.c.l.b16 %v126
  %v695 = vunpack.c.l.b16 %v127
  %v696 = vunpack.c.l.b16 %v128
  %v697 = vunpack.c.l.b16 %v129
  %v698 = vunpack.c.l.b16 %v130
  %v699 = vunpack.c.l.b16 %v131
  %v700 = vunpack.c.l.b16 %v132
  %v701 = vunpack.c.l.b16 %v133
  %v702 = vunpack.c.l.b16 %v134
  %v703 = vunpack.c.l.b16 %v135
  %v704 = vunpack.c.l.b16 %v136
  %v705 = vunpack.c.l.b16 %v137
  %v706 = vunpack.c.l.b16 %v138
  %v707 = vunpack.c.l.b16 %v139
  %v708 = vunpack.c.l.b16 %v140
  %v709 = vunpack.c.l.b16 %v141
  %v710 = vunpack.c.l.b16 %v142
  %v711 = vunpack.c.l.b16 %v143
  %v712 = vunpack.c.l.b16 %v144
  %v713 = vunpack.c.l.b16 %v145
  %v714 = vpack.c.b16 %v683, %v682
  %v715 = vpack.c.b16 %v685, %v684
  %v716 = vpack.c.b16 %v687, %v686
  %v717 = vpack.c.b16 %v689, %v688
  %v718 = vpack.c.b16 %v691, %v690
  %v719 = vpack.c.b16 %v693, %v692
  %v720 = vpack.c.b16 %v695, %v694
  %v721 = vpack.c.b16 %v697, %v696
  %v722 = vpack.c.b16 %v699, %v698
  %v723 = vpack.c.b16 %v701, %v700
  %v724 = vpack.c.b16 %v703, %v702
  %v725 = vpack.c.b16 %v705, %v704
  %v726 = vpack.c.b16 %v707, %v706
  %v727 = vpack.c.b16 %v709, %v708
  %v728 = vpack.c.b16 %v711, %v710
  %v729 = vpack.c.b16 %v713, %v712
  %746 = vmatpush.bf16.msra.mxu0 %v721
  %747 = vmatpush.bf16.msra.mxu0 %v720
  %748 = vmatpush.bf16.msra.mxu0 %v719
  %749 = vmatpush.bf16.msra.mxu0 %v718
  %750 = vmatpush.bf16.msra.mxu0 %v717
  %751 = vmatpush.bf16.msra.mxu0 %v716
  %752 = vmatpush.bf16.msra.mxu0 %v715
  %753 = vmatpush.bf16.msra.mxu0 %v714
  %754 = vmatmul.bf16.gmra.mxu0 %v450
  %v755 = vpop.f32.mrf.mxu0
  %v756 = vadd.f32 %v148, %v755
  %v757 = vpop.f32.mrf.mxu0
  %v758 = vadd.f32 %v148, %v757
  %759 = vmatmul.bf16.gmra.mxu0 %v452
  %v760 = vpop.f32.mrf.mxu0
  %v761 = vadd.f32 %v148, %v760
  %v762 = vpop.f32.mrf.mxu0
  %v763 = vadd.f32 %v148, %v762
  %764 = vmatmul.bf16.gmra.mxu0 %v454
  %v765 = vpop.f32.mrf.mxu0
  %v766 = vadd.f32 %v148, %v765
  %v767 = vpop.f32.mrf.mxu0
  %v768 = vadd.f32 %v148, %v767
  %769 = vmatmul.bf16.gmra.mxu0 %v456
  %v770 = vpop.f32.mrf.mxu0
  %v771 = vadd.f32 %v148, %v770
  %v772 = vpop.f32.mrf.mxu0
  %v773 = vadd.f32 %v148, %v772
  %774 = vmatmul.bf16.gmra.mxu0 %v458
  %v775 = vpop.f32.mrf.mxu0
  %v776 = vadd.f32 %v148, %v775
  %v777 = vpop.f32.mrf.mxu0
  %v778 = vadd.f32 %v148, %v777
  %779 = vmatmul.bf16.gmra.mxu0 %v460
  %v780 = vpop.f32.mrf.mxu0
  %v781 = vadd.f32 %v148, %v780
  %v782 = vpop.f32.mrf.mxu0
  %v783 = vadd.f32 %v148, %v782
  %784 = vmatmul.bf16.gmra.mxu0 %v462
  %v785 = vpop.f32.mrf.mxu0
  %v786 = vadd.f32 %v148, %v785
  %v787 = vpop.f32.mrf.mxu0
  %v788 = vadd.f32 %v148, %v787
  %789 = vmatmul.bf16.gmra.mxu0 %v464
  %v790 = vpop.f32.mrf.mxu0
  %v791 = vadd.f32 %v148, %v790
  %v792 = vpop.f32.mrf.mxu0
  %v793 = vadd.f32 %v148, %v792
  %794 = vmatmul.bf16.gmra.mxu0 %v466
  %v795 = vpop.f32.mrf.mxu0
  %v796 = vadd.f32 %v148, %v795
  %v797 = vpop.f32.mrf.mxu0
  %v798 = vadd.f32 %v148, %v797
  %799 = vmatmul.bf16.gmra.mxu0 %v468
  %v800 = vpop.f32.mrf.mxu0
  %v801 = vadd.f32 %v148, %v800
  %v802 = vpop.f32.mrf.mxu0
  %v803 = vadd.f32 %v148, %v802
  %804 = vmatmul.bf16.gmra.mxu0 %v470
  %v805 = vpop.f32.mrf.mxu0
  %v806 = vadd.f32 %v148, %v805
  %v807 = vpop.f32.mrf.mxu0
  %v808 = vadd.f32 %v148, %v807
  %809 = vmatmul.bf16.gmra.mxu0 %v472
  %v810 = vpop.f32.mrf.mxu0
  %v811 = vadd.f32 %v148, %v810
  %v812 = vpop.f32.mrf.mxu0
  %v813 = vadd.f32 %v148, %v812
  %814 = vmatmul.bf16.gmra.mxu0 %v474
  %v815 = vpop.f32.mrf.mxu0
  %v816 = vadd.f32 %v148, %v815
  %v817 = vpop.f32.mrf.mxu0
  %v818 = vadd.f32 %v148, %v817
  %819 = vmatmul.bf16.gmra.mxu0 %v476
  %v820 = vpop.f32.mrf.mxu0
  %v821 = vadd.f32 %v148, %v820
  %v822 = vpop.f32.mrf.mxu0
  %v823 = vadd.f32 %v148, %v822
  %824 = vmatmul.bf16.gmra.mxu0 %v478
  %v825 = vpop.f32.mrf.mxu0
  %v826 = vadd.f32 %v148, %v825
  %v827 = vpop.f32.mrf.mxu0
  %v828 = vadd.f32 %v148, %v827
  %829 = vmatmul.bf16.gmra.mxu0 %v480
  %v830 = vpop.f32.mrf.mxu0
  %v831 = vadd.f32 %v148, %v830
  %v832 = vpop.f32.mrf.mxu0
  %v833 = vadd.f32 %v148, %v832
  %834 = vmatmul.bf16.gmra.mxu0 %v482
  %v835 = vpop.f32.mrf.mxu0
  %v836 = vadd.f32 %v148, %v835
  %v837 = vpop.f32.mrf.mxu0
  %v838 = vadd.f32 %v148, %v837
  %839 = vmatmul.bf16.gmra.mxu0 %v484
  %v840 = vpop.f32.mrf.mxu0
  %v841 = vadd.f32 %v148, %v840
  %v842 = vpop.f32.mrf.mxu0
  %v843 = vadd.f32 %v148, %v842
  %844 = vmatmul.bf16.gmra.mxu0 %v486
  %v845 = vpop.f32.mrf.mxu0
  %v846 = vadd.f32 %v148, %v845
  %v847 = vpop.f32.mrf.mxu0
  %v848 = vadd.f32 %v148, %v847
  %849 = vmatmul.bf16.gmra.mxu0 %v488
  %v850 = vpop.f32.mrf.mxu0
  %v851 = vadd.f32 %v148, %v850
  %v852 = vpop.f32.mrf.mxu0
  %v853 = vadd.f32 %v148, %v852
  %854 = vmatmul.bf16.gmra.mxu0 %v490
  %v855 = vpop.f32.mrf.mxu0
  %v856 = vadd.f32 %v148, %v855
  %v857 = vpop.f32.mrf.mxu0
  %v858 = vadd.f32 %v148, %v857
  %859 = vmatmul.bf16.gmra.mxu0 %v492
  %v860 = vpop.f32.mrf.mxu0
  %v861 = vadd.f32 %v148, %v860
  %v862 = vpop.f32.mrf.mxu0
  %v863 = vadd.f32 %v148, %v862
  %864 = vmatmul.bf16.gmra.mxu0 %v494
  %v865 = vpop.f32.mrf.mxu0
  %v866 = vadd.f32 %v148, %v865
  %v867 = vpop.f32.mrf.mxu0
  %v868 = vadd.f32 %v148, %v867
  %869 = vmatmul.bf16.gmra.mxu0 %v496
  %v870 = vpop.f32.mrf.mxu0
  %v871 = vadd.f32 %v148, %v870
  %v872 = vpop.f32.mrf.mxu0
  %v873 = vadd.f32 %v148, %v872
  %874 = vmatmul.bf16.gmra.mxu0 %v498
  %v875 = vpop.f32.mrf.mxu0
  %v876 = vadd.f32 %v148, %v875
  %v877 = vpop.f32.mrf.mxu0
  %v878 = vadd.f32 %v148, %v877
  %879 = vmatmul.bf16.gmra.mxu0 %v500
  %v880 = vpop.f32.mrf.mxu0
  %v881 = vadd.f32 %v148, %v880
  %v882 = vpop.f32.mrf.mxu0
  %v883 = vadd.f32 %v148, %v882
  %884 = vmatmul.bf16.gmra.mxu0 %v502
  %v885 = vpop.f32.mrf.mxu0
  %v886 = vadd.f32 %v148, %v885
  %v887 = vpop.f32.mrf.mxu0
  %v888 = vadd.f32 %v148, %v887
  %889 = vmatmul.bf16.gmra.mxu0 %v504
  %v890 = vpop.f32.mrf.mxu0
  %v891 = vadd.f32 %v148, %v890
  %v892 = vpop.f32.mrf.mxu0
  %v893 = vadd.f32 %v148, %v892
  %894 = vmatmul.bf16.gmra.mxu0 %v506
  %v895 = vpop.f32.mrf.mxu0
  %v896 = vadd.f32 %v148, %v895
  %v897 = vpop.f32.mrf.mxu0
  %v898 = vadd.f32 %v148, %v897
  %899 = vmatmul.bf16.gmra.mxu0 %v508
  %v900 = vpop.f32.mrf.mxu0
  %v901 = vadd.f32 %v148, %v900
  %v902 = vpop.f32.mrf.mxu0
  %v903 = vadd.f32 %v148, %v902
  %904 = vmatmul.bf16.gmra.mxu0 %v510
  %v905 = vpop.f32.mrf.mxu0
  %v906 = vadd.f32 %v148, %v905
  %v907 = vpop.f32.mrf.mxu0
  %v908 = vadd.f32 %v148, %v907
  %909 = vmatmul.bf16.gmra.mxu0 %v512
  %v910 = vpop.f32.mrf.mxu0
  %v911 = vadd.f32 %v148, %v910
  %v912 = vpop.f32.mrf.mxu0
  %v913 = vadd.f32 %v148, %v912
  %914 = vmatmul.bf16.gmra.mxu0 %v514
  %v915 = vpop.f32.mrf.mxu0
  %v916 = vadd.f32 %v148, %v915
  %v917 = vpop.f32.mrf.mxu0
  %v918 = vadd.f32 %v148, %v917
  %919 = vmatmul.bf16.gmra.mxu0 %v516
  %v920 = vpop.f32.mrf.mxu0
  %v921 = vadd.f32 %v148, %v920
  %v922 = vpop.f32.mrf.mxu0
  %v923 = vadd.f32 %v148, %v922
  %924 = vmatmul.bf16.gmra.mxu0 %v518
  %v925 = vpop.f32.mrf.mxu0
  %v926 = vadd.f32 %v148, %v925
  %v927 = vpop.f32.mrf.mxu0
  %v928 = vadd.f32 %v148, %v927
  %929 = vmatmul.bf16.gmra.mxu0 %v520
  %v930 = vpop.f32.mrf.mxu0
  %v931 = vadd.f32 %v148, %v930
  %v932 = vpop.f32.mrf.mxu0
  %v933 = vadd.f32 %v148, %v932
  %934 = vmatmul.bf16.gmra.mxu0 %v522
  %v935 = vpop.f32.mrf.mxu0
  %v936 = vadd.f32 %v148, %v935
  %v937 = vpop.f32.mrf.mxu0
  %v938 = vadd.f32 %v148, %v937
  %939 = vmatmul.bf16.gmra.mxu0 %v524
  %v940 = vpop.f32.mrf.mxu0
  %v941 = vadd.f32 %v148, %v940
  %v942 = vpop.f32.mrf.mxu0
  %v943 = vadd.f32 %v148, %v942
  %944 = vmatmul.bf16.gmra.mxu0 %v526
  %v945 = vpop.f32.mrf.mxu0
  %v946 = vadd.f32 %v148, %v945
  %v947 = vpop.f32.mrf.mxu0
  %v948 = vadd.f32 %v148, %v947
  %949 = vmatmul.bf16.gmra.mxu0 %v528
  %v950 = vpop.f32.mrf.mxu0
  %v951 = vadd.f32 %v148, %v950
  %v952 = vpop.f32.mrf.mxu0
  %v953 = vadd.f32 %v148, %v952
  %954 = vmatmul.bf16.gmra.mxu0 %v530
  %v955 = vpop.f32.mrf.mxu0
  %v956 = vadd.f32 %v148, %v955
  %v957 = vpop.f32.mrf.mxu0
  %v958 = vadd.f32 %v148, %v957
  %959 = vmatmul.bf16.gmra.mxu0 %v532
  %v960 = vpop.f32.mrf.mxu0
  %v961 = vadd.f32 %v148, %v960
  %v962 = vpop.f32.mrf.mxu0
  %v963 = vadd.f32 %v148, %v962
  %964 = vmatmul.bf16.gmra.mxu0 %v534
  %v965 = vpop.f32.mrf.mxu0
  %v966 = vadd.f32 %v148, %v965
  %v967 = vpop.f32.mrf.mxu0
  %v968 = vadd.f32 %v148, %v967
  %969 = vmatmul.bf16.gmra.mxu0 %v536
  %v970 = vpop.f32.mrf.mxu0
  %v971 = vadd.f32 %v148, %v970
  %v972 = vpop.f32.mrf.mxu0
  %v973 = vadd.f32 %v148, %v972
  %974 = vmatmul.bf16.gmra.mxu0 %v538
  %v975 = vpop.f32.mrf.mxu0
  %v976 = vadd.f32 %v148, %v975
  %v977 = vpop.f32.mrf.mxu0
  %v978 = vadd.f32 %v148, %v977
  %979 = vmatmul.bf16.gmra.mxu0 %v540
  %v980 = vpop.f32.mrf.mxu0
  %v981 = vadd.f32 %v148, %v980
  %v982 = vpop.f32.mrf.mxu0
  %v983 = vadd.f32 %v148, %v982
  %984 = vmatmul.bf16.gmra.mxu0 %v542
  %v985 = vpop.f32.mrf.mxu0
  %v986 = vadd.f32 %v148, %v985
  %v987 = vpop.f32.mrf.mxu0
  %v988 = vadd.f32 %v148, %v987
  %989 = vmatmul.bf16.gmra.mxu0 %v544
  %v990 = vpop.f32.mrf.mxu0
  %v991 = vadd.f32 %v148, %v990
  %v992 = vpop.f32.mrf.mxu0
  %v993 = vadd.f32 %v148, %v992
  %994 = vmatmul.bf16.gmra.mxu0 %v546
  %v995 = vpop.f32.mrf.mxu0
  %v996 = vadd.f32 %v148, %v995
  %v997 = vpop.f32.mrf.mxu0
  %v998 = vadd.f32 %v148, %v997
  %999 = vmatmul.bf16.gmra.mxu0 %v548
  %v1000 = vpop.f32.mrf.mxu0
  %v1001 = vadd.f32 %v148, %v1000
  %v1002 = vpop.f32.mrf.mxu0
  %v1003 = vadd.f32 %v148, %v1002
  %1004 = vdwg.mxu0
  %1005 = vmatpush.bf16.msra.mxu0 %v729
  %1006 = vmatpush.bf16.msra.mxu0 %v728
  %1007 = vmatpush.bf16.msra.mxu0 %v727
  %1008 = vmatpush.bf16.msra.mxu0 %v726
  %1009 = vmatpush.bf16.msra.mxu0 %v725
  %1010 = vmatpush.bf16.msra.mxu0 %v724
  %1011 = vmatpush.bf16.msra.mxu0 %v723
  %1012 = vmatpush.bf16.msra.mxu0 %v722
  %1013 = vmatmul.bf16.gmra.mxu0 %v451
  %v1014 = vpop.f32.mrf.mxu0
  %v1015 = vadd.f32 %v756, %v1014
  %v1016 = vpop.f32.mrf.mxu0
  %v1017 = vadd.f32 %v758, %v1016
  %1018 = vmatmul.bf16.gmra.mxu0 %v453
  %v1019 = vpop.f32.mrf.mxu0
  %v1020 = vadd.f32 %v761, %v1019
  %v1021 = vpop.f32.mrf.mxu0
  %v1022 = vadd.f32 %v763, %v1021
  %1023 = vmatmul.bf16.gmra.mxu0 %v455
  %v1024 = vpop.f32.mrf.mxu0
  %v1025 = vadd.f32 %v766, %v1024
  %v1026 = vpop.f32.mrf.mxu0
  %v1027 = vadd.f32 %v768, %v1026
  %1028 = vmatmul.bf16.gmra.mxu0 %v457
  %v1029 = vpop.f32.mrf.mxu0
  %v1030 = vadd.f32 %v771, %v1029
  %v1031 = vpop.f32.mrf.mxu0
  %v1032 = vadd.f32 %v773, %v1031
  %1033 = vmatmul.bf16.gmra.mxu0 %v459
  %v1034 = vpop.f32.mrf.mxu0
  %v1035 = vadd.f32 %v776, %v1034
  %v1036 = vpop.f32.mrf.mxu0
  %v1037 = vadd.f32 %v778, %v1036
  %1038 = vmatmul.bf16.gmra.mxu0 %v461
  %v1039 = vpop.f32.mrf.mxu0
  %v1040 = vadd.f32 %v781, %v1039
  %v1041 = vpop.f32.mrf.mxu0
  %v1042 = vadd.f32 %v783, %v1041
  %1043 = vmatmul.bf16.gmra.mxu0 %v463
  %v1044 = vpop.f32.mrf.mxu0
  %v1045 = vadd.f32 %v786, %v1044
  %v1046 = vpop.f32.mrf.mxu0
  %v1047 = vadd.f32 %v788, %v1046
  %1048 = vmatmul.bf16.gmra.mxu0 %v465
  %v1049 = vpop.f32.mrf.mxu0
  %v1050 = vadd.f32 %v791, %v1049
  %v1051 = vpop.f32.mrf.mxu0
  %v1052 = vadd.f32 %v793, %v1051
  %1053 = vmatmul.bf16.gmra.mxu0 %v467
  %v1054 = vpop.f32.mrf.mxu0
  %v1055 = vadd.f32 %v796, %v1054
  %v1056 = vpop.f32.mrf.mxu0
  %v1057 = vadd.f32 %v798, %v1056
  %1058 = vmatmul.bf16.gmra.mxu0 %v469
  %v1059 = vpop.f32.mrf.mxu0
  %v1060 = vadd.f32 %v801, %v1059
  %v1061 = vpop.f32.mrf.mxu0
  %v1062 = vadd.f32 %v803, %v1061
  %1063 = vmatmul.bf16.gmra.mxu0 %v471
  %v1064 = vpop.f32.mrf.mxu0
  %v1065 = vadd.f32 %v806, %v1064
  %v1066 = vpop.f32.mrf.mxu0
  %v1067 = vadd.f32 %v808, %v1066
  %1068 = vmatmul.bf16.gmra.mxu0 %v473
  %v1069 = vpop.f32.mrf.mxu0
  %v1070 = vadd.f32 %v811, %v1069
  %v1071 = vpop.f32.mrf.mxu0
  %v1072 = vadd.f32 %v813, %v1071
  %1073 = vmatmul.bf16.gmra.mxu0 %v475
  %v1074 = vpop.f32.mrf.mxu0
  %v1075 = vadd.f32 %v816, %v1074
  %v1076 = vpop.f32.mrf.mxu0
  %v1077 = vadd.f32 %v818, %v1076
  %1078 = vmatmul.bf16.gmra.mxu0 %v477
  %v1079 = vpop.f32.mrf.mxu0
  %v1080 = vadd.f32 %v821, %v1079
  %v1081 = vpop.f32.mrf.mxu0
  %v1082 = vadd.f32 %v823, %v1081
  %1083 = vmatmul.bf16.gmra.mxu0 %v479
  %v1084 = vpop.f32.mrf.mxu0
  %v1085 = vadd.f32 %v826, %v1084
  %v1086 = vpop.f32.mrf.mxu0
  %v1087 = vadd.f32 %v828, %v1086
  %1088 = vmatmul.bf16.gmra.mxu0 %v481
  %v1089 = vpop.f32.mrf.mxu0
  %v1090 = vadd.f32 %v831, %v1089
  %v1091 = vpop.f32.mrf.mxu0
  %v1092 = vadd.f32 %v833, %v1091
  %1093 = vmatmul.bf16.gmra.mxu0 %v483
  %v1094 = vpop.f32.mrf.mxu0
  %v1095 = vadd.f32 %v836, %v1094
  %v1096 = vpop.f32.mrf.mxu0
  %v1097 = vadd.f32 %v838, %v1096
  %1098 = vmatmul.bf16.gmra.mxu0 %v485
  %v1099 = vpop.f32.mrf.mxu0
  %v1100 = vadd.f32 %v841, %v1099
  %v1101 = vpop.f32.mrf.mxu0
  %v1102 = vadd.f32 %v843, %v1101
  %1103 = vmatmul.bf16.gmra.mxu0 %v487
  %v1104 = vpop.f32.mrf.mxu0
  %v1105 = vadd.f32 %v846, %v1104
  %v1106 = vpop.f32.mrf.mxu0
  %v1107 = vadd.f32 %v848, %v1106
  %1108 = vmatmul.bf16.gmra.mxu0 %v489
  %v1109 = vpop.f32.mrf.mxu0
  %v1110 = vadd.f32 %v851, %v1109
  %v1111 = vpop.f32.mrf.mxu0
  %v1112 = vadd.f32 %v853, %v1111
  %1113 = vmatmul.bf16.gmra.mxu0 %v491
  %v1114 = vpop.f32.mrf.mxu0
  %v1115 = vadd.f32 %v856, %v1114
  %v1116 = vpop.f32.mrf.mxu0
  %v1117 = vadd.f32 %v858, %v1116
  %1118 = vmatmul.bf16.gmra.mxu0 %v493
  %v1119 = vpop.f32.mrf.mxu0
  %v1120 = vadd.f32 %v861, %v1119
  %v1121 = vpop.f32.mrf.mxu0
  %v1122 = vadd.f32 %v863, %v1121
  %1123 = vmatmul.bf16.gmra.mxu0 %v495
  %v1124 = vpop.f32.mrf.mxu0
  %v1125 = vadd.f32 %v866, %v1124
  %v1126 = vpop.f32.mrf.mxu0
  %v1127 = vadd.f32 %v868, %v1126
  %1128 = vmatmul.bf16.gmra.mxu0 %v497
  %v1129 = vpop.f32.mrf.mxu0
  %v1130 = vadd.f32 %v871, %v1129
  %v1131 = vpop.f32.mrf.mxu0
  %v1132 = vadd.f32 %v873, %v1131
  %1133 = vmatmul.bf16.gmra.mxu0 %v499
  %v1134 = vpop.f32.mrf.mxu0
  %v1135 = vadd.f32 %v876, %v1134
  %v1136 = vpop.f32.mrf.mxu0
  %v1137 = vadd.f32 %v878, %v1136
  %1138 = vmatmul.bf16.gmra.mxu0 %v501
  %v1139 = vpop.f32.mrf.mxu0
  %v1140 = vadd.f32 %v881, %v1139
  %v1141 = vpop.f32.mrf.mxu0
  %v1142 = vadd.f32 %v883, %v1141
  %1143 = vmatmul.bf16.gmra.mxu0 %v503
  %v1144 = vpop.f32.mrf.mxu0
  %v1145 = vadd.f32 %v886, %v1144
  %v1146 = vpop.f32.mrf.mxu0
  %v1147 = vadd.f32 %v888, %v1146
  %1148 = vmatmul.bf16.gmra.mxu0 %v505
  %v1149 = vpop.f32.mrf.mxu0
  %v1150 = vadd.f32 %v891, %v1149
  %v1151 = vpop.f32.mrf.mxu0
  %v1152 = vadd.f32 %v893, %v1151
  %1153 = vmatmul.bf16.gmra.mxu0 %v507
  %v1154 = vpop.f32.mrf.mxu0
  %v1155 = vadd.f32 %v896, %v1154
  %v1156 = vpop.f32.mrf.mxu0
  %v1157 = vadd.f32 %v898, %v1156
  %1158 = vmatmul.bf16.gmra.mxu0 %v509
  %v1159 = vpop.f32.mrf.mxu0
  %v1160 = vadd.f32 %v901, %v1159
  %v1161 = vpop.f32.mrf.mxu0
  %v1162 = vadd.f32 %v903, %v1161
  %1163 = vmatmul.bf16.gmra.mxu0 %v511
  %v1164 = vpop.f32.mrf.mxu0
  %v1165 = vadd.f32 %v906, %v1164
  %v1166 = vpop.f32.mrf.mxu0
  %v1167 = vadd.f32 %v908, %v1166
  %1168 = vmatmul.bf16.gmra.mxu0 %v513
  %v1169 = vpop.f32.mrf.mxu0
  %v1170 = vadd.f32 %v911, %v1169
  %v1171 = vpop.f32.mrf.mxu0
  %v1172 = vadd.f32 %v913, %v1171
  %1173 = vmatmul.bf16.gmra.mxu0 %v515
  %v1174 = vpop.f32.mrf.mxu0
  %v1175 = vadd.f32 %v916, %v1174
  %v1176 = vpop.f32.mrf.mxu0
  %v1177 = vadd.f32 %v918, %v1176
  %1178 = vmatmul.bf16.gmra.mxu0 %v517
  %v1179 = vpop.f32.mrf.mxu0
  %v1180 = vadd.f32 %v921, %v1179
  %v1181 = vpop.f32.mrf.mxu0
  %v1182 = vadd.f32 %v923, %v1181
  %1183 = vmatmul.bf16.gmra.mxu0 %v519
  %v1184 = vpop.f32.mrf.mxu0
  %v1185 = vadd.f32 %v926, %v1184
  %v1186 = vpop.f32.mrf.mxu0
  %v1187 = vadd.f32 %v928, %v1186
  %1188 = vmatmul.bf16.gmra.mxu0 %v521
  %v1189 = vpop.f32.mrf.mxu0
  %v1190 = vadd.f32 %v931, %v1189
  %v1191 = vpop.f32.mrf.mxu0
  %v1192 = vadd.f32 %v933, %v1191
  %1193 = vmatmul.bf16.gmra.mxu0 %v523
  %v1194 = vpop.f32.mrf.mxu0
  %v1195 = vadd.f32 %v936, %v1194
  %v1196 = vpop.f32.mrf.mxu0
  %v1197 = vadd.f32 %v938, %v1196
  %1198 = vmatmul.bf16.gmra.mxu0 %v525
  %v1199 = vpop.f32.mrf.mxu0
  %v1200 = vadd.f32 %v941, %v1199
  %v1201 = vpop.f32.mrf.mxu0
  %v1202 = vadd.f32 %v943, %v1201
  %1203 = vmatmul.bf16.gmra.mxu0 %v527
  %v1204 = vpop.f32.mrf.mxu0
  %v1205 = vadd.f32 %v946, %v1204
  %v1206 = vpop.f32.mrf.mxu0
  %v1207 = vadd.f32 %v948, %v1206
  %1208 = vmatmul.bf16.gmra.mxu0 %v529
  %v1209 = vpop.f32.mrf.mxu0
  %v1210 = vadd.f32 %v951, %v1209
  %v1211 = vpop.f32.mrf.mxu0
  %v1212 = vadd.f32 %v953, %v1211
  %1213 = vmatmul.bf16.gmra.mxu0 %v531
  %v1214 = vpop.f32.mrf.mxu0
  %v1215 = vadd.f32 %v956, %v1214
  %v1216 = vpop.f32.mrf.mxu0
  %v1217 = vadd.f32 %v958, %v1216
  %1218 = vmatmul.bf16.gmra.mxu0 %v533
  %v1219 = vpop.f32.mrf.mxu0
  %v1220 = vadd.f32 %v961, %v1219
  %v1221 = vpop.f32.mrf.mxu0
  %v1222 = vadd.f32 %v963, %v1221
  %1223 = vmatmul.bf16.gmra.mxu0 %v535
  %v1224 = vpop.f32.mrf.mxu0
  %v1225 = vadd.f32 %v966, %v1224
  %v1226 = vpop.f32.mrf.mxu0
  %v1227 = vadd.f32 %v968, %v1226
  %1228 = vmatmul.bf16.gmra.mxu0 %v537
  %v1229 = vpop.f32.mrf.mxu0
  %v1230 = vadd.f32 %v971, %v1229
  %v1231 = vpop.f32.mrf.mxu0
  %v1232 = vadd.f32 %v973, %v1231
  %1233 = vmatmul.bf16.gmra.mxu0 %v539
  %v1234 = vpop.f32.mrf.mxu0
  %v1235 = vadd.f32 %v976, %v1234
  %v1236 = vpop.f32.mrf.mxu0
  %v1237 = vadd.f32 %v978, %v1236
  %1238 = vmatmul.bf16.gmra.mxu0 %v541
  %v1239 = vpop.f32.mrf.mxu0
  %v1240 = vadd.f32 %v981, %v1239
  %v1241 = vpop.f32.mrf.mxu0
  %v1242 = vadd.f32 %v983, %v1241
  %1243 = vmatmul.bf16.gmra.mxu0 %v543
  %v1244 = vpop.f32.mrf.mxu0
  %v1245 = vadd.f32 %v986, %v1244
  %v1246 = vpop.f32.mrf.mxu0
  %v1247 = vadd.f32 %v988, %v1246
  %1248 = vmatmul.bf16.gmra.mxu0 %v545
  %v1249 = vpop.f32.mrf.mxu0
  %v1250 = vadd.f32 %v991, %v1249
  %v1251 = vpop.f32.mrf.mxu0
  %v1252 = vadd.f32 %v993, %v1251
  %1253 = vmatmul.bf16.gmra.mxu0 %v547
  %v1254 = vpop.f32.mrf.mxu0
  %v1255 = vadd.f32 %v996, %v1254
  %v1256 = vpop.f32.mrf.mxu0
  %v1257 = vadd.f32 %v998, %v1256
  %1258 = vmatmul.bf16.gmra.mxu0 %v549
  %v1259 = vpop.f32.mrf.mxu0
  %v1260 = vadd.f32 %v1001, %v1259
  %v1261 = vpop.f32.mrf.mxu0
  %v1262 = vadd.f32 %v1003, %v1261
  %1263 = vdwg.mxu0
  %v1264 = vmax.f32 %v1015, 0.0
  %v1265 = vmax.f32 %v1017, 0.0
  %v1266 = vmax.f32 %v1020, 0.0
  %v1267 = vmax.f32 %v1022, 0.0
  %v1268 = vmax.f32 %v1025, 0.0
  %v1269 = vmax.f32 %v1027, 0.0
  %v1270 = vmax.f32 %v1030, 0.0
  %v1271 = vmax.f32 %v1032, 0.0
  %v1272 = vmax.f32 %v1035, 0.0
  %v1273 = vmax.f32 %v1037, 0.0
  %v1274 = vmax.f32 %v1040, 0.0
  %v1275 = vmax.f32 %v1042, 0.0
  %v1276 = vmax.f32 %v1045, 0.0
  %v1277 = vmax.f32 %v1047, 0.0
  %v1278 = vmax.f32 %v1050, 0.0
  %v1279 = vmax.f32 %v1052, 0.0
  %v1280 = vmax.f32 %v1055, 0.0
  %v1281 = vmax.f32 %v1057, 0.0
  %v1282 = vmax.f32 %v1060, 0.0
  %v1283 = vmax.f32 %v1062, 0.0
  %v1284 = vmax.f32 %v1065, 0.0
  %v1285 = vmax.f32 %v1067, 0.0
  %v1286 = vmax.f32 %v1070, 0.0
  %v1287 = vmax.f32 %v1072, 0.0
  %v1288 = vmax.f32 %v1075, 0.0
  %v1289 = vmax.f32 %v1077, 0.0
  %v1290 = vmax.f32 %v1080, 0.0
  %v1291 = vmax.f32 %v1082, 0.0
  %v1292 = vmax.f32 %v1085, 0.0
  %v1293 = vmax.f32 %v1087, 0.0
  %v1294 = vmax.f32 %v1090, 0.0
  %v1295 = vmax.f32 %v1092, 0.0
  %v1296 = vmax.f32 %v1095, 0.0
  %v1297 = vmax.f32 %v1097, 0.0
  %v1298 = vmax.f32 %v1100, 0.0
  %v1299 = vmax.f32 %v1102, 0.0
  %v1300 = vmax.f32 %v1105, 0.0
  %v1301 = vmax.f32 %v1107, 0.0
  %v1302 = vmax.f32 %v1110, 0.0
  %v1303 = vmax.f32 %v1112, 0.0
  %v1304 = vmax.f32 %v1115, 0.0
  %v1305 = vmax.f32 %v1117, 0.0
  %v1306 = vmax.f32 %v1120, 0.0
  %v1307 = vmax.f32 %v1122, 0.0
  %v1308 = vmax.f32 %v1125, 0.0
  %v1309 = vmax.f32 %v1127, 0.0
  %v1310 = vmax.f32 %v1130, 0.0
  %v1311 = vmax.f32 %v1132, 0.0
  %v1312 = vmax.f32 %v1135, 0.0
  %v1313 = vmax.f32 %v1137, 0.0
  %v1314 = vmax.f32 %v1140, 0.0
  %v1315 = vmax.f32 %v1142, 0.0
  %v1316 = vmax.f32 %v1145, 0.0
  %v1317 = vmax.f32 %v1147, 0.0
  %v1318 = vmax.f32 %v1150, 0.0
  %v1319 = vmax.f32 %v1152, 0.0
  %v1320 = vmax.f32 %v1155, 0.0
  %v1321 = vmax.f32 %v1157, 0.0
  %v1322 = vmax.f32 %v1160, 0.0
  %v1323 = vmax.f32 %v1162, 0.0
  %v1324 = vmax.f32 %v1165, 0.0
  %v1325 = vmax.f32 %v1167, 0.0
  %v1326 = vmax.f32 %v1170, 0.0
  %v1327 = vmax.f32 %v1172, 0.0
  %v1328 = vmax.f32 %v1175, 0.0
  %v1329 = vmax.f32 %v1177, 0.0
  %v1330 = vmax.f32 %v1180, 0.0
  %v1331 = vmax.f32 %v1182, 0.0
  %v1332 = vmax.f32 %v1185, 0.0
  %v1333 = vmax.f32 %v1187, 0.0
  %v1334 = vmax.f32 %v1190, 0.0
  %v1335 = vmax.f32 %v1192, 0.0
  %v1336 = vmax.f32 %v1195, 0.0
  %v1337 = vmax.f32 %v1197, 0.0
  %v1338 = vmax.f32 %v1200, 0.0
  %v1339 = vmax.f32 %v1202, 0.0
  %v1340 = vmax.f32 %v1205, 0.0
  %v1341 = vmax.f32 %v1207, 0.0
  %v1342 = vmax.f32 %v1210, 0.0
  %v1343 = vmax.f32 %v1212, 0.0
  %v1344 = vmax.f32 %v1215, 0.0
  %v1345 = vmax.f32 %v1217, 0.0
  %v1346 = vmax.f32 %v1220, 0.0
  %v1347 = vmax.f32 %v1222, 0.0
  %v1348 = vmax.f32 %v1225, 0.0
  %v1349 = vmax.f32 %v1227, 0.0
  %v1350 = vmax.f32 %v1230, 0.0
  %v1351 = vmax.f32 %v1232, 0.0
  %v1352 = vmax.f32 %v1235, 0.0
  %v1353 = vmax.f32 %v1237, 0.0
  %v1354 = vmax.f32 %v1240, 0.0
  %v1355 = vmax.f32 %v1242, 0.0
  %v1356 = vmax.f32 %v1245, 0.0
  %v1357 = vmax.f32 %v1247, 0.0
  %v1358 = vmax.f32 %v1250, 0.0
  %v1359 = vmax.f32 %v1252, 0.0
  %v1360 = vmax.f32 %v1255, 0.0
  %v1361 = vmax.f32 %v1257, 0.0
  %v1362 = vmax.f32 %v1260, 0.0
  %v1363 = vmax.f32 %v1262, 0.0
  %v1364 = vpack.c.bf16 %v1264, %v1264
  %v1365 = vpack.c.bf16 %v1265, %v1265
  %v1366 = vpack.c.bf16 %v1266, %v1266
  %v1367 = vpack.c.bf16 %v1267, %v1267
  %v1368 = vpack.c.bf16 %v1268, %v1268
  %v1369 = vpack.c.bf16 %v1269, %v1269
  %v1370 = vpack.c.bf16 %v1270, %v1270
  %v1371 = vpack.c.bf16 %v1271, %v1271
  %v1372 = vpack.c.bf16 %v1272, %v1272
  %v1373 = vpack.c.bf16 %v1273, %v1273
  %v1374 = vpack.c.bf16 %v1274, %v1274
  %v1375 = vpack.c.bf16 %v1275, %v1275
  %v1376 = vpack.c.bf16 %v1276, %v1276
  %v1377 = vpack.c.bf16 %v1277, %v1277
  %v1378 = vpack.c.bf16 %v1278, %v1278
  %v1379 = vpack.c.bf16 %v1279, %v1279
  %v1380 = vpack.c.bf16 %v1280, %v1280
  %v1381 = vpack.c.bf16 %v1281, %v1281
  %v1382 = vpack.c.bf16 %v1282, %v1282
  %v1383 = vpack.c.bf16 %v1283, %v1283
  %v1384 = vpack.c.bf16 %v1284, %v1284
  %v1385 = vpack.c.bf16 %v1285, %v1285
  %v1386 = vpack.c.bf16 %v1286, %v1286
  %v1387 = vpack.c.bf16 %v1287, %v1287
  %v1388 = vpack.c.bf16 %v1288, %v1288
  %v1389 = vpack.c.bf16 %v1289, %v1289
  %v1390 = vpack.c.bf16 %v1290, %v1290
  %v1391 = vpack.c.bf16 %v1291, %v1291
  %v1392 = vpack.c.bf16 %v1292, %v1292
  %v1393 = vpack.c.bf16 %v1293, %v1293
  %v1394 = vpack.c.bf16 %v1294, %v1294
  %v1395 = vpack.c.bf16 %v1295, %v1295
  %v1396 = vpack.c.bf16 %v1296, %v1296
  %v1397 = vpack.c.bf16 %v1297, %v1297
  %v1398 = vpack.c.bf16 %v1298, %v1298
  %v1399 = vpack.c.bf16 %v1299, %v1299
  %v1400 = vpack.c.bf16 %v1300, %v1300
  %v1401 = vpack.c.bf16 %v1301, %v1301
  %v1402 = vpack.c.bf16 %v1302, %v1302
  %v1403 = vpack.c.bf16 %v1303, %v1303
  %v1404 = vpack.c.bf16 %v1304, %v1304
  %v1405 = vpack.c.bf16 %v1305, %v1305
  %v1406 = vpack.c.bf16 %v1306, %v1306
  %v1407 = vpack.c.bf16 %v1307, %v1307
  %v1408 = vpack.c.bf16 %v1308, %v1308
  %v1409 = vpack.c.bf16 %v1309, %v1309
  %v1410 = vpack.c.bf16 %v1310, %v1310
  %v1411 = vpack.c.bf16 %v1311, %v1311
  %v1412 = vpack.c.bf16 %v1312, %v1312
  %v1413 = vpack.c.bf16 %v1313, %v1313
  %v1414 = vpack.c.bf16 %v1314, %v1314
  %v1415 = vpack.c.bf16 %v1315, %v1315
  %v1416 = vpack.c.bf16 %v1316, %v1316
  %v1417 = vpack.c.bf16 %v1317, %v1317
  %v1418 = vpack.c.bf16 %v1318, %v1318
  %v1419 = vpack.c.bf16 %v1319, %v1319
  %v1420 = vpack.c.bf16 %v1320, %v1320
  %v1421 = vpack.c.bf16 %v1321, %v1321
  %v1422 = vpack.c.bf16 %v1322, %v1322
  %v1423 = vpack.c.bf16 %v1323, %v1323
  %v1424 = vpack.c.bf16 %v1324, %v1324
  %v1425 = vpack.c.bf16 %v1325, %v1325
  %v1426 = vpack.c.bf16 %v1326, %v1326
  %v1427 = vpack.c.bf16 %v1327, %v1327
  %v1428 = vpack.c.bf16 %v1328, %v1328
  %v1429 = vpack.c.bf16 %v1329, %v1329
  %v1430 = vpack.c.bf16 %v1330, %v1330
  %v1431 = vpack.c.bf16 %v1331, %v1331
  %v1432 = vpack.c.bf16 %v1332, %v1332
  %v1433 = vpack.c.bf16 %v1333, %v1333
  %v1434 = vpack.c.bf16 %v1334, %v1334
  %v1435 = vpack.c.bf16 %v1335, %v1335
  %v1436 = vpack.c.bf16 %v1336, %v1336
  %v1437 = vpack.c.bf16 %v1337, %v1337
  %v1438 = vpack.c.bf16 %v1338, %v1338
  %v1439 = vpack.c.bf16 %v1339, %v1339
  %v1440 = vpack.c.bf16 %v1340, %v1340
  %v1441 = vpack.c.bf16 %v1341, %v1341
  %v1442 = vpack.c.bf16 %v1342, %v1342
  %v1443 = vpack.c.bf16 %v1343, %v1343
  %v1444 = vpack.c.bf16 %v1344, %v1344
  %v1445 = vpack.c.bf16 %v1345, %v1345
  %v1446 = vpack.c.bf16 %v1346, %v1346
  %v1447 = vpack.c.bf16 %v1347, %v1347
  %v1448 = vpack.c.bf16 %v1348, %v1348
  %v1449 = vpack.c.bf16 %v1349, %v1349
  %v1450 = vpack.c.bf16 %v1350, %v1350
  %v1451 = vpack.c.bf16 %v1351, %v1351
  %v1452 = vpack.c.bf16 %v1352, %v1352
  %v1453 = vpack.c.bf16 %v1353, %v1353
  %v1454 = vpack.c.bf16 %v1354, %v1354
  %v1455 = vpack.c.bf16 %v1355, %v1355
  %v1456 = vpack.c.bf16 %v1356, %v1356
  %v1457 = vpack.c.bf16 %v1357, %v1357
  %v1458 = vpack.c.bf16 %v1358, %v1358
  %v1459 = vpack.c.bf16 %v1359, %v1359
  %v1460 = vpack.c.bf16 %v1360, %v1360
  %v1461 = vpack.c.bf16 %v1361, %v1361
  %v1462 = vpack.c.bf16 %v1362, %v1362
  %v1463 = vpack.c.bf16 %v1363, %v1363
  %vm1464 = vcmask 125952
  %1465 = vst.msk [vmem:[%s3] sm:$0xf] %vm1464, %v1364
  %1466 = vst.msk [vmem:[%s3 + $0x4] sm:$0xf] %vm1464, %v1365
  %1467 = vst.msk [vmem:[%s3 + $0x8] sm:$0xf] %vm1464, %v1366
  %1468 = vst.msk [vmem:[%s3 + $0xc] sm:$0xf] %vm1464, %v1367
  %1469 = vst.msk [vmem:[%s3 + $0x10] sm:$0xf] %vm1464, %v1368
  %1470 = vst.msk [vmem:[%s3 + $0x14] sm:$0xf] %vm1464, %v1369
  %1471 = vst.msk [vmem:[%s3 + $0x18] sm:$0xf] %vm1464, %v1370
  %1472 = vst.msk [vmem:[%s3 + $0x1c] sm:$0xf] %vm1464, %v1371
  %1473 = vst.msk [vmem:[%s3 + $0x20] sm:$0xf] %vm1464, %v1372
  %1474 = vst.msk [vmem:[%s3 + $0x24] sm:$0xf] %vm1464, %v1373
  %1475 = vst.msk [vmem:[%s3 + $0x28] sm:$0xf] %vm1464, %v1374
  %1476 = vst.msk [vmem:[%s3 + $0x2c] sm:$0xf] %vm1464, %v1375
  %1477 = vst.msk [vmem:[%s3 + $0x30] sm:$0xf] %vm1464, %v1376
  %1478 = vst.msk [vmem:[%s3 + $0x34] sm:$0xf] %vm1464, %v1377
  %1479 = vst.msk [vmem:[%s3 + $0x38] sm:$0xf] %vm1464, %v1378
  %1480 = vst.msk [vmem:[%s3 + $0x3c] sm:$0xf] %vm1464, %v1379
  %1481 = vst.msk [vmem:[%s3 + $0x40] sm:$0xf] %vm1464, %v1380
  %1482 = vst.msk [vmem:[%s3 + $0x44] sm:$0xf] %vm1464, %v1381
  %1483 = vst.msk [vmem:[%s3 + $0x48] sm:$0xf] %vm1464, %v1382
  %1484 = vst.msk [vmem:[%s3 + $0x4c] sm:$0xf] %vm1464, %v1383
  %1485 = vst.msk [vmem:[%s3 + $0x50] sm:$0xf] %vm1464, %v1384
  %1486 = vst.msk [vmem:[%s3 + $0x54] sm:$0xf] %vm1464, %v1385
  %1487 = vst.msk [vmem:[%s3 + $0x58] sm:$0xf] %vm1464, %v1386
  %1488 = vst.msk [vmem:[%s3 + $0x5c] sm:$0xf] %vm1464, %v1387
  %1489 = vst.msk [vmem:[%s3 + $0x60] sm:$0xf] %vm1464, %v1388
  %1490 = vst.msk [vmem:[%s3 + $0x64] sm:$0xf] %vm1464, %v1389
  %1491 = vst.msk [vmem:[%s3 + $0x68] sm:$0xf] %vm1464, %v1390
  %1492 = vst.msk [vmem:[%s3 + $0x6c] sm:$0xf] %vm1464, %v1391
  %1493 = vst.msk [vmem:[%s3 + $0x70] sm:$0xf] %vm1464, %v1392
  %1494 = vst.msk [vmem:[%s3 + $0x74] sm:$0xf] %vm1464, %v1393
  %1495 = vst.msk [vmem:[%s3 + $0x78] sm:$0xf] %vm1464, %v1394
  %1496 = vst.msk [vmem:[%s3 + $0x7c] sm:$0xf] %vm1464, %v1395
  %1497 = vst.msk [vmem:[%s3 + $0x80] sm:$0xf] %vm1464, %v1396
  %1498 = vst.msk [vmem:[%s3 + $0x84] sm:$0xf] %vm1464, %v1397
  %1499 = vst.msk [vmem:[%s3 + $0x88] sm:$0xf] %vm1464, %v1398
  %1500 = vst.msk [vmem:[%s3 + $0x8c] sm:$0xf] %vm1464, %v1399
  %1501 = vst.msk [vmem:[%s3 + $0x90] sm:$0xf] %vm1464, %v1400
  %1502 = vst.msk [vmem:[%s3 + $0x94] sm:$0xf] %vm1464, %v1401
  %1503 = vst.msk [vmem:[%s3 + $0x98] sm:$0xf] %vm1464, %v1402
  %1504 = vst.msk [vmem:[%s3 + $0x9c] sm:$0xf] %vm1464, %v1403
  %1505 = vst.msk [vmem:[%s3 + $0xa0] sm:$0xf] %vm1464, %v1404
  %1506 = vst.msk [vmem:[%s3 + $0xa4] sm:$0xf] %vm1464, %v1405
  %1507 = vst.msk [vmem:[%s3 + $0xa8] sm:$0xf] %vm1464, %v1406
  %1508 = vst.msk [vmem:[%s3 + $0xac] sm:$0xf] %vm1464, %v1407
  %1509 = vst.msk [vmem:[%s3 + $0xb0] sm:$0xf] %vm1464, %v1408
  %1510 = vst.msk [vmem:[%s3 + $0xb4] sm:$0xf] %vm1464, %v1409
  %1511 = vst.msk [vmem:[%s3 + $0xb8] sm:$0xf] %vm1464, %v1410
  %1512 = vst.msk [vmem:[%s3 + $0xbc] sm:$0xf] %vm1464, %v1411
  %1513 = vst.msk [vmem:[%s3 + $0xc0] sm:$0xf] %vm1464, %v1412
  %1514 = vst.msk [vmem:[%s3 + $0xc4] sm:$0xf] %vm1464, %v1413
  %1515 = vst.msk [vmem:[%s3 + $0xc8] sm:$0xf] %vm1464, %v1414
  %1516 = vst.msk [vmem:[%s3 + $0xcc] sm:$0xf] %vm1464, %v1415
  %1517 = vst.msk [vmem:[%s3 + $0xd0] sm:$0xf] %vm1464, %v1416
  %1518 = vst.msk [vmem:[%s3 + $0xd4] sm:$0xf] %vm1464, %v1417
  %1519 = vst.msk [vmem:[%s3 + $0xd8] sm:$0xf] %vm1464, %v1418
  %1520 = vst.msk [vmem:[%s3 + $0xdc] sm:$0xf] %vm1464, %v1419
  %1521 = vst.msk [vmem:[%s3 + $0xe0] sm:$0xf] %vm1464, %v1420
  %1522 = vst.msk [vmem:[%s3 + $0xe4] sm:$0xf] %vm1464, %v1421
  %1523 = vst.msk [vmem:[%s3 + $0xe8] sm:$0xf] %vm1464, %v1422
  %1524 = vst.msk [vmem:[%s3 + $0xec] sm:$0xf] %vm1464, %v1423
  %1525 = vst.msk [vmem:[%s3 + $0xf0] sm:$0xf] %vm1464, %v1424
  %1526 = vst.msk [vmem:[%s3 + $0xf4] sm:$0xf] %vm1464, %v1425
  %1527 = vst.msk [vmem:[%s3 + $0xf8] sm:$0xf] %vm1464, %v1426
  %1528 = vst.msk [vmem:[%s3 + $0xfc] sm:$0xf] %vm1464, %v1427
  %1529 = vst.msk [vmem:[%s3 + $0x100] sm:$0xf] %vm1464, %v1428
  %1530 = vst.msk [vmem:[%s3 + $0x104] sm:$0xf] %vm1464, %v1429
  %1531 = vst.msk [vmem:[%s3 + $0x108] sm:$0xf] %vm1464, %v1430
  %1532 = vst.msk [vmem:[%s3 + $0x10c] sm:$0xf] %vm1464, %v1431
  %1533 = vst.msk [vmem:[%s3 + $0x110] sm:$0xf] %vm1464, %v1432
  %1534 = vst.msk [vmem:[%s3 + $0x114] sm:$0xf] %vm1464, %v1433
  %1535 = vst.msk [vmem:[%s3 + $0x118] sm:$0xf] %vm1464, %v1434
  %1536 = vst.msk [vmem:[%s3 + $0x11c] sm:$0xf] %vm1464, %v1435
  %1537 = vst.msk [vmem:[%s3 + $0x120] sm:$0xf] %vm1464, %v1436
  %1538 = vst.msk [vmem:[%s3 + $0x124] sm:$0xf] %vm1464, %v1437
  %1539 = vst.msk [vmem:[%s3 + $0x128] sm:$0xf] %vm1464, %v1438
  %1540 = vst.msk [vmem:[%s3 + $0x12c] sm:$0xf] %vm1464, %v1439
  %1541 = vst.msk [vmem:[%s3 + $0x130] sm:$0xf] %vm1464, %v1440
  %1542 = vst.msk [vmem:[%s3 + $0x134] sm:$0xf] %vm1464, %v1441
  %1543 = vst.msk [vmem:[%s3 + $0x138] sm:$0xf] %vm1464, %v1442
  %1544 = vst.msk [vmem:[%s3 + $0x13c] sm:$0xf] %vm1464, %v1443
  %1545 = vst.msk [vmem:[%s3 + $0x140] sm:$0xf] %vm1464, %v1444
  %1546 = vst.msk [vmem:[%s3 + $0x144] sm:$0xf] %vm1464, %v1445
  %1547 = vst.msk [vmem:[%s3 + $0x148] sm:$0xf] %vm1464, %v1446
  %1548 = vst.msk [vmem:[%s3 + $0x14c] sm:$0xf] %vm1464, %v1447
  %1549 = vst.msk [vmem:[%s3 + $0x150] sm:$0xf] %vm1464, %v1448
  %1550 = vst.msk [vmem:[%s3 + $0x154] sm:$0xf] %vm1464, %v1449
  %1551 = vst.msk [vmem:[%s3 + $0x158] sm:$0xf] %vm1464, %v1450
  %1552 = vst.msk [vmem:[%s3 + $0x15c] sm:$0xf] %vm1464, %v1451
  %1553 = vst.msk [vmem:[%s3 + $0x160] sm:$0xf] %vm1464, %v1452
  %1554 = vst.msk [vmem:[%s3 + $0x164] sm:$0xf] %vm1464, %v1453
  %1555 = vst.msk [vmem:[%s3 + $0x168] sm:$0xf] %vm1464, %v1454
  %1556 = vst.msk [vmem:[%s3 + $0x16c] sm:$0xf] %vm1464, %v1455
  %1557 = vst.msk [vmem:[%s3 + $0x170] sm:$0xf] %vm1464, %v1456
  %1558 = vst.msk [vmem:[%s3 + $0x174] sm:$0xf] %vm1464, %v1457
  %1559 = vst.msk [vmem:[%s3 + $0x178] sm:$0xf] %vm1464, %v1458
  %1560 = vst.msk [vmem:[%s3 + $0x17c] sm:$0xf] %vm1464, %v1459
  %1561 = vst.msk [vmem:[%s3 + $0x180] sm:$0xf] %vm1464, %v1460
  %1562 = vst.msk [vmem:[%s3 + $0x184] sm:$0xf] %vm1464, %v1461
  %1563 = vst.msk [vmem:[%s3 + $0x188] sm:$0xf] %vm1464, %v1462
  %1564 = vst.msk [vmem:[%s3 + $0x18c] sm:$0xf] %vm1464, %v1463
  // Predicated region
  $region14: #{simple_cnn_actor_forward.3} parent=0 // pred_check
    _
  $region15: #{simple_cnn_actor_forward.3} parent=0 // pred_check_branch
    %1566 = sbr.rel (0) target = $region17
  $region16: #{simple_cnn_actor_forward.3} parent=0 // pred_region
    _
  $region17: #{simple_cnn_actor_forward.3} parent=0 // pred_fallthru
    _
  // Predicated region
  $region18: #{simple_cnn_actor_forward.3} parent=0 // pred_check
    _
  $region19: #{simple_cnn_actor_forward.3} parent=0 // pred_check_branch
    %1568 = sbr.rel (0) target = $region21
  $region20: #{simple_cnn_actor_forward.3} parent=0 // pred_region
    _
  $region21: #{simple_cnn_actor_forward.3} parent=0 // pred_fallthru
    _

// kernel: simple_cnn_actor_forward.4
$region0: #{simple_cnn_actor_forward.4}
  #allocation0 [shape = 'u32[]', space=smem, size = 0x4, offset = 0x4, fixed_abs, tag = 'smem constant byte address 0x4 - core index']
  #allocation1 [shape = 'u32[72,128]{1,0:T(1,128)}', space=vmem, size = 0x9000, scoped, tag = 'internal scratch']
  %s0 = inlined_call_operand.vmem [shape: bf16[162,256], index: 0, kind: input, shape index: {}]
  %s1 = inlined_call_operand.vmem [shape: bf16[256,32], index: 1, kind: input, shape index: {}]
  %s2 = inlined_call_operand.vmem [shape: f32[1,32], index: 2, kind: input, shape index: {}]
  %s3 = inlined_call_operand.vmem [shape: bf16[162,32], index: 3, kind: output, shape index: {}]
  %s4 = sld [smem:[#allocation0]]
  $region22: #{simple_cnn_actor_forward.4} parent=0
    _
  %s6 = ssub.s32 1, %s4
  %s7 = scalar_select 0, %s6, %s4
  // Predicated region
  $region2: #{simple_cnn_actor_forward.4} parent=0 // pred_check
    _
  $region3: #{simple_cnn_actor_forward.4} parent=0 // pred_check_branch
    %9 = sbr.rel (0) target = $region5
  $region4: #{simple_cnn_actor_forward.4} parent=0 // pred_region
    _
  $region5: #{simple_cnn_actor_forward.4} parent=0 // pred_fallthru
    _
  // Predicated region
  $region6: #{simple_cnn_actor_forward.4} parent=0 // pred_check
    _
  $region7: #{simple_cnn_actor_forward.4} parent=0 // pred_check_branch
    %11 = sbr.rel (0) target = $region9
  $region8: #{simple_cnn_actor_forward.4} parent=0 // pred_region
    _
  $region9: #{simple_cnn_actor_forward.4} parent=0 // pred_fallthru
    _
  // Predicated region
  $region10: #{simple_cnn_actor_forward.4} parent=0 // pred_check
    _
  $region11: #{simple_cnn_actor_forward.4} parent=0 // pred_check_branch
    %13 = sbr.rel (0) target = $region13
  $region12: #{simple_cnn_actor_forward.4} parent=0 // pred_region
    _
  $region13: #{simple_cnn_actor_forward.4} parent=0 // pred_fallthru
    _
  %v14 = vld [vmem:[%s0] sm:$0xff]
  %v15 = vld [vmem:[%s0 + $0x8] sm:$0xff]
  %v16 = vld [vmem:[%s0 + $0x10] sm:$0xff]
  %v17 = vld [vmem:[%s0 + $0x18] sm:$0xff]
  %v18 = vld [vmem:[%s0 + $0x20] sm:$0xff]
  %v19 = vld [vmem:[%s0 + $0x28] sm:$0xff]
  %v20 = vld [vmem:[%s0 + $0x30] sm:$0xff]
  %v21 = vld [vmem:[%s0 + $0x38] sm:$0xff]
  %v22 = vld [vmem:[%s0 + $0x40] sm:$0xff]
  %v23 = vld [vmem:[%s0 + $0x48] sm:$0xff]
  %v24 = vld [vmem:[%s0 + $0x50] sm:$0xff]
  %v25 = vld [vmem:[%s0 + $0x58] sm:$0xff]
  %v26 = vld [vmem:[%s0 + $0x60] sm:$0xff]
  %v27 = vld [vmem:[%s0 + $0x68] sm:$0xff]
  %v28 = vld [vmem:[%s0 + $0x70] sm:$0xff]
  %v29 = vld [vmem:[%s0 + $0x78] sm:$0xff]
  %v30 = vld [vmem:[%s0 + $0x80] sm:$0xff]
  %v31 = vld [vmem:[%s0 + $0x88] sm:$0xff]
  %v32 = vld [vmem:[%s0 + $0x90] sm:$0xff]
  %v33 = vld [vmem:[%s0 + $0x98] sm:$0xff]
  %v34 = vld [vmem:[%s0 + $0xa0] sm:$0x11]
  %v35 = vld [vmem:[%s1] sm:$0xf]
  %v36 = vld [vmem:[%s1 + $0x4] sm:$0xf]
  %v37 = vld [vmem:[%s1 + $0x8] sm:$0xf]
  %v38 = vld [vmem:[%s1 + $0xc] sm:$0xf]
  %v39 = vld [vmem:[%s1 + $0x10] sm:$0xf]
  %v40 = vld [vmem:[%s1 + $0x14] sm:$0xf]
  %v41 = vld [vmem:[%s1 + $0x18] sm:$0xf]
  %v42 = vld [vmem:[%s1 + $0x1c] sm:$0xf]
  %v43 = vld [vmem:[%s1 + $0x20] sm:$0xf]
  %v44 = vld [vmem:[%s1 + $0x24] sm:$0xf]
  %v45 = vld [vmem:[%s1 + $0x28] sm:$0xf]
  %v46 = vld [vmem:[%s1 + $0x2c] sm:$0xf]
  %v47 = vld [vmem:[%s1 + $0x30] sm:$0xf]
  %v48 = vld [vmem:[%s1 + $0x34] sm:$0xf]
  %v49 = vld [vmem:[%s1 + $0x38] sm:$0xf]
  %v50 = vld [vmem:[%s1 + $0x3c] sm:$0xf]
  %v51 = vld [vmem:[%s1 + $0x40] sm:$0xf]
  %v52 = vld [vmem:[%s1 + $0x44] sm:$0xf]
  %v53 = vld [vmem:[%s1 + $0x48] sm:$0xf]
  %v54 = vld [vmem:[%s1 + $0x4c] sm:$0xf]
  %v55 = vld [vmem:[%s1 + $0x50] sm:$0xf]
  %v56 = vld [vmem:[%s1 + $0x54] sm:$0xf]
  %v57 = vld [vmem:[%s1 + $0x58] sm:$0xf]
  %v58 = vld [vmem:[%s1 + $0x5c] sm:$0xf]
  %v59 = vld [vmem:[%s1 + $0x60] sm:$0xf]
  %v60 = vld [vmem:[%s1 + $0x64] sm:$0xf]
  %v61 = vld [vmem:[%s1 + $0x68] sm:$0xf]
  %v62 = vld [vmem:[%s1 + $0x6c] sm:$0xf]
  %v63 = vld [vmem:[%s1 + $0x70] sm:$0xf]
  %v64 = vld [vmem:[%s1 + $0x74] sm:$0xf]
  %v65 = vld [vmem:[%s1 + $0x78] sm:$0xf]
  %v66 = vld [vmem:[%s1 + $0x7c] sm:$0xf]
  %v67 = vld [vmem:[%s2] sm:$0x1]
  %v69 = vperm.slane %v67, 0
  %v92 = vunpack.c.l.b16 %v14
  %v93 = vunpack.c.h.b16 %v14
  %v94 = vunpack.c.l.b16 %v15
  %v95 = vunpack.c.h.b16 %v15
  %v96 = vunpack.c.l.b16 %v16
  %v97 = vunpack.c.h.b16 %v16
  %v98 = vunpack.c.l.b16 %v17
  %v99 = vunpack.c.h.b16 %v17
  %v100 = vunpack.c.l.b16 %v18
  %v101 = vunpack.c.h.b16 %v18
  %v102 = vunpack.c.l.b16 %v19
  %v103 = vunpack.c.h.b16 %v19
  %v104 = vunpack.c.l.b16 %v20
  %v105 = vunpack.c.h.b16 %v20
  %v106 = vunpack.c.l.b16 %v21
  %v107 = vunpack.c.h.b16 %v21
  %v108 = vunpack.c.l.b16 %v22
  %v109 = vunpack.c.h.b16 %v22
  %v110 = vunpack.c.l.b16 %v23
  %v111 = vunpack.c.h.b16 %v23
  %v112 = vunpack.c.l.b16 %v24
  %v113 = vunpack.c.h.b16 %v24
  %v114 = vunpack.c.l.b16 %v25
  %v115 = vunpack.c.h.b16 %v25
  %v116 = vunpack.c.l.b16 %v26
  %v117 = vunpack.c.h.b16 %v26
  %v118 = vunpack.c.l.b16 %v27
  %v119 = vunpack.c.h.b16 %v27
  %v120 = vunpack.c.l.b16 %v28
  %v121 = vunpack.c.h.b16 %v28
  %v122 = vunpack.c.l.b16 %v29
  %v123 = vunpack.c.h.b16 %v29
  %v124 = vunpack.c.l.b16 %v30
  %v125 = vunpack.c.h.b16 %v30
  %v126 = vunpack.c.l.b16 %v31
  %v127 = vunpack.c.h.b16 %v31
  %v128 = vunpack.c.l.b16 %v32
  %v129 = vunpack.c.h.b16 %v32
  %v130 = vunpack.c.l.b16 %v33
  %v131 = vunpack.c.h.b16 %v33
  %v132 = vunpack.c.l.b16 %v34
  %v133 = vunpack.c.h.b16 %v34
  %v134 = vpack.c.b16 %v94, %v92
  %v135 = vpack.c.b16 %v95, %v93
  %v136 = vpack.c.b16 %v98, %v96
  %v137 = vpack.c.b16 %v99, %v97
  %v138 = vpack.c.b16 %v102, %v100
  %v139 = vpack.c.b16 %v103, %v101
  %v140 = vpack.c.b16 %v106, %v104
  %v141 = vpack.c.b16 %v107, %v105
  %v142 = vpack.c.b16 %v110, %v108
  %v143 = vpack.c.b16 %v111, %v109
  %v144 = vpack.c.b16 %v114, %v112
  %v145 = vpack.c.b16 %v115, %v113
  %v146 = vpack.c.b16 %v118, %v116
  %v147 = vpack.c.b16 %v119, %v117
  %v148 = vpack.c.b16 %v122, %v120
  %v149 = vpack.c.b16 %v123, %v121
  %v150 = vpack.c.b16 %v126, %v124
  %v151 = vpack.c.b16 %v127, %v125
  %v152 = vpack.c.b16 %v130, %v128
  %v153 = vpack.c.b16 %v131, %v129
  %v154 = vpack.c.b16 %v132, %v132
  %v155 = vpack.c.b16 %v133, %v133
  %v210 = vunpack.c.l.b16 %v35
  %v211 = vunpack.c.l.b16 %v36
  %v212 = vunpack.c.l.b16 %v37
  %v213 = vunpack.c.l.b16 %v38
  %v214 = vunpack.c.l.b16 %v39
  %v215 = vunpack.c.l.b16 %v40
  %v216 = vunpack.c.l.b16 %v41
  %v217 = vunpack.c.l.b16 %v42
  %v218 = vunpack.c.l.b16 %v43
  %v219 = vunpack.c.l.b16 %v44
  %v220 = vunpack.c.l.b16 %v45
  %v221 = vunpack.c.l.b16 %v46
  %v222 = vunpack.c.l.b16 %v47
  %v223 = vunpack.c.l.b16 %v48
  %v224 = vunpack.c.l.b16 %v49
  %v225 = vunpack.c.l.b16 %v50
  %v226 = vunpack.c.l.b16 %v51
  %v227 = vunpack.c.l.b16 %v52
  %v228 = vunpack.c.l.b16 %v53
  %v229 = vunpack.c.l.b16 %v54
  %v230 = vunpack.c.l.b16 %v55
  %v231 = vunpack.c.l.b16 %v56
  %v232 = vunpack.c.l.b16 %v57
  %v233 = vunpack.c.l.b16 %v58
  %v234 = vunpack.c.l.b16 %v59
  %v235 = vunpack.c.l.b16 %v60
  %v236 = vunpack.c.l.b16 %v61
  %v237 = vunpack.c.l.b16 %v62
  %v238 = vunpack.c.l.b16 %v63
  %v239 = vunpack.c.l.b16 %v64
  %v240 = vunpack.c.l.b16 %v65
  %v241 = vunpack.c.l.b16 %v66
  %v242 = vpack.c.b16 %v211, %v210
  %v243 = vpack.c.b16 %v213, %v212
  %v244 = vpack.c.b16 %v215, %v214
  %v245 = vpack.c.b16 %v217, %v216
  %v246 = vpack.c.b16 %v219, %v218
  %v247 = vpack.c.b16 %v221, %v220
  %v248 = vpack.c.b16 %v223, %v222
  %v249 = vpack.c.b16 %v225, %v224
  %v250 = vpack.c.b16 %v227, %v226
  %v251 = vpack.c.b16 %v229, %v228
  %v252 = vpack.c.b16 %v231, %v230
  %v253 = vpack.c.b16 %v233, %v232
  %v254 = vpack.c.b16 %v235, %v234
  %v255 = vpack.c.b16 %v237, %v236
  %v256 = vpack.c.b16 %v239, %v238
  %v257 = vpack.c.b16 %v241, %v240
  %274 = vmatpush.bf16.msra.mxu0 %v249
  %275 = vmatpush.bf16.msra.mxu0 %v248
  %276 = vmatpush.bf16.msra.mxu0 %v247
  %277 = vmatpush.bf16.msra.mxu0 %v246
  %278 = vmatpush.bf16.msra.mxu0 %v245
  %279 = vmatpush.bf16.msra.mxu0 %v244
  %280 = vmatpush.bf16.msra.mxu0 %v243
  %281 = vmatpush.bf16.msra.mxu0 %v242
  %282 = vmatmul.bf16.gmra.mxu0 %v134
  %v283 = vpop.f32.mrf.mxu0
  %v284 = vadd.f32 %v69, %v283
  %v285 = vpop.f32.mrf.mxu0
  %v286 = vadd.f32 %v69, %v285
  %287 = vmatmul.bf16.gmra.mxu0 %v136
  %v288 = vpop.f32.mrf.mxu0
  %v289 = vadd.f32 %v69, %v288
  %v290 = vpop.f32.mrf.mxu0
  %v291 = vadd.f32 %v69, %v290
  %292 = vmatmul.bf16.gmra.mxu0 %v138
  %v293 = vpop.f32.mrf.mxu0
  %v294 = vadd.f32 %v69, %v293
  %v295 = vpop.f32.mrf.mxu0
  %v296 = vadd.f32 %v69, %v295
  %297 = vmatmul.bf16.gmra.mxu0 %v140
  %v298 = vpop.f32.mrf.mxu0
  %v299 = vadd.f32 %v69, %v298
  %v300 = vpop.f32.mrf.mxu0
  %v301 = vadd.f32 %v69, %v300
  %302 = vmatmul.bf16.gmra.mxu0 %v142
  %v303 = vpop.f32.mrf.mxu0
  %v304 = vadd.f32 %v69, %v303
  %v305 = vpop.f32.mrf.mxu0
  %v306 = vadd.f32 %v69, %v305
  %307 = vmatmul.bf16.gmra.mxu0 %v144
  %v308 = vpop.f32.mrf.mxu0
  %v309 = vadd.f32 %v69, %v308
  %v310 = vpop.f32.mrf.mxu0
  %v311 = vadd.f32 %v69, %v310
  %312 = vmatmul.bf16.gmra.mxu0 %v146
  %v313 = vpop.f32.mrf.mxu0
  %v314 = vadd.f32 %v69, %v313
  %v315 = vpop.f32.mrf.mxu0
  %v316 = vadd.f32 %v69, %v315
  %317 = vmatmul.bf16.gmra.mxu0 %v148
  %v318 = vpop.f32.mrf.mxu0
  %v319 = vadd.f32 %v69, %v318
  %v320 = vpop.f32.mrf.mxu0
  %v321 = vadd.f32 %v69, %v320
  %322 = vmatmul.bf16.gmra.mxu0 %v150
  %v323 = vpop.f32.mrf.mxu0
  %v324 = vadd.f32 %v69, %v323
  %v325 = vpop.f32.mrf.mxu0
  %v326 = vadd.f32 %v69, %v325
  %327 = vmatmul.bf16.gmra.mxu0 %v152
  %v328 = vpop.f32.mrf.mxu0
  %v329 = vadd.f32 %v69, %v328
  %v330 = vpop.f32.mrf.mxu0
  %v331 = vadd.f32 %v69, %v330
  %332 = vmatmul.bf16.gmra.mxu0 %v154
  %v333 = vpop.f32.mrf.mxu0
  %v334 = vadd.f32 %v69, %v333
  %v335 = vpop.f32.mrf.mxu0
  %336 = vdwg.mxu0
  %337 = vmatpush.bf16.msra.mxu0 %v257
  %338 = vmatpush.bf16.msra.mxu0 %v256
  %339 = vmatpush.bf16.msra.mxu0 %v255
  %340 = vmatpush.bf16.msra.mxu0 %v254
  %341 = vmatpush.bf16.msra.mxu0 %v253
  %342 = vmatpush.bf16.msra.mxu0 %v252
  %343 = vmatpush.bf16.msra.mxu0 %v251
  %344 = vmatpush.bf16.msra.mxu0 %v250
  %345 = vmatmul.bf16.gmra.mxu0 %v135
  %v346 = vpop.f32.mrf.mxu0
  %v347 = vadd.f32 %v284, %v346
  %v348 = vpop.f32.mrf.mxu0
  %v349 = vadd.f32 %v286, %v348
  %350 = vmatmul.bf16.gmra.mxu0 %v137
  %v351 = vpop.f32.mrf.mxu0
  %v352 = vadd.f32 %v289, %v351
  %v353 = vpop.f32.mrf.mxu0
  %v354 = vadd.f32 %v291, %v353
  %355 = vmatmul.bf16.gmra.mxu0 %v139
  %v356 = vpop.f32.mrf.mxu0
  %v357 = vadd.f32 %v294, %v356
  %v358 = vpop.f32.mrf.mxu0
  %v359 = vadd.f32 %v296, %v358
  %360 = vmatmul.bf16.gmra.mxu0 %v141
  %v361 = vpop.f32.mrf.mxu0
  %v362 = vadd.f32 %v299, %v361
  %v363 = vpop.f32.mrf.mxu0
  %v364 = vadd.f32 %v301, %v363
  %365 = vmatmul.bf16.gmra.mxu0 %v143
  %v366 = vpop.f32.mrf.mxu0
  %v367 = vadd.f32 %v304, %v366
  %v368 = vpop.f32.mrf.mxu0
  %v369 = vadd.f32 %v306, %v368
  %370 = vmatmul.bf16.gmra.mxu0 %v145
  %v371 = vpop.f32.mrf.mxu0
  %v372 = vadd.f32 %v309, %v371
  %v373 = vpop.f32.mrf.mxu0
  %v374 = vadd.f32 %v311, %v373
  %375 = vmatmul.bf16.gmra.mxu0 %v147
  %v376 = vpop.f32.mrf.mxu0
  %v377 = vadd.f32 %v314, %v376
  %v378 = vpop.f32.mrf.mxu0
  %v379 = vadd.f32 %v316, %v378
  %380 = vmatmul.bf16.gmra.mxu0 %v149
  %v381 = vpop.f32.mrf.mxu0
  %v382 = vadd.f32 %v319, %v381
  %v383 = vpop.f32.mrf.mxu0
  %v384 = vadd.f32 %v321, %v383
  %385 = vmatmul.bf16.gmra.mxu0 %v151
  %v386 = vpop.f32.mrf.mxu0
  %v387 = vadd.f32 %v324, %v386
  %v388 = vpop.f32.mrf.mxu0
  %v389 = vadd.f32 %v326, %v388
  %390 = vmatmul.bf16.gmra.mxu0 %v153
  %v391 = vpop.f32.mrf.mxu0
  %v392 = vadd.f32 %v329, %v391
  %v393 = vpop.f32.mrf.mxu0
  %v394 = vadd.f32 %v331, %v393
  %395 = vmatmul.bf16.gmra.mxu0 %v155
  %v396 = vpop.f32.mrf.mxu0
  %v397 = vadd.f32 %v334, %v396
  %v398 = vpop.f32.mrf.mxu0
  %399 = vdwg.mxu0
  %v400 = vmax.f32 %v347, 0.0
  %v401 = vmax.f32 %v349, 0.0
  %v402 = vmax.f32 %v352, 0.0
  %v403 = vmax.f32 %v354, 0.0
  %v404 = vmax.f32 %v357, 0.0
  %v405 = vmax.f32 %v359, 0.0
  %v406 = vmax.f32 %v362, 0.0
  %v407 = vmax.f32 %v364, 0.0
  %v408 = vmax.f32 %v367, 0.0
  %v409 = vmax.f32 %v369, 0.0
  %v410 = vmax.f32 %v372, 0.0
  %v411 = vmax.f32 %v374, 0.0
  %v412 = vmax.f32 %v377, 0.0
  %v413 = vmax.f32 %v379, 0.0
  %v414 = vmax.f32 %v382, 0.0
  %v415 = vmax.f32 %v384, 0.0
  %v416 = vmax.f32 %v387, 0.0
  %v417 = vmax.f32 %v389, 0.0
  %v418 = vmax.f32 %v392, 0.0
  %v419 = vmax.f32 %v394, 0.0
  %v420 = vmax.f32 %v397, 0.0
  %v421 = vpack.c.bf16 %v400, %v400
  %v422 = vpack.c.bf16 %v401, %v401
  %v423 = vpack.c.bf16 %v402, %v402
  %v424 = vpack.c.bf16 %v403, %v403
  %v425 = vpack.c.bf16 %v404, %v404
  %v426 = vpack.c.bf16 %v405, %v405
  %v427 = vpack.c.bf16 %v406, %v406
  %v428 = vpack.c.bf16 %v407, %v407
  %v429 = vpack.c.bf16 %v408, %v408
  %v430 = vpack.c.bf16 %v409, %v409
  %v431 = vpack.c.bf16 %v410, %v410
  %v432 = vpack.c.bf16 %v411, %v411
  %v433 = vpack.c.bf16 %v412, %v412
  %v434 = vpack.c.bf16 %v413, %v413
  %v435 = vpack.c.bf16 %v414, %v414
  %v436 = vpack.c.bf16 %v415, %v415
  %v437 = vpack.c.bf16 %v416, %v416
  %v438 = vpack.c.bf16 %v417, %v417
  %v439 = vpack.c.bf16 %v418, %v418
  %v440 = vpack.c.bf16 %v419, %v419
  %v441 = vpack.c.bf16 %v420, %v420
  %vm442 = vcmask 257024
  %443 = vst.msk [vmem:[%s3] sm:$0xf] %vm442, %v421
  %444 = vst.msk [vmem:[%s3 + $0x4] sm:$0xf] %vm442, %v422
  %445 = vst.msk [vmem:[%s3 + $0x8] sm:$0xf] %vm442, %v423
  %446 = vst.msk [vmem:[%s3 + $0xc] sm:$0xf] %vm442, %v424
  %447 = vst.msk [vmem:[%s3 + $0x10] sm:$0xf] %vm442, %v425
  %448 = vst.msk [vmem:[%s3 + $0x14] sm:$0xf] %vm442, %v426
  %449 = vst.msk [vmem:[%s3 + $0x18] sm:$0xf] %vm442, %v427
  %450 = vst.msk [vmem:[%s3 + $0x1c] sm:$0xf] %vm442, %v428
  %451 = vst.msk [vmem:[%s3 + $0x20] sm:$0xf] %vm442, %v429
  %452 = vst.msk [vmem:[%s3 + $0x24] sm:$0xf] %vm442, %v430
  %453 = vst.msk [vmem:[%s3 + $0x28] sm:$0xf] %vm442, %v431
  %454 = vst.msk [vmem:[%s3 + $0x2c] sm:$0xf] %vm442, %v432
  %455 = vst.msk [vmem:[%s3 + $0x30] sm:$0xf] %vm442, %v433
  %456 = vst.msk [vmem:[%s3 + $0x34] sm:$0xf] %vm442, %v434
  %457 = vst.msk [vmem:[%s3 + $0x38] sm:$0xf] %vm442, %v435
  %458 = vst.msk [vmem:[%s3 + $0x3c] sm:$0xf] %vm442, %v436
  %459 = vst.msk [vmem:[%s3 + $0x40] sm:$0xf] %vm442, %v437
  %460 = vst.msk [vmem:[%s3 + $0x44] sm:$0xf] %vm442, %v438
  %461 = vst.msk [vmem:[%s3 + $0x48] sm:$0xf] %vm442, %v439
  %462 = vst.msk [vmem:[%s3 + $0x4c] sm:$0xf] %vm442, %v440
  %vm463 = vcmask 253952
  %464 = vst.msk [vmem:[%s3 + $0x50] sm:$0x1] %vm463, %v441
  // Predicated region
  $region14: #{simple_cnn_actor_forward.4} parent=0 // pred_check
    _
  $region15: #{simple_cnn_actor_forward.4} parent=0 // pred_check_branch
    %466 = sbr.rel (0) target = $region17
  $region16: #{simple_cnn_actor_forward.4} parent=0 // pred_region
    _
  $region17: #{simple_cnn_actor_forward.4} parent=0 // pred_fallthru
    _
  // Predicated region
  $region18: #{simple_cnn_actor_forward.4} parent=0 // pred_check
    _
  $region19: #{simple_cnn_actor_forward.4} parent=0 // pred_check_branch
    %468 = sbr.rel (0) target = $region21
  $region20: #{simple_cnn_actor_forward.4} parent=0 // pred_region
    _
  $region21: #{simple_cnn_actor_forward.4} parent=0 // pred_fallthru
    _

// kernel: simple_cnn_actor_forward.5
$region0: #{simple_cnn_actor_forward.5}
  #allocation0 [shape = 'u32[]', space=smem, size = 0x4, offset = 0x4, fixed_abs, tag = 'smem constant byte address 0x4 - core index']
  #allocation1 [shape = 'u32[72,128]{1,0:T(1,128)}', space=vmem, size = 0x9000, scoped, tag = 'internal scratch']
  %s0 = inlined_call_operand.vmem [shape: bf16[2,2592], index: 0, kind: input, shape index: {}]
  %s1 = inlined_call_operand.vmem [shape: bf16[2592,256], index: 1, kind: input, shape index: {}]
  %s2 = inlined_call_operand.vmem [shape: f32[1,256], index: 2, kind: input, shape index: {}]
  %s3 = inlined_call_operand.vmem [shape: bf16[256,128], index: 3, kind: input, shape index: {}]
  %s4 = inlined_call_operand.vmem [shape: f32[1,128], index: 4, kind: input, shape index: {}]
  %s5 = inlined_call_operand.hbm [shape: f32[2,6], index: 5, kind: output, shape index: {}]
  %s6 = sld [smem:[#allocation0]]
  $region30: #{simple_cnn_actor_forward.5} parent=0
    _
  %s8 = ssub.s32 1, %s6
  %s9 = scalar_select 0, %s8, %s6
  $region1: #{simple_cnn_actor_forward.5} parent=0
    #allocation2 [shape = 'u8[1024]{0}', space=vmem, size = 0x400, scoped, tag = 'output window, operand 0, single buffered']
    #allocation3 [shape = 's32[1]{0}', space=sflag, size = 0x4, scoped, tag = 'scoped memory for simple_cnn_actor_forward.5']
    %10 = vsyncpa [#allocation3], 0
    // Predicated region
    $region2: #{simple_cnn_actor_forward.5} parent=1 // pred_check
      _
    $region3: #{simple_cnn_actor_forward.5} parent=1 // pred_check_branch
      %12 = sbr.rel (0) target = $region5
    $region4: #{simple_cnn_actor_forward.5} parent=1 // pred_region
      _
    $region5: #{simple_cnn_actor_forward.5} parent=1 // pred_fallthru
      _
    // Predicated region
    $region6: #{simple_cnn_actor_forward.5} parent=1 // pred_check
      _
    $region7: #{simple_cnn_actor_forward.5} parent=1 // pred_check_branch
      %14 = sbr.rel (0) target = $region9
    $region8: #{simple_cnn_actor_forward.5} parent=1 // pred_region
      _
    $region9: #{simple_cnn_actor_forward.5} parent=1 // pred_fallthru
      _
    // Predicated region
    $region10: #{simple_cnn_actor_forward.5} parent=1 // pred_check
      _
    $region11: #{simple_cnn_actor_forward.5} parent=1 // pred_check_branch
      %16 = sbr.rel (0) target = $region13
    $region12: #{simple_cnn_actor_forward.5} parent=1 // pred_region
      _
    $region13: #{simple_cnn_actor_forward.5} parent=1 // pred_fallthru
      _
    // Predicated region
    $region14: #{simple_cnn_actor_forward.5} parent=1 // pred_check
      _
    $region15: #{simple_cnn_actor_forward.5} parent=1 // pred_check_branch
      %18 = sbr.rel (0) target = $region17
    $region16: #{simple_cnn_actor_forward.5} parent=1 // pred_region
      _
    $region17: #{simple_cnn_actor_forward.5} parent=1 // pred_fallthru
      _
    // Predicated region
    $region18: #{simple_cnn_actor_forward.5} parent=1 // pred_check
      _
    $region19: #{simple_cnn_actor_forward.5} parent=1 // pred_check_branch
      %20 = sbr.rel (0) target = $region21
    $region20: #{simple_cnn_actor_forward.5} parent=1 // pred_region
      _
    $region21: #{simple_cnn_actor_forward.5} parent=1 // pred_fallthru
      _
    %v22 = vld [vmem:[%s0] sm:$0xff]
    %v23 = vld [vmem:[%s0 + $0x8] sm:$0xff]
    %v24 = vld [vmem:[%s0 + $0x10] sm:$0x1f]
    %v25 = vld [vmem:[%s1] sm:$0xff]
    %v26 = vld [vmem:[%s1 + $0x8] sm:$0xff]
    %v27 = vld [vmem:[%s1 + $0x10] sm:$0xff]
    %v28 = vld [vmem:[%s1 + $0x18] sm:$0xff]
    %v29 = vld [vmem:[%s1 + $0x20] sm:$0xff]
    %v30 = vld [vmem:[%s1 + $0x28] sm:$0xff]
    %v31 = vld [vmem:[%s1 + $0x30] sm:$0xff]
    %v32 = vld [vmem:[%s1 + $0x38] sm:$0xff]
    %v33 = vld [vmem:[%s1 + $0x40] sm:$0xff]
    %v34 = vld [vmem:[%s1 + $0x48] sm:$0xff]
    %v35 = vld [vmem:[%s1 + $0x50] sm:$0xff]
    %v36 = vld [vmem:[%s1 + $0x58] sm:$0xff]
    %v37 = vld [vmem:[%s1 + $0x60] sm:$0xff]
    %v38 = vld [vmem:[%s1 + $0x68] sm:$0xff]
    %v39 = vld [vmem:[%s1 + $0x70] sm:$0xff]
    %v40 = vld [vmem:[%s1 + $0x78] sm:$0xff]
    %v41 = vld [vmem:[%s1 + $0x80] sm:$0xff]
    %v42 = vld [vmem:[%s1 + $0x88] sm:$0xff]
    %v43 = vld [vmem:[%s1 + $0x90] sm:$0xff]
    %v44 = vld [vmem:[%s1 + $0x98] sm:$0xff]
    %v45 = vld [vmem:[%s1 + $0xa0] sm:$0xff]
    %v46 = vld [vmem:[%s1 + $0xa8] sm:$0xff]
    %v47 = vld [vmem:[%s1 + $0xb0] sm:$0xff]
    %v48 = vld [vmem:[%s1 + $0xb8] sm:$0xff]
    %v49 = vld [vmem:[%s1 + $0xc0] sm:$0xff]
    %v50 = vld [vmem:[%s1 + $0xc8] sm:$0xff]
    %v51 = vld [vmem:[%s1 + $0xd0] sm:$0xff]
    %v52 = vld [vmem:[%s1 + $0xd8] sm:$0xff]
    %v53 = vld [vmem:[%s1 + $0xe0] sm:$0xff]
    %v54 = vld [vmem:[%s1 + $0xe8] sm:$0xff]
    %v55 = vld [vmem:[%s1 + $0xf0] sm:$0xff]
    %v56 = vld [vmem:[%s1 + $0xf8] sm:$0xff]
    %v57 = vld [vmem:[%s1 + $0x100] sm:$0xff]
    %v58 = vld [vmem:[%s1 + $0x108] sm:$0xff]
    %v59 = vld [vmem:[%s1 + $0x110] sm:$0xff]
    %v60 = vld [vmem:[%s1 + $0x118] sm:$0xff]
    %v61 = vld [vmem:[%s1 + $0x120] sm:$0xff]
    %v62 = vld [vmem:[%s1 + $0x128] sm:$0xff]
    %v63 = vld [vmem:[%s1 + $0x130] sm:$0xff]
    %v64 = vld [vmem:[%s1 + $0x138] sm:$0xff]
    %v65 = vld [vmem:[%s1 + $0x140] sm:$0xff]
    %v66 = vld [vmem:[%s1 + $0x148] sm:$0xff]
    %v67 = vld [vmem:[%s1 + $0x150] sm:$0xff]
    %v68 = vld [vmem:[%s1 + $0x158] sm:$0xff]
    %v69 = vld [vmem:[%s1 + $0x160] sm:$0xff]
    %v70 = vld [vmem:[%s1 + $0x168] sm:$0xff]
    %v71 = vld [vmem:[%s1 + $0x170] sm:$0xff]
    %v72 = vld [vmem:[%s1 + $0x178] sm:$0xff]
    %v73 = vld [vmem:[%s1 + $0x180] sm:$0xff]
    %v74 = vld [vmem:[%s1 + $0x188] sm:$0xff]
    %v75 = vld [vmem:[%s1 + $0x190] sm:$0xff]
    %v76 = vld [vmem:[%s1 + $0x198] sm:$0xff]
    %v77 = vld [vmem:[%s1 + $0x1a0] sm:$0xff]
    %v78 = vld [vmem:[%s1 + $0x1a8] sm:$0xff]
    %v79 = vld [vmem:[%s1 + $0x1b0] sm:$0xff]
    %v80 = vld [vmem:[%s1 + $0x1b8] sm:$0xff]
    %v81 = vld [vmem:[%s1 + $0x1c0] sm:$0xff]
    %v82 = vld [vmem:[%s1 + $0x1c8] sm:$0xff]
    %v83 = vld [vmem:[%s1 + $0x1d0] sm:$0xff]
    %v84 = vld [vmem:[%s1 + $0x1d8] sm:$0xff]
    %v85 = vld [vmem:[%s1 + $0x1e0] sm:$0xff]
    %v86 = vld [vmem:[%s1 + $0x1e8] sm:$0xff]
    %v87 = vld [vmem:[%s1 + $0x1f0] sm:$0xff]
    %v88 = vld [vmem:[%s1 + $0x1f8] sm:$0xff]
    %v89 = vld [vmem:[%s1 + $0x200] sm:$0xff]
    %v90 = vld [vmem:[%s1 + $0x208] sm:$0xff]
    %v91 = vld [vmem:[%s1 + $0x210] sm:$0xff]
    %v92 = vld [vmem:[%s1 + $0x218] sm:$0xff]
    %v93 = vld [vmem:[%s1 + $0x220] sm:$0xff]
    %v94 = vld [vmem:[%s1 + $0x228] sm:$0xff]
    %v95 = vld [vmem:[%s1 + $0x230] sm:$0xff]
    %v96 = vld [vmem:[%s1 + $0x238] sm:$0xff]
    %v97 = vld [vmem:[%s1 + $0x240] sm:$0xff]
    %v98 = vld [vmem:[%s1 + $0x248] sm:$0xff]
    %v99 = vld [vmem:[%s1 + $0x250] sm:$0xff]
    %v100 = vld [vmem:[%s1 + $0x258] sm:$0xff]
    %v101 = vld [vmem:[%s1 + $0x260] sm:$0xff]
    %v102 = vld [vmem:[%s1 + $0x268] sm:$0xff]
    %v103 = vld [vmem:[%s1 + $0x270] sm:$0xff]
    %v104 = vld [vmem:[%s1 + $0x278] sm:$0xff]
    %v105 = vld [vmem:[%s1 + $0x280] sm:$0xff]
    %v106 = vld [vmem:[%s1 + $0x288] sm:$0xff]
    %v107 = vld [vmem:[%s1 + $0x290] sm:$0xff]
    %v108 = vld [vmem:[%s1 + $0x298] sm:$0xff]
    %v109 = vld [vmem:[%s1 + $0x2a0] sm:$0xff]
    %v110 = vld [vmem:[%s1 + $0x2a8] sm:$0xff]
    %v111 = vld [vmem:[%s1 + $0x2b0] sm:$0xff]
    %v112 = vld [vmem:[%s1 + $0x2b8] sm:$0xff]
    %v113 = vld [vmem:[%s1 + $0x2c0] sm:$0xff]
    %v114 = vld [vmem:[%s1 + $0x2c8] sm:$0xff]
    %v115 = vld [vmem:[%s1 + $0x2d0] sm:$0xff]
    %v116 = vld [vmem:[%s1 + $0x2d8] sm:$0xff]
    %v117 = vld [vmem:[%s1 + $0x2e0] sm:$0xff]
    %v118 = vld [vmem:[%s1 + $0x2e8] sm:$0xff]
    %v119 = vld [vmem:[%s1 + $0x2f0] sm:$0xff]
    %v120 = vld [vmem:[%s1 + $0x2f8] sm:$0xff]
    %v121 = vld [vmem:[%s1 + $0x300] sm:$0xff]
    %v122 = vld [vmem:[%s1 + $0x308] sm:$0xff]
    %v123 = vld [vmem:[%s1 + $0x310] sm:$0xff]
    %v124 = vld [vmem:[%s1 + $0x318] sm:$0xff]
    %v125 = vld [vmem:[%s1 + $0x320] sm:$0xff]
    %v126 = vld [vmem:[%s1 + $0x328] sm:$0xff]
    %v127 = vld [vmem:[%s1 + $0x330] sm:$0xff]
    %v128 = vld [vmem:[%s1 + $0x338] sm:$0xff]
    %v129 = vld [vmem:[%s1 + $0x340] sm:$0xff]
    %v130 = vld [vmem:[%s1 + $0x348] sm:$0xff]
    %v131 = vld [vmem:[%s1 + $0x350] sm:$0xff]
    %v132 = vld [vmem:[%s1 + $0x358] sm:$0xff]
    %v133 = vld [vmem:[%s1 + $0x360] sm:$0xff]
    %v134 = vld [vmem:[%s1 + $0x368] sm:$0xff]
    %v135 = vld [vmem:[%s1 + $0x370] sm:$0xff]
    %v136 = vld [vmem:[%s1 + $0x378] sm:$0xff]
    %v137 = vld [vmem:[%s1 + $0x380] sm:$0xff]
    %v138 = vld [vmem:[%s1 + $0x388] sm:$0xff]
    %v139 = vld [vmem:[%s1 + $0x390] sm:$0xff]
    %v140 = vld [vmem:[%s1 + $0x398] sm:$0xff]
    %v141 = vld [vmem:[%s1 + $0x3a0] sm:$0xff]
    %v142 = vld [vmem:[%s1 + $0x3a8] sm:$0xff]
    %v143 = vld [vmem:[%s1 + $0x3b0] sm:$0xff]
    %v144 = vld [vmem:[%s1 + $0x3b8] sm:$0xff]
    %v145 = vld [vmem:[%s1 + $0x3c0] sm:$0xff]
    %v146 = vld [vmem:[%s1 + $0x3c8] sm:$0xff]
    %v147 = vld [vmem:[%s1 + $0x3d0] sm:$0xff]
    %v148 = vld [vmem:[%s1 + $0x3d8] sm:$0xff]
    %v149 = vld [vmem:[%s1 + $0x3e0] sm:$0xff]
    %v150 = vld [vmem:[%s1 + $0x3e8] sm:$0xff]
    %v151 = vld [vmem:[%s1 + $0x3f0] sm:$0xff]
    %v152 = vld [vmem:[%s1 + $0x3f8] sm:$0xff]
    %v153 = vld [vmem:[%s1 + $0x400] sm:$0xff]
    %v154 = vld [vmem:[%s1 + $0x408] sm:$0xff]
    %v155 = vld [vmem:[%s1 + $0x410] sm:$0xff]
    %v156 = vld [vmem:[%s1 + $0x418] sm:$0xff]
    %v157 = vld [vmem:[%s1 + $0x420] sm:$0xff]
    %v158 = vld [vmem:[%s1 + $0x428] sm:$0xff]
    %v159 = vld [vmem:[%s1 + $0x430] sm:$0xff]
    %v160 = vld [vmem:[%s1 + $0x438] sm:$0xff]
    %v161 = vld [vmem:[%s1 + $0x440] sm:$0xff]
    %v162 = vld [vmem:[%s1 + $0x448] sm:$0xff]
    %v163 = vld [vmem:[%s1 + $0x450] sm:$0xff]
    %v164 = vld [vmem:[%s1 + $0x458] sm:$0xff]
    %v165 = vld [vmem:[%s1 + $0x460] sm:$0xff]
    %v166 = vld [vmem:[%s1 + $0x468] sm:$0xff]
    %v167 = vld [vmem:[%s1 + $0x470] sm:$0xff]
    %v168 = vld [vmem:[%s1 + $0x478] sm:$0xff]
    %v169 = vld [vmem:[%s1 + $0x480] sm:$0xff]
    %v170 = vld [vmem:[%s1 + $0x488] sm:$0xff]
    %v171 = vld [vmem:[%s1 + $0x490] sm:$0xff]
    %v172 = vld [vmem:[%s1 + $0x498] sm:$0xff]
    %v173 = vld [vmem:[%s1 + $0x4a0] sm:$0xff]
    %v174 = vld [vmem:[%s1 + $0x4a8] sm:$0xff]
    %v175 = vld [vmem:[%s1 + $0x4b0] sm:$0xff]
    %v176 = vld [vmem:[%s1 + $0x4b8] sm:$0xff]
    %v177 = vld [vmem:[%s1 + $0x4c0] sm:$0xff]
    %v178 = vld [vmem:[%s1 + $0x4c8] sm:$0xff]
    %v179 = vld [vmem:[%s1 + $0x4d0] sm:$0xff]
    %v180 = vld [vmem:[%s1 + $0x4d8] sm:$0xff]
    %v181 = vld [vmem:[%s1 + $0x4e0] sm:$0xff]
    %v182 = vld [vmem:[%s1 + $0x4e8] sm:$0xff]
    %v183 = vld [vmem:[%s1 + $0x4f0] sm:$0xff]
    %v184 = vld [vmem:[%s1 + $0x4f8] sm:$0xff]
    %v185 = vld [vmem:[%s1 + $0x500] sm:$0xff]
    %v186 = vld [vmem:[%s1 + $0x508] sm:$0xff]
    %v187 = vld [vmem:[%s1 + $0x510] sm:$0xff]
    %v188 = vld [vmem:[%s1 + $0x518] sm:$0xff]
    %v189 = vld [vmem:[%s1 + $0x520] sm:$0xff]
    %v190 = vld [vmem:[%s1 + $0x528] sm:$0xff]
    %v191 = vld [vmem:[%s1 + $0x530] sm:$0xff]
    %v192 = vld [vmem:[%s1 + $0x538] sm:$0xff]
    %v193 = vld [vmem:[%s1 + $0x540] sm:$0xff]
    %v194 = vld [vmem:[%s1 + $0x548] sm:$0xff]
    %v195 = vld [vmem:[%s1 + $0x550] sm:$0xff]
    %v196 = vld [vmem:[%s1 + $0x558] sm:$0xff]
    %v197 = vld [vmem:[%s1 + $0x560] sm:$0xff]
    %v198 = vld [vmem:[%s1 + $0x568] sm:$0xff]
    %v199 = vld [vmem:[%s1 + $0x570] sm:$0xff]
    %v200 = vld [vmem:[%s1 + $0x578] sm:$0xff]
    %v201 = vld [vmem:[%s1 + $0x580] sm:$0xff]
    %v202 = vld [vmem:[%s1 + $0x588] sm:$0xff]
    %v203 = vld [vmem:[%s1 + $0x590] sm:$0xff]
    %v204 = vld [vmem:[%s1 + $0x598] sm:$0xff]
    %v205 = vld [vmem:[%s1 + $0x5a0] sm:$0xff]
    %v206 = vld [vmem:[%s1 + $0x5a8] sm:$0xff]
    %v207 = vld [vmem:[%s1 + $0x5b0] sm:$0xff]
    %v208 = vld [vmem:[%s1 + $0x5b8] sm:$0xff]
    %v209 = vld [vmem:[%s1 + $0x5c0] sm:$0xff]
    %v210 = vld [vmem:[%s1 + $0x5c8] sm:$0xff]
    %v211 = vld [vmem:[%s1 + $0x5d0] sm:$0xff]
    %v212 = vld [vmem:[%s1 + $0x5d8] sm:$0xff]
    %v213 = vld [vmem:[%s1 + $0x5e0] sm:$0xff]
    %v214 = vld [vmem:[%s1 + $0x5e8] sm:$0xff]
    %v215 = vld [vmem:[%s1 + $0x5f0] sm:$0xff]
    %v216 = vld [vmem:[%s1 + $0x5f8] sm:$0xff]
    %v217 = vld [vmem:[%s1 + $0x600] sm:$0xff]
    %v218 = vld [vmem:[%s1 + $0x608] sm:$0xff]
    %v219 = vld [vmem:[%s1 + $0x610] sm:$0xff]
    %v220 = vld [vmem:[%s1 + $0x618] sm:$0xff]
    %v221 = vld [vmem:[%s1 + $0x620] sm:$0xff]
    %v222 = vld [vmem:[%s1 + $0x628] sm:$0xff]
    %v223 = vld [vmem:[%s1 + $0x630] sm:$0xff]
    %v224 = vld [vmem:[%s1 + $0x638] sm:$0xff]
    %v225 = vld [vmem:[%s1 + $0x640] sm:$0xff]
    %v226 = vld [vmem:[%s1 + $0x648] sm:$0xff]
    %v227 = vld [vmem:[%s1 + $0x650] sm:$0xff]
    %v228 = vld [vmem:[%s1 + $0x658] sm:$0xff]
    %v229 = vld [vmem:[%s1 + $0x660] sm:$0xff]
    %v230 = vld [vmem:[%s1 + $0x668] sm:$0xff]
    %v231 = vld [vmem:[%s1 + $0x670] sm:$0xff]
    %v232 = vld [vmem:[%s1 + $0x678] sm:$0xff]
    %v233 = vld [vmem:[%s1 + $0x680] sm:$0xff]
    %v234 = vld [vmem:[%s1 + $0x688] sm:$0xff]
    %v235 = vld [vmem:[%s1 + $0x690] sm:$0xff]
    %v236 = vld [vmem:[%s1 + $0x698] sm:$0xff]
    %v237 = vld [vmem:[%s1 + $0x6a0] sm:$0xff]
    %v238 = vld [vmem:[%s1 + $0x6a8] sm:$0xff]
    %v239 = vld [vmem:[%s1 + $0x6b0] sm:$0xff]
    %v240 = vld [vmem:[%s1 + $0x6b8] sm:$0xff]
    %v241 = vld [vmem:[%s1 + $0x6c0] sm:$0xff]
    %v242 = vld [vmem:[%s1 + $0x6c8] sm:$0xff]
    %v243 = vld [vmem:[%s1 + $0x6d0] sm:$0xff]
    %v244 = vld [vmem:[%s1 + $0x6d8] sm:$0xff]
    %v245 = vld [vmem:[%s1 + $0x6e0] sm:$0xff]
    %v246 = vld [vmem:[%s1 + $0x6e8] sm:$0xff]
    %v247 = vld [vmem:[%s1 + $0x6f0] sm:$0xff]
    %v248 = vld [vmem:[%s1 + $0x6f8] sm:$0xff]
    %v249 = vld [vmem:[%s1 + $0x700] sm:$0xff]
    %v250 = vld [vmem:[%s1 + $0x708] sm:$0xff]
    %v251 = vld [vmem:[%s1 + $0x710] sm:$0xff]
    %v252 = vld [vmem:[%s1 + $0x718] sm:$0xff]
    %v253 = vld [vmem:[%s1 + $0x720] sm:$0xff]
    %v254 = vld [vmem:[%s1 + $0x728] sm:$0xff]
    %v255 = vld [vmem:[%s1 + $0x730] sm:$0xff]
    %v256 = vld [vmem:[%s1 + $0x738] sm:$0xff]
    %v257 = vld [vmem:[%s1 + $0x740] sm:$0xff]
    %v258 = vld [vmem:[%s1 + $0x748] sm:$0xff]
    %v259 = vld [vmem:[%s1 + $0x750] sm:$0xff]
    %v260 = vld [vmem:[%s1 + $0x758] sm:$0xff]
    %v261 = vld [vmem:[%s1 + $0x760] sm:$0xff]
    %v262 = vld [vmem:[%s1 + $0x768] sm:$0xff]
    %v263 = vld [vmem:[%s1 + $0x770] sm:$0xff]
    %v264 = vld [vmem:[%s1 + $0x778] sm:$0xff]
    %v265 = vld [vmem:[%s1 + $0x780] sm:$0xff]
    %v266 = vld [vmem:[%s1 + $0x788] sm:$0xff]
    %v267 = vld [vmem:[%s1 + $0x790] sm:$0xff]
    %v268 = vld [vmem:[%s1 + $0x798] sm:$0xff]
    %v269 = vld [vmem:[%s1 + $0x7a0] sm:$0xff]
    %v270 = vld [vmem:[%s1 + $0x7a8] sm:$0xff]
    %v271 = vld [vmem:[%s1 + $0x7b0] sm:$0xff]
    %v272 = vld [vmem:[%s1 + $0x7b8] sm:$0xff]
    %v273 = vld [vmem:[%s1 + $0x7c0] sm:$0xff]
    %v274 = vld [vmem:[%s1 + $0x7c8] sm:$0xff]
    %v275 = vld [vmem:[%s1 + $0x7d0] sm:$0xff]
    %v276 = vld [vmem:[%s1 + $0x7d8] sm:$0xff]
    %v277 = vld [vmem:[%s1 + $0x7e0] sm:$0xff]
    %v278 = vld [vmem:[%s1 + $0x7e8] sm:$0xff]
    %v279 = vld [vmem:[%s1 + $0x7f0] sm:$0xff]
    %v280 = vld [vmem:[%s1 + $0x7f8] sm:$0xff]
    %v281 = vld [vmem:[%s1 + $0x800] sm:$0xff]
    %v282 = vld [vmem:[%s1 + $0x808] sm:$0xff]
    %v283 = vld [vmem:[%s1 + $0x810] sm:$0xff]
    %v284 = vld [vmem:[%s1 + $0x818] sm:$0xff]
    %v285 = vld [vmem:[%s1 + $0x820] sm:$0xff]
    %v286 = vld [vmem:[%s1 + $0x828] sm:$0xff]
    %v287 = vld [vmem:[%s1 + $0x830] sm:$0xff]
    %v288 = vld [vmem:[%s1 + $0x838] sm:$0xff]
    %v289 = vld [vmem:[%s1 + $0x840] sm:$0xff]
    %v290 = vld [vmem:[%s1 + $0x848] sm:$0xff]
    %v291 = vld [vmem:[%s1 + $0x850] sm:$0xff]
    %v292 = vld [vmem:[%s1 + $0x858] sm:$0xff]
    %v293 = vld [vmem:[%s1 + $0x860] sm:$0xff]
    %v294 = vld [vmem:[%s1 + $0x868] sm:$0xff]
    %v295 = vld [vmem:[%s1 + $0x870] sm:$0xff]
    %v296 = vld [vmem:[%s1 + $0x878] sm:$0xff]
    %v297 = vld [vmem:[%s1 + $0x880] sm:$0xff]
    %v298 = vld [vmem:[%s1 + $0x888] sm:$0xff]
    %v299 = vld [vmem:[%s1 + $0x890] sm:$0xff]
    %v300 = vld [vmem:[%s1 + $0x898] sm:$0xff]
    %v301 = vld [vmem:[%s1 + $0x8a0] sm:$0xff]
    %v302 = vld [vmem:[%s1 + $0x8a8] sm:$0xff]
    %v303 = vld [vmem:[%s1 + $0x8b0] sm:$0xff]
    %v304 = vld [vmem:[%s1 + $0x8b8] sm:$0xff]
    %v305 = vld [vmem:[%s1 + $0x8c0] sm:$0xff]
    %v306 = vld [vmem:[%s1 + $0x8c8] sm:$0xff]
    %v307 = vld [vmem:[%s1 + $0x8d0] sm:$0xff]
    %v308 = vld [vmem:[%s1 + $0x8d8] sm:$0xff]
    %v309 = vld [vmem:[%s1 + $0x8e0] sm:$0xff]
    %v310 = vld [vmem:[%s1 + $0x8e8] sm:$0xff]
    %v311 = vld [vmem:[%s1 + $0x8f0] sm:$0xff]
    %v312 = vld [vmem:[%s1 + $0x8f8] sm:$0xff]
    %v313 = vld [vmem:[%s1 + $0x900] sm:$0xff]
    %v314 = vld [vmem:[%s1 + $0x908] sm:$0xff]
    %v315 = vld [vmem:[%s1 + $0x910] sm:$0xff]
    %v316 = vld [vmem:[%s1 + $0x918] sm:$0xff]
    %v317 = vld [vmem:[%s1 + $0x920] sm:$0xff]
    %v318 = vld [vmem:[%s1 + $0x928] sm:$0xff]
    %v319 = vld [vmem:[%s1 + $0x930] sm:$0xff]
    %v320 = vld [vmem:[%s1 + $0x938] sm:$0xff]
    %v321 = vld [vmem:[%s1 + $0x940] sm:$0xff]
    %v322 = vld [vmem:[%s1 + $0x948] sm:$0xff]
    %v323 = vld [vmem:[%s1 + $0x950] sm:$0xff]
    %v324 = vld [vmem:[%s1 + $0x958] sm:$0xff]
    %v325 = vld [vmem:[%s1 + $0x960] sm:$0xff]
    %v326 = vld [vmem:[%s1 + $0x968] sm:$0xff]
    %v327 = vld [vmem:[%s1 + $0x970] sm:$0xff]
    %v328 = vld [vmem:[%s1 + $0x978] sm:$0xff]
    %v329 = vld [vmem:[%s1 + $0x980] sm:$0xff]
    %v330 = vld [vmem:[%s1 + $0x988] sm:$0xff]
    %v331 = vld [vmem:[%s1 + $0x990] sm:$0xff]
    %v332 = vld [vmem:[%s1 + $0x998] sm:$0xff]
    %v333 = vld [vmem:[%s1 + $0x9a0] sm:$0xff]
    %v334 = vld [vmem:[%s1 + $0x9a8] sm:$0xff]
    %v335 = vld [vmem:[%s1 + $0x9b0] sm:$0xff]
    %v336 = vld [vmem:[%s1 + $0x9b8] sm:$0xff]
    %v337 = vld [vmem:[%s1 + $0x9c0] sm:$0xff]
    %v338 = vld [vmem:[%s1 + $0x9c8] sm:$0xff]
    %v339 = vld [vmem:[%s1 + $0x9d0] sm:$0xff]
    %v340 = vld [vmem:[%s1 + $0x9d8] sm:$0xff]
    %v341 = vld [vmem:[%s1 + $0x9e0] sm:$0xff]
    %v342 = vld [vmem:[%s1 + $0x9e8] sm:$0xff]
    %v343 = vld [vmem:[%s1 + $0x9f0] sm:$0xff]
    %v344 = vld [vmem:[%s1 + $0x9f8] sm:$0xff]
    %v345 = vld [vmem:[%s1 + $0xa00] sm:$0xff]
    %v346 = vld [vmem:[%s1 + $0xa08] sm:$0xff]
    %v347 = vld [vmem:[%s1 + $0xa10] sm:$0xff]
    %v348 = vld [vmem:[%s1 + $0xa18] sm:$0xff]
    %v349 = vld [vmem:[%s2] sm:$0x3]
    %v351 = vperm.slane %v349, 0
    %v352 = vperm.slane %v349, 1
    %356 = vst [vmem:[#allocation1] ss:$9 sm:$0xff] %v22
    %v357 = vld [vmem:[#allocation1] sm:$0xff]
    %v358 = vld [vmem:[#allocation1 + $0x9] sm:$0xff]
    %v359 = vld [vmem:[#allocation1 + $0x12] sm:$0xff]
    %v360 = vld [vmem:[#allocation1 + $0x1b] sm:$0xff]
    %v361 = vld [vmem:[#allocation1 + $0x24] sm:$0xff]
    %v362 = vld [vmem:[#allocation1 + $0x2d] sm:$0xff]
    %v363 = vld [vmem:[#allocation1 + $0x36] sm:$0xff]
    %v364 = vld [vmem:[#allocation1 + $0x3f] sm:$0xff]
    %366 = vst [vmem:[#allocation1] ss:$9 sm:$0xff] %v23
    %v367 = vld [vmem:[#allocation1] sm:$0xff]
    %v368 = vld [vmem:[#allocation1 + $0x9] sm:$0xff]
    %v369 = vld [vmem:[#allocation1 + $0x12] sm:$0xff]
    %v370 = vld [vmem:[#allocation1 + $0x1b] sm:$0xff]
    %v371 = vld [vmem:[#allocation1 + $0x24] sm:$0xff]
    %v372 = vld [vmem:[#allocation1 + $0x2d] sm:$0xff]
    %v373 = vld [vmem:[#allocation1 + $0x36] sm:$0xff]
    %v374 = vld [vmem:[#allocation1 + $0x3f] sm:$0xff]
    %376 = vst [vmem:[#allocation1] ss:$9 sm:$0xff] %v24
    %v377 = vld [vmem:[#allocation1] sm:$0xff]
    %v378 = vld [vmem:[#allocation1 + $0x9] sm:$0xff]
    %v379 = vld [vmem:[#allocation1 + $0x12] sm:$0xff]
    %v380 = vld [vmem:[#allocation1 + $0x1b] sm:$0xff]
    %v381 = vld [vmem:[#allocation1 + $0x24] sm:$0xff]
    %v726 = vunpack.c.l.b16 %v25
    %v727 = vunpack.c.h.b16 %v25
    %v728 = vunpack.c.l.b16 %v26
    %v729 = vunpack.c.h.b16 %v26
    %v730 = vunpack.c.l.b16 %v27
    %v731 = vunpack.c.h.b16 %v27
    %v732 = vunpack.c.l.b16 %v28
    %v733 = vunpack.c.h.b16 %v28
    %v734 = vunpack.c.l.b16 %v29
    %v735 = vunpack.c.h.b16 %v29
    %v736 = vunpack.c.l.b16 %v30
    %v737 = vunpack.c.h.b16 %v30
    %v738 = vunpack.c.l.b16 %v31
    %v739 = vunpack.c.h.b16 %v31
    %v740 = vunpack.c.l.b16 %v32
    %v741 = vunpack.c.h.b16 %v32
    %v742 = vunpack.c.l.b16 %v33
    %v743 = vunpack.c.h.b16 %v33
    %v744 = vunpack.c.l.b16 %v34
    %v745 = vunpack.c.h.b16 %v34
    %v746 = vunpack.c.l.b16 %v35
    %v747 = vunpack.c.h.b16 %v35
    %v748 = vunpack.c.l.b16 %v36
    %v749 = vunpack.c.h.b16 %v36
    %v750 = vunpack.c.l.b16 %v37
    %v751 = vunpack.c.h.b16 %v37
    %v752 = vunpack.c.l.b16 %v38
    %v753 = vunpack.c.h.b16 %v38
    %v754 = vunpack.c.l.b16 %v39
    %v755 = vunpack.c.h.b16 %v39
    %v756 = vunpack.c.l.b16 %v40
    %v757 = vunpack.c.h.b16 %v40
    %v758 = vunpack.c.l.b16 %v41
    %v759 = vunpack.c.h.b16 %v41
    %v760 = vunpack.c.l.b16 %v42
    %v761 = vunpack.c.h.b16 %v42
    %v762 = vunpack.c.l.b16 %v43
    %v763 = vunpack.c.h.b16 %v43
    %v764 = vunpack.c.l.b16 %v44
    %v765 = vunpack.c.h.b16 %v44
    %v766 = vunpack.c.l.b16 %v45
    %v767 = vunpack.c.h.b16 %v45
    %v768 = vunpack.c.l.b16 %v46
    %v769 = vunpack.c.h.b16 %v46
    %v770 = vunpack.c.l.b16 %v47
    %v771 = vunpack.c.h.b16 %v47
    %v772 = vunpack.c.l.b16 %v48
    %v773 = vunpack.c.h.b16 %v48
    %v774 = vunpack.c.l.b16 %v49
    %v775 = vunpack.c.h.b16 %v49
    %v776 = vunpack.c.l.b16 %v50
    %v777 = vunpack.c.h.b16 %v50
    %v778 = vunpack.c.l.b16 %v51
    %v779 = vunpack.c.h.b16 %v51
    %v780 = vunpack.c.l.b16 %v52
    %v781 = vunpack.c.h.b16 %v52
    %v782 = vunpack.c.l.b16 %v53
    %v783 = vunpack.c.h.b16 %v53
    %v784 = vunpack.c.l.b16 %v54
    %v785 = vunpack.c.h.b16 %v54
    %v786 = vunpack.c.l.b16 %v55
    %v787 = vunpack.c.h.b16 %v55
    %v788 = vunpack.c.l.b16 %v56
    %v789 = vunpack.c.h.b16 %v56
    %v790 = vunpack.c.l.b16 %v57
    %v791 = vunpack.c.h.b16 %v57
    %v792 = vunpack.c.l.b16 %v58
    %v793 = vunpack.c.h.b16 %v58
    %v794 = vunpack.c.l.b16 %v59
    %v795 = vunpack.c.h.b16 %v59
    %v796 = vunpack.c.l.b16 %v60
    %v797 = vunpack.c.h.b16 %v60
    %v798 = vunpack.c.l.b16 %v61
    %v799 = vunpack.c.h.b16 %v61
    %v800 = vunpack.c.l.b16 %v62
    %v801 = vunpack.c.h.b16 %v62
    %v802 = vunpack.c.l.b16 %v63
    %v803 = vunpack.c.h.b16 %v63
    %v804 = vunpack.c.l.b16 %v64
    %v805 = vunpack.c.h.b16 %v64
    %v806 = vunpack.c.l.b16 %v65
    %v807 = vunpack.c.h.b16 %v65
    %v808 = vunpack.c.l.b16 %v66
    %v809 = vunpack.c.h.b16 %v66
    %v810 = vunpack.c.l.b16 %v67
    %v811 = vunpack.c.h.b16 %v67
    %v812 = vunpack.c.l.b16 %v68
    %v813 = vunpack.c.h.b16 %v68
    %v814 = vunpack.c.l.b16 %v69
    %v815 = vunpack.c.h.b16 %v69
    %v816 = vunpack.c.l.b16 %v70
    %v817 = vunpack.c.h.b16 %v70
    %v818 = vunpack.c.l.b16 %v71
    %v819 = vunpack.c.h.b16 %v71
    %v820 = vunpack.c.l.b16 %v72
    %v821 = vunpack.c.h.b16 %v72
    %v822 = vunpack.c.l.b16 %v73
    %v823 = vunpack.c.h.b16 %v73
    %v824 = vunpack.c.l.b16 %v74
    %v825 = vunpack.c.h.b16 %v74
    %v826 = vunpack.c.l.b16 %v75
    %v827 = vunpack.c.h.b16 %v75
    %v828 = vunpack.c.l.b16 %v76
    %v829 = vunpack.c.h.b16 %v76
    %v830 = vunpack.c.l.b16 %v77
    %v831 = vunpack.c.h.b16 %v77
    %v832 = vunpack.c.l.b16 %v78
    %v833 = vunpack.c.h.b16 %v78
    %v834 = vunpack.c.l.b16 %v79
    %v835 = vunpack.c.h.b16 %v79
    %v836 = vunpack.c.l.b16 %v80
    %v837 = vunpack.c.h.b16 %v80
    %v838 = vunpack.c.l.b16 %v81
    %v839 = vunpack.c.h.b16 %v81
    %v840 = vunpack.c.l.b16 %v82
    %v841 = vunpack.c.h.b16 %v82
    %v842 = vunpack.c.l.b16 %v83
    %v843 = vunpack.c.h.b16 %v83
    %v844 = vunpack.c.l.b16 %v84
    %v845 = vunpack.c.h.b16 %v84
    %v846 = vunpack.c.l.b16 %v85
    %v847 = vunpack.c.h.b16 %v85
    %v848 = vunpack.c.l.b16 %v86
    %v849 = vunpack.c.h.b16 %v86
    %v850 = vunpack.c.l.b16 %v87
    %v851 = vunpack.c.h.b16 %v87
    %v852 = vunpack.c.l.b16 %v88
    %v853 = vunpack.c.h.b16 %v88
    %v854 = vunpack.c.l.b16 %v89
    %v855 = vunpack.c.h.b16 %v89
    %v856 = vunpack.c.l.b16 %v90
    %v857 = vunpack.c.h.b16 %v90
    %v858 = vunpack.c.l.b16 %v91
    %v859 = vunpack.c.h.b16 %v91
    %v860 = vunpack.c.l.b16 %v92
    %v861 = vunpack.c.h.b16 %v92
    %v862 = vunpack.c.l.b16 %v93
    %v863 = vunpack.c.h.b16 %v93
    %v864 = vunpack.c.l.b16 %v94
    %v865 = vunpack.c.h.b16 %v94
    %v866 = vunpack.c.l.b16 %v95
    %v867 = vunpack.c.h.b16 %v95
    %v868 = vunpack.c.l.b16 %v96
    %v869 = vunpack.c.h.b16 %v96
    %v870 = vunpack.c.l.b16 %v97
    %v871 = vunpack.c.h.b16 %v97
    %v872 = vunpack.c.l.b16 %v98
    %v873 = vunpack.c.h.b16 %v98
    %v874 = vunpack.c.l.b16 %v99
    %v875 = vunpack.c.h.b16 %v99
    %v876 = vunpack.c.l.b16 %v100
    %v877 = vunpack.c.h.b16 %v100
    %v878 = vunpack.c.l.b16 %v101
    %v879 = vunpack.c.h.b16 %v101
    %v880 = vunpack.c.l.b16 %v102
    %v881 = vunpack.c.h.b16 %v102
    %v882 = vunpack.c.l.b16 %v103
    %v883 = vunpack.c.h.b16 %v103
    %v884 = vunpack.c.l.b16 %v104
    %v885 = vunpack.c.h.b16 %v104
    %v886 = vunpack.c.l.b16 %v105
    %v887 = vunpack.c.h.b16 %v105
    %v888 = vunpack.c.l.b16 %v106
    %v889 = vunpack.c.h.b16 %v106
    %v890 = vunpack.c.l.b16 %v107
    %v891 = vunpack.c.h.b16 %v107
    %v892 = vunpack.c.l.b16 %v108
    %v893 = vunpack.c.h.b16 %v108
    %v894 = vunpack.c.l.b16 %v109
    %v895 = vunpack.c.h.b16 %v109
    %v896 = vunpack.c.l.b16 %v110
    %v897 = vunpack.c.h.b16 %v110
    %v898 = vunpack.c.l.b16 %v111
    %v899 = vunpack.c.h.b16 %v111
    %v900 = vunpack.c.l.b16 %v112
    %v901 = vunpack.c.h.b16 %v112
    %v902 = vunpack.c.l.b16 %v113
    %v903 = vunpack.c.h.b16 %v113
    %v904 = vunpack.c.l.b16 %v114
    %v905 = vunpack.c.h.b16 %v114
    %v906 = vunpack.c.l.b16 %v115
    %v907 = vunpack.c.h.b16 %v115
    %v908 = vunpack.c.l.b16 %v116
    %v909 = vunpack.c.h.b16 %v116
    %v910 = vunpack.c.l.b16 %v117
    %v911 = vunpack.c.h.b16 %v117
    %v912 = vunpack.c.l.b16 %v118
    %v913 = vunpack.c.h.b16 %v118
    %v914 = vunpack.c.l.b16 %v119
    %v915 = vunpack.c.h.b16 %v119
    %v916 = vunpack.c.l.b16 %v120
    %v917 = vunpack.c.h.b16 %v120
    %v918 = vunpack.c.l.b16 %v121
    %v919 = vunpack.c.h.b16 %v121
    %v920 = vunpack.c.l.b16 %v122
    %v921 = vunpack.c.h.b16 %v122
    %v922 = vunpack.c.l.b16 %v123
    %v923 = vunpack.c.h.b16 %v123
    %v924 = vunpack.c.l.b16 %v124
    %v925 = vunpack.c.h.b16 %v124
    %v926 = vunpack.c.l.b16 %v125
    %v927 = vunpack.c.h.b16 %v125
    %v928 = vunpack.c.l.b16 %v126
    %v929 = vunpack.c.h.b16 %v126
    %v930 = vunpack.c.l.b16 %v127
    %v931 = vunpack.c.h.b16 %v127
    %v932 = vunpack.c.l.b16 %v128
    %v933 = vunpack.c.h.b16 %v128
    %v934 = vunpack.c.l.b16 %v129
    %v935 = vunpack.c.h.b16 %v129
    %v936 = vunpack.c.l.b16 %v130
    %v937 = vunpack.c.h.b16 %v130
    %v938 = vunpack.c.l.b16 %v131
    %v939 = vunpack.c.h.b16 %v131
    %v940 = vunpack.c.l.b16 %v132
    %v941 = vunpack.c.h.b16 %v132
    %v942 = vunpack.c.l.b16 %v133
    %v943 = vunpack.c.h.b16 %v133
    %v944 = vunpack.c.l.b16 %v134
    %v945 = vunpack.c.h.b16 %v134
    %v946 = vunpack.c.l.b16 %v135
    %v947 = vunpack.c.h.b16 %v135
    %v948 = vunpack.c.l.b16 %v136
    %v949 = vunpack.c.h.b16 %v136
    %v950 = vunpack.c.l.b16 %v137
    %v951 = vunpack.c.h.b16 %v137
    %v952 = vunpack.c.l.b16 %v138
    %v953 = vunpack.c.h.b16 %v138
    %v954 = vunpack.c.l.b16 %v139
    %v955 = vunpack.c.h.b16 %v139
    %v956 = vunpack.c.l.b16 %v140
    %v957 = vunpack.c.h.b16 %v140
    %v958 = vunpack.c.l.b16 %v141
    %v959 = vunpack.c.h.b16 %v141
    %v960 = vunpack.c.l.b16 %v142
    %v961 = vunpack.c.h.b16 %v142
    %v962 = vunpack.c.l.b16 %v143
    %v963 = vunpack.c.h.b16 %v143
    %v964 = vunpack.c.l.b16 %v144
    %v965 = vunpack.c.h.b16 %v144
    %v966 = vunpack.c.l.b16 %v145
    %v967 = vunpack.c.h.b16 %v145
    %v968 = vunpack.c.l.b16 %v146
    %v969 = vunpack.c.h.b16 %v146
    %v970 = vunpack.c.l.b16 %v147
    %v971 = vunpack.c.h.b16 %v147
    %v972 = vunpack.c.l.b16 %v148
    %v973 = vunpack.c.h.b16 %v148
    %v974 = vunpack.c.l.b16 %v149
    %v975 = vunpack.c.h.b16 %v149
    %v976 = vunpack.c.l.b16 %v150
    %v977 = vunpack.c.h.b16 %v150
    %v978 = vunpack.c.l.b16 %v151
    %v979 = vunpack.c.h.b16 %v151
    %v980 = vunpack.c.l.b16 %v152
    %v981 = vunpack.c.h.b16 %v152
    %v982 = vunpack.c.l.b16 %v153
    %v983 = vunpack.c.h.b16 %v153
    %v984 = vunpack.c.l.b16 %v154
    %v985 = vunpack.c.h.b16 %v154
    %v986 = vunpack.c.l.b16 %v155
    %v987 = vunpack.c.h.b16 %v155
    %v988 = vunpack.c.l.b16 %v156
    %v989 = vunpack.c.h.b16 %v156
    %v990 = vunpack.c.l.b16 %v157
    %v991 = vunpack.c.h.b16 %v157
    %v992 = vunpack.c.l.b16 %v158
    %v993 = vunpack.c.h.b16 %v158
    %v994 = vunpack.c.l.b16 %v159
    %v995 = vunpack.c.h.b16 %v159
    %v996 = vunpack.c.l.b16 %v160
    %v997 = vunpack.c.h.b16 %v160
    %v998 = vunpack.c.l.b16 %v161
    %v999 = vunpack.c.h.b16 %v161
    %v1000 = vunpack.c.l.b16 %v162
    %v1001 = vunpack.c.h.b16 %v162
    %v1002 = vunpack.c.l.b16 %v163
    %v1003 = vunpack.c.h.b16 %v163
    %v1004 = vunpack.c.l.b16 %v164
    %v1005 = vunpack.c.h.b16 %v164
    %v1006 = vunpack.c.l.b16 %v165
    %v1007 = vunpack.c.h.b16 %v165
    %v1008 = vunpack.c.l.b16 %v166
    %v1009 = vunpack.c.h.b16 %v166
    %v1010 = vunpack.c.l.b16 %v167
    %v1011 = vunpack.c.h.b16 %v167
    %v1012 = vunpack.c.l.b16 %v168
    %v1013 = vunpack.c.h.b16 %v168
    %v1014 = vunpack.c.l.b16 %v169
    %v1015 = vunpack.c.h.b16 %v169
    %v1016 = vunpack.c.l.b16 %v170
    %v1017 = vunpack.c.h.b16 %v170
    %v1018 = vunpack.c.l.b16 %v171
    %v1019 = vunpack.c.h.b16 %v171
    %v1020 = vunpack.c.l.b16 %v172
    %v1021 = vunpack.c.h.b16 %v172
    %v1022 = vunpack.c.l.b16 %v173
    %v1023 = vunpack.c.h.b16 %v173
    %v1024 = vunpack.c.l.b16 %v174
    %v1025 = vunpack.c.h.b16 %v174
    %v1026 = vunpack.c.l.b16 %v175
    %v1027 = vunpack.c.h.b16 %v175
    %v1028 = vunpack.c.l.b16 %v176
    %v1029 = vunpack.c.h.b16 %v176
    %v1030 = vunpack.c.l.b16 %v177
    %v1031 = vunpack.c.h.b16 %v177
    %v1032 = vunpack.c.l.b16 %v178
    %v1033 = vunpack.c.h.b16 %v178
    %v1034 = vunpack.c.l.b16 %v179
    %v1035 = vunpack.c.h.b16 %v179
    %v1036 = vunpack.c.l.b16 %v180
    %v1037 = vunpack.c.h.b16 %v180
    %v1038 = vunpack.c.l.b16 %v181
    %v1039 = vunpack.c.h.b16 %v181
    %v1040 = vunpack.c.l.b16 %v182
    %v1041 = vunpack.c.h.b16 %v182
    %v1042 = vunpack.c.l.b16 %v183
    %v1043 = vunpack.c.h.b16 %v183
    %v1044 = vunpack.c.l.b16 %v184
    %v1045 = vunpack.c.h.b16 %v184
    %v1046 = vunpack.c.l.b16 %v185
    %v1047 = vunpack.c.h.b16 %v185
    %v1048 = vunpack.c.l.b16 %v186
    %v1049 = vunpack.c.h.b16 %v186
    %v1050 = vunpack.c.l.b16 %v187
    %v1051 = vunpack.c.h.b16 %v187
    %v1052 = vunpack.c.l.b16 %v188
    %v1053 = vunpack.c.h.b16 %v188
    %v1054 = vunpack.c.l.b16 %v189
    %v1055 = vunpack.c.h.b16 %v189
    %v1056 = vunpack.c.l.b16 %v190
    %v1057 = vunpack.c.h.b16 %v190
    %v1058 = vunpack.c.l.b16 %v191
    %v1059 = vunpack.c.h.b16 %v191
    %v1060 = vunpack.c.l.b16 %v192
    %v1061 = vunpack.c.h.b16 %v192
    %v1062 = vunpack.c.l.b16 %v193
    %v1063 = vunpack.c.h.b16 %v193
    %v1064 = vunpack.c.l.b16 %v194
    %v1065 = vunpack.c.h.b16 %v194
    %v1066 = vunpack.c.l.b16 %v195
    %v1067 = vunpack.c.h.b16 %v195
    %v1068 = vunpack.c.l.b16 %v196
    %v1069 = vunpack.c.h.b16 %v196
    %v1070 = vunpack.c.l.b16 %v197
    %v1071 = vunpack.c.h.b16 %v197
    %v1072 = vunpack.c.l.b16 %v198
    %v1073 = vunpack.c.h.b16 %v198
    %v1074 = vunpack.c.l.b16 %v199
    %v1075 = vunpack.c.h.b16 %v199
    %v1076 = vunpack.c.l.b16 %v200
    %v1077 = vunpack.c.h.b16 %v200
    %v1078 = vunpack.c.l.b16 %v201
    %v1079 = vunpack.c.h.b16 %v201
    %v1080 = vunpack.c.l.b16 %v202
    %v1081 = vunpack.c.h.b16 %v202
    %v1082 = vunpack.c.l.b16 %v203
    %v1083 = vunpack.c.h.b16 %v203
    %v1084 = vunpack.c.l.b16 %v204
    %v1085 = vunpack.c.h.b16 %v204
    %v1086 = vunpack.c.l.b16 %v205
    %v1087 = vunpack.c.h.b16 %v205
    %v1088 = vunpack.c.l.b16 %v206
    %v1089 = vunpack.c.h.b16 %v206
    %v1090 = vunpack.c.l.b16 %v207
    %v1091 = vunpack.c.h.b16 %v207
    %v1092 = vunpack.c.l.b16 %v208
    %v1093 = vunpack.c.h.b16 %v208
    %v1094 = vunpack.c.l.b16 %v209
    %v1095 = vunpack.c.h.b16 %v209
    %v1096 = vunpack.c.l.b16 %v210
    %v1097 = vunpack.c.h.b16 %v210
    %v1098 = vunpack.c.l.b16 %v211
    %v1099 = vunpack.c.h.b16 %v211
    %v1100 = vunpack.c.l.b16 %v212
    %v1101 = vunpack.c.h.b16 %v212
    %v1102 = vunpack.c.l.b16 %v213
    %v1103 = vunpack.c.h.b16 %v213
    %v1104 = vunpack.c.l.b16 %v214
    %v1105 = vunpack.c.h.b16 %v214
    %v1106 = vunpack.c.l.b16 %v215
    %v1107 = vunpack.c.h.b16 %v215
    %v1108 = vunpack.c.l.b16 %v216
    %v1109 = vunpack.c.h.b16 %v216
    %v1110 = vunpack.c.l.b16 %v217
    %v1111 = vunpack.c.h.b16 %v217
    %v1112 = vunpack.c.l.b16 %v218
    %v1113 = vunpack.c.h.b16 %v218
    %v1114 = vunpack.c.l.b16 %v219
    %v1115 = vunpack.c.h.b16 %v219
    %v1116 = vunpack.c.l.b16 %v220
    %v1117 = vunpack.c.h.b16 %v220
    %v1118 = vunpack.c.l.b16 %v221
    %v1119 = vunpack.c.h.b16 %v221
    %v1120 = vunpack.c.l.b16 %v222
    %v1121 = vunpack.c.h.b16 %v222
    %v1122 = vunpack.c.l.b16 %v223
    %v1123 = vunpack.c.h.b16 %v223
    %v1124 = vunpack.c.l.b16 %v224
    %v1125 = vunpack.c.h.b16 %v224
    %v1126 = vunpack.c.l.b16 %v225
    %v1127 = vunpack.c.h.b16 %v225
    %v1128 = vunpack.c.l.b16 %v226
    %v1129 = vunpack.c.h.b16 %v226
    %v1130 = vunpack.c.l.b16 %v227
    %v1131 = vunpack.c.h.b16 %v227
    %v1132 = vunpack.c.l.b16 %v228
    %v1133 = vunpack.c.h.b16 %v228
    %v1134 = vunpack.c.l.b16 %v229
    %v1135 = vunpack.c.h.b16 %v229
    %v1136 = vunpack.c.l.b16 %v230
    %v1137 = vunpack.c.h.b16 %v230
    %v1138 = vunpack.c.l.b16 %v231
    %v1139 = vunpack.c.h.b16 %v231
    %v1140 = vunpack.c.l.b16 %v232
    %v1141 = vunpack.c.h.b16 %v232
    %v1142 = vunpack.c.l.b16 %v233
    %v1143 = vunpack.c.h.b16 %v233
    %v1144 = vunpack.c.l.b16 %v234
    %v1145 = vunpack.c.h.b16 %v234
    %v1146 = vunpack.c.l.b16 %v235
    %v1147 = vunpack.c.h.b16 %v235
    %v1148 = vunpack.c.l.b16 %v236
    %v1149 = vunpack.c.h.b16 %v236
    %v1150 = vunpack.c.l.b16 %v237
    %v1151 = vunpack.c.h.b16 %v237
    %v1152 = vunpack.c.l.b16 %v238
    %v1153 = vunpack.c.h.b16 %v238
    %v1154 = vunpack.c.l.b16 %v239
    %v1155 = vunpack.c.h.b16 %v239
    %v1156 = vunpack.c.l.b16 %v240
    %v1157 = vunpack.c.h.b16 %v240
    %v1158 = vunpack.c.l.b16 %v241
    %v1159 = vunpack.c.h.b16 %v241
    %v1160 = vunpack.c.l.b16 %v242
    %v1161 = vunpack.c.h.b16 %v242
    %v1162 = vunpack.c.l.b16 %v243
    %v1163 = vunpack.c.h.b16 %v243
    %v1164 = vunpack.c.l.b16 %v244
    %v1165 = vunpack.c.h.b16 %v244
    %v1166 = vunpack.c.l.b16 %v245
    %v1167 = vunpack.c.h.b16 %v245
    %v1168 = vunpack.c.l.b16 %v246
    %v1169 = vunpack.c.h.b16 %v246
    %v1170 = vunpack.c.l.b16 %v247
    %v1171 = vunpack.c.h.b16 %v247
    %v1172 = vunpack.c.l.b16 %v248
    %v1173 = vunpack.c.h.b16 %v248
    %v1174 = vunpack.c.l.b16 %v249
    %v1175 = vunpack.c.h.b16 %v249
    %v1176 = vunpack.c.l.b16 %v250
    %v1177 = vunpack.c.h.b16 %v250
    %v1178 = vunpack.c.l.b16 %v251
    %v1179 = vunpack.c.h.b16 %v251
    %v1180 = vunpack.c.l.b16 %v252
    %v1181 = vunpack.c.h.b16 %v252
    %v1182 = vunpack.c.l.b16 %v253
    %v1183 = vunpack.c.h.b16 %v253
    %v1184 = vunpack.c.l.b16 %v254
    %v1185 = vunpack.c.h.b16 %v254
    %v1186 = vunpack.c.l.b16 %v255
    %v1187 = vunpack.c.h.b16 %v255
    %v1188 = vunpack.c.l.b16 %v256
    %v1189 = vunpack.c.h.b16 %v256
    %v1190 = vunpack.c.l.b16 %v257
    %v1191 = vunpack.c.h.b16 %v257
    %v1192 = vunpack.c.l.b16 %v258
    %v1193 = vunpack.c.h.b16 %v258
    %v1194 = vunpack.c.l.b16 %v259
    %v1195 = vunpack.c.h.b16 %v259
    %v1196 = vunpack.c.l.b16 %v260
    %v1197 = vunpack.c.h.b16 %v260
    %v1198 = vunpack.c.l.b16 %v261
    %v1199 = vunpack.c.h.b16 %v261
    %v1200 = vunpack.c.l.b16 %v262
    %v1201 = vunpack.c.h.b16 %v262
    %v1202 = vunpack.c.l.b16 %v263
    %v1203 = vunpack.c.h.b16 %v263
    %v1204 = vunpack.c.l.b16 %v264
    %v1205 = vunpack.c.h.b16 %v264
    %v1206 = vunpack.c.l.b16 %v265
    %v1207 = vunpack.c.h.b16 %v265
    %v1208 = vunpack.c.l.b16 %v266
    %v1209 = vunpack.c.h.b16 %v266
    %v1210 = vunpack.c.l.b16 %v267
    %v1211 = vunpack.c.h.b16 %v267
    %v1212 = vunpack.c.l.b16 %v268
    %v1213 = vunpack.c.h.b16 %v268
    %v1214 = vunpack.c.l.b16 %v269
    %v1215 = vunpack.c.h.b16 %v269
    %v1216 = vunpack.c.l.b16 %v270
    %v1217 = vunpack.c.h.b16 %v270
    %v1218 = vunpack.c.l.b16 %v271
    %v1219 = vunpack.c.h.b16 %v271
    %v1220 = vunpack.c.l.b16 %v272
    %v1221 = vunpack.c.h.b16 %v272
    %v1222 = vunpack.c.l.b16 %v273
    %v1223 = vunpack.c.h.b16 %v273
    %v1224 = vunpack.c.l.b16 %v274
    %v1225 = vunpack.c.h.b16 %v274
    %v1226 = vunpack.c.l.b16 %v275
    %v1227 = vunpack.c.h.b16 %v275
    %v1228 = vunpack.c.l.b16 %v276
    %v1229 = vunpack.c.h.b16 %v276
    %v1230 = vunpack.c.l.b16 %v277
    %v1231 = vunpack.c.h.b16 %v277
    %v1232 = vunpack.c.l.b16 %v278
    %v1233 = vunpack.c.h.b16 %v278
    %v1234 = vunpack.c.l.b16 %v279
    %v1235 = vunpack.c.h.b16 %v279
    %v1236 = vunpack.c.l.b16 %v280
    %v1237 = vunpack.c.h.b16 %v280
    %v1238 = vunpack.c.l.b16 %v281
    %v1239 = vunpack.c.h.b16 %v281
    %v1240 = vunpack.c.l.b16 %v282
    %v1241 = vunpack.c.h.b16 %v282
    %v1242 = vunpack.c.l.b16 %v283
    %v1243 = vunpack.c.h.b16 %v283
    %v1244 = vunpack.c.l.b16 %v284
    %v1245 = vunpack.c.h.b16 %v284
    %v1246 = vunpack.c.l.b16 %v285
    %v1247 = vunpack.c.h.b16 %v285
    %v1248 = vunpack.c.l.b16 %v286
    %v1249 = vunpack.c.h.b16 %v286
    %v1250 = vunpack.c.l.b16 %v287
    %v1251 = vunpack.c.h.b16 %v287
    %v1252 = vunpack.c.l.b16 %v288
    %v1253 = vunpack.c.h.b16 %v288
    %v1254 = vunpack.c.l.b16 %v289
    %v1255 = vunpack.c.h.b16 %v289
    %v1256 = vunpack.c.l.b16 %v290
    %v1257 = vunpack.c.h.b16 %v290
    %v1258 = vunpack.c.l.b16 %v291
    %v1259 = vunpack.c.h.b16 %v291
    %v1260 = vunpack.c.l.b16 %v292
    %v1261 = vunpack.c.h.b16 %v292
    %v1262 = vunpack.c.l.b16 %v293
    %v1263 = vunpack.c.h.b16 %v293
    %v1264 = vunpack.c.l.b16 %v294
    %v1265 = vunpack.c.h.b16 %v294
    %v1266 = vunpack.c.l.b16 %v295
    %v1267 = vunpack.c.h.b16 %v295
    %v1268 = vunpack.c.l.b16 %v296
    %v1269 = vunpack.c.h.b16 %v296
    %v1270 = vunpack.c.l.b16 %v297
    %v1271 = vunpack.c.h.b16 %v297
    %v1272 = vunpack.c.l.b16 %v298
    %v1273 = vunpack.c.h.b16 %v298
    %v1274 = vunpack.c.l.b16 %v299
    %v1275 = vunpack.c.h.b16 %v299
    %v1276 = vunpack.c.l.b16 %v300
    %v1277 = vunpack.c.h.b16 %v300
    %v1278 = vunpack.c.l.b16 %v301
    %v1279 = vunpack.c.h.b16 %v301
    %v1280 = vunpack.c.l.b16 %v302
    %v1281 = vunpack.c.h.b16 %v302
    %v1282 = vunpack.c.l.b16 %v303
    %v1283 = vunpack.c.h.b16 %v303
    %v1284 = vunpack.c.l.b16 %v304
    %v1285 = vunpack.c.h.b16 %v304
    %v1286 = vunpack.c.l.b16 %v305
    %v1287 = vunpack.c.h.b16 %v305
    %v1288 = vunpack.c.l.b16 %v306
    %v1289 = vunpack.c.h.b16 %v306
    %v1290 = vunpack.c.l.b16 %v307
    %v1291 = vunpack.c.h.b16 %v307
    %v1292 = vunpack.c.l.b16 %v308
    %v1293 = vunpack.c.h.b16 %v308
    %v1294 = vunpack.c.l.b16 %v309
    %v1295 = vunpack.c.h.b16 %v309
    %v1296 = vunpack.c.l.b16 %v310
    %v1297 = vunpack.c.h.b16 %v310
    %v1298 = vunpack.c.l.b16 %v311
    %v1299 = vunpack.c.h.b16 %v311
    %v1300 = vunpack.c.l.b16 %v312
    %v1301 = vunpack.c.h.b16 %v312
    %v1302 = vunpack.c.l.b16 %v313
    %v1303 = vunpack.c.h.b16 %v313
    %v1304 = vunpack.c.l.b16 %v314
    %v1305 = vunpack.c.h.b16 %v314
    %v1306 = vunpack.c.l.b16 %v315
    %v1307 = vunpack.c.h.b16 %v315
    %v1308 = vunpack.c.l.b16 %v316
    %v1309 = vunpack.c.h.b16 %v316
    %v1310 = vunpack.c.l.b16 %v317
    %v1311 = vunpack.c.h.b16 %v317
    %v1312 = vunpack.c.l.b16 %v318
    %v1313 = vunpack.c.h.b16 %v318
    %v1314 = vunpack.c.l.b16 %v319
    %v1315 = vunpack.c.h.b16 %v319
    %v1316 = vunpack.c.l.b16 %v320
    %v1317 = vunpack.c.h.b16 %v320
    %v1318 = vunpack.c.l.b16 %v321
    %v1319 = vunpack.c.h.b16 %v321
    %v1320 = vunpack.c.l.b16 %v322
    %v1321 = vunpack.c.h.b16 %v322
    %v1322 = vunpack.c.l.b16 %v323
    %v1323 = vunpack.c.h.b16 %v323
    %v1324 = vunpack.c.l.b16 %v324
    %v1325 = vunpack.c.h.b16 %v324
    %v1326 = vunpack.c.l.b16 %v325
    %v1327 = vunpack.c.h.b16 %v325
    %v1328 = vunpack.c.l.b16 %v326
    %v1329 = vunpack.c.h.b16 %v326
    %v1330 = vunpack.c.l.b16 %v327
    %v1331 = vunpack.c.h.b16 %v327
    %v1332 = vunpack.c.l.b16 %v328
    %v1333 = vunpack.c.h.b16 %v328
    %v1334 = vunpack.c.l.b16 %v329
    %v1335 = vunpack.c.h.b16 %v329
    %v1336 = vunpack.c.l.b16 %v330
    %v1337 = vunpack.c.h.b16 %v330
    %v1338 = vunpack.c.l.b16 %v331
    %v1339 = vunpack.c.h.b16 %v331
    %v1340 = vunpack.c.l.b16 %v332
    %v1341 = vunpack.c.h.b16 %v332
    %v1342 = vunpack.c.l.b16 %v333
    %v1343 = vunpack.c.h.b16 %v333
    %v1344 = vunpack.c.l.b16 %v334
    %v1345 = vunpack.c.h.b16 %v334
    %v1346 = vunpack.c.l.b16 %v335
    %v1347 = vunpack.c.h.b16 %v335
    %v1348 = vunpack.c.l.b16 %v336
    %v1349 = vunpack.c.h.b16 %v336
    %v1350 = vunpack.c.l.b16 %v337
    %v1351 = vunpack.c.h.b16 %v337
    %v1352 = vunpack.c.l.b16 %v338
    %v1353 = vunpack.c.h.b16 %v338
    %v1354 = vunpack.c.l.b16 %v339
    %v1355 = vunpack.c.h.b16 %v339
    %v1356 = vunpack.c.l.b16 %v340
    %v1357 = vunpack.c.h.b16 %v340
    %v1358 = vunpack.c.l.b16 %v341
    %v1359 = vunpack.c.h.b16 %v341
    %v1360 = vunpack.c.l.b16 %v342
    %v1361 = vunpack.c.h.b16 %v342
    %v1362 = vunpack.c.l.b16 %v343
    %v1363 = vunpack.c.h.b16 %v343
    %v1364 = vunpack.c.l.b16 %v344
    %v1365 = vunpack.c.h.b16 %v344
    %v1366 = vunpack.c.l.b16 %v345
    %v1367 = vunpack.c.h.b16 %v345
    %v1368 = vunpack.c.l.b16 %v346
    %v1369 = vunpack.c.h.b16 %v346
    %v1370 = vunpack.c.l.b16 %v347
    %v1371 = vunpack.c.h.b16 %v347
    %v1372 = vunpack.c.l.b16 %v348
    %v1373 = vunpack.c.h.b16 %v348
    %v1374 = vpack.c.b16 %v728, %v726
    %v1375 = vpack.c.b16 %v729, %v727
    %v1376 = vpack.c.b16 %v732, %v730
    %v1377 = vpack.c.b16 %v733, %v731
    %v1378 = vpack.c.b16 %v736, %v734
    %v1379 = vpack.c.b16 %v737, %v735
    %v1380 = vpack.c.b16 %v740, %v738
    %v1381 = vpack.c.b16 %v741, %v739
    %v1382 = vpack.c.b16 %v744, %v742
    %v1383 = vpack.c.b16 %v745, %v743
    %v1384 = vpack.c.b16 %v748, %v746
    %v1385 = vpack.c.b16 %v749, %v747
    %v1386 = vpack.c.b16 %v752, %v750
    %v1387 = vpack.c.b16 %v753, %v751
    %v1388 = vpack.c.b16 %v756, %v754
    %v1389 = vpack.c.b16 %v757, %v755
    %v1390 = vpack.c.b16 %v760, %v758
    %v1391 = vpack.c.b16 %v761, %v759
    %v1392 = vpack.c.b16 %v764, %v762
    %v1393 = vpack.c.b16 %v765, %v763
    %v1394 = vpack.c.b16 %v768, %v766
    %v1395 = vpack.c.b16 %v769, %v767
    %v1396 = vpack.c.b16 %v772, %v770
    %v1397 = vpack.c.b16 %v773, %v771
    %v1398 = vpack.c.b16 %v776, %v774
    %v1399 = vpack.c.b16 %v777, %v775
    %v1400 = vpack.c.b16 %v780, %v778
    %v1401 = vpack.c.b16 %v781, %v779
    %v1402 = vpack.c.b16 %v784, %v782
    %v1403 = vpack.c.b16 %v785, %v783
    %v1404 = vpack.c.b16 %v788, %v786
    %v1405 = vpack.c.b16 %v789, %v787
    %v1406 = vpack.c.b16 %v792, %v790
    %v1407 = vpack.c.b16 %v793, %v791
    %v1408 = vpack.c.b16 %v796, %v794
    %v1409 = vpack.c.b16 %v797, %v795
    %v1410 = vpack.c.b16 %v800, %v798
    %v1411 = vpack.c.b16 %v801, %v799
    %v1412 = vpack.c.b16 %v804, %v802
    %v1413 = vpack.c.b16 %v805, %v803
    %v1414 = vpack.c.b16 %v808, %v806
    %v1415 = vpack.c.b16 %v809, %v807
    %v1416 = vpack.c.b16 %v812, %v810
    %v1417 = vpack.c.b16 %v813, %v811
    %v1418 = vpack.c.b16 %v816, %v814
    %v1419 = vpack.c.b16 %v817, %v815
    %v1420 = vpack.c.b16 %v820, %v818
    %v1421 = vpack.c.b16 %v821, %v819
    %v1422 = vpack.c.b16 %v824, %v822
    %v1423 = vpack.c.b16 %v825, %v823
    %v1424 = vpack.c.b16 %v828, %v826
    %v1425 = vpack.c.b16 %v829, %v827
    %v1426 = vpack.c.b16 %v832, %v830
    %v1427 = vpack.c.b16 %v833, %v831
    %v1428 = vpack.c.b16 %v836, %v834
    %v1429 = vpack.c.b16 %v837, %v835
    %v1430 = vpack.c.b16 %v840, %v838
    %v1431 = vpack.c.b16 %v841, %v839
    %v1432 = vpack.c.b16 %v844, %v842
    %v1433 = vpack.c.b16 %v845, %v843
    %v1434 = vpack.c.b16 %v848, %v846
    %v1435 = vpack.c.b16 %v849, %v847
    %v1436 = vpack.c.b16 %v852, %v850
    %v1437 = vpack.c.b16 %v853, %v851
    %v1438 = vpack.c.b16 %v856, %v854
    %v1439 = vpack.c.b16 %v857, %v855
    %v1440 = vpack.c.b16 %v860, %v858
    %v1441 = vpack.c.b16 %v861, %v859
    %v1442 = vpack.c.b16 %v864, %v862
    %v1443 = vpack.c.b16 %v865, %v863
    %v1444 = vpack.c.b16 %v868, %v866
    %v1445 = vpack.c.b16 %v869, %v867
    %v1446 = vpack.c.b16 %v872, %v870
    %v1447 = vpack.c.b16 %v873, %v871
    %v1448 = vpack.c.b16 %v876, %v874
    %v1449 = vpack.c.b16 %v877, %v875
    %v1450 = vpack.c.b16 %v880, %v878
    %v1451 = vpack.c.b16 %v881, %v879
    %v1452 = vpack.c.b16 %v884, %v882
    %v1453 = vpack.c.b16 %v885, %v883
    %v1454 = vpack.c.b16 %v888, %v886
    %v1455 = vpack.c.b16 %v889, %v887
    %v1456 = vpack.c.b16 %v892, %v890
    %v1457 = vpack.c.b16 %v893, %v891
    %v1458 = vpack.c.b16 %v896, %v894
    %v1459 = vpack.c.b16 %v897, %v895
    %v1460 = vpack.c.b16 %v900, %v898
    %v1461 = vpack.c.b16 %v901, %v899
    %v1462 = vpack.c.b16 %v904, %v902
    %v1463 = vpack.c.b16 %v905, %v903
    %v1464 = vpack.c.b16 %v908, %v906
    %v1465 = vpack.c.b16 %v909, %v907
    %v1466 = vpack.c.b16 %v912, %v910
    %v1467 = vpack.c.b16 %v913, %v911
    %v1468 = vpack.c.b16 %v916, %v914
    %v1469 = vpack.c.b16 %v917, %v915
    %v1470 = vpack.c.b16 %v920, %v918
    %v1471 = vpack.c.b16 %v921, %v919
    %v1472 = vpack.c.b16 %v924, %v922
    %v1473 = vpack.c.b16 %v925, %v923
    %v1474 = vpack.c.b16 %v928, %v926
    %v1475 = vpack.c.b16 %v929, %v927
    %v1476 = vpack.c.b16 %v932, %v930
    %v1477 = vpack.c.b16 %v933, %v931
    %v1478 = vpack.c.b16 %v936, %v934
    %v1479 = vpack.c.b16 %v937, %v935
    %v1480 = vpack.c.b16 %v940, %v938
    %v1481 = vpack.c.b16 %v941, %v939
    %v1482 = vpack.c.b16 %v944, %v942
    %v1483 = vpack.c.b16 %v945, %v943
    %v1484 = vpack.c.b16 %v948, %v946
    %v1485 = vpack.c.b16 %v949, %v947
    %v1486 = vpack.c.b16 %v952, %v950
    %v1487 = vpack.c.b16 %v953, %v951
    %v1488 = vpack.c.b16 %v956, %v954
    %v1489 = vpack.c.b16 %v957, %v955
    %v1490 = vpack.c.b16 %v960, %v958
    %v1491 = vpack.c.b16 %v961, %v959
    %v1492 = vpack.c.b16 %v964, %v962
    %v1493 = vpack.c.b16 %v965, %v963
    %v1494 = vpack.c.b16 %v968, %v966
    %v1495 = vpack.c.b16 %v969, %v967
    %v1496 = vpack.c.b16 %v972, %v970
    %v1497 = vpack.c.b16 %v973, %v971
    %v1498 = vpack.c.b16 %v976, %v974
    %v1499 = vpack.c.b16 %v977, %v975
    %v1500 = vpack.c.b16 %v980, %v978
    %v1501 = vpack.c.b16 %v981, %v979
    %v1502 = vpack.c.b16 %v984, %v982
    %v1503 = vpack.c.b16 %v985, %v983
    %v1504 = vpack.c.b16 %v988, %v986
    %v1505 = vpack.c.b16 %v989, %v987
    %v1506 = vpack.c.b16 %v992, %v990
    %v1507 = vpack.c.b16 %v993, %v991
    %v1508 = vpack.c.b16 %v996, %v994
    %v1509 = vpack.c.b16 %v997, %v995
    %v1510 = vpack.c.b16 %v1000, %v998
    %v1511 = vpack.c.b16 %v1001, %v999
    %v1512 = vpack.c.b16 %v1004, %v1002
    %v1513 = vpack.c.b16 %v1005, %v1003
    %v1514 = vpack.c.b16 %v1008, %v1006
    %v1515 = vpack.c.b16 %v1009, %v1007
    %v1516 = vpack.c.b16 %v1012, %v1010
    %v1517 = vpack.c.b16 %v1013, %v1011
    %v1518 = vpack.c.b16 %v1016, %v1014
    %v1519 = vpack.c.b16 %v1017, %v1015
    %v1520 = vpack.c.b16 %v1020, %v1018
    %v1521 = vpack.c.b16 %v1021, %v1019
    %v1522 = vpack.c.b16 %v1024, %v1022
    %v1523 = vpack.c.b16 %v1025, %v1023
    %v1524 = vpack.c.b16 %v1028, %v1026
    %v1525 = vpack.c.b16 %v1029, %v1027
    %v1526 = vpack.c.b16 %v1032, %v1030
    %v1527 = vpack.c.b16 %v1033, %v1031
    %v1528 = vpack.c.b16 %v1036, %v1034
    %v1529 = vpack.c.b16 %v1037, %v1035
    %v1530 = vpack.c.b16 %v1040, %v1038
    %v1531 = vpack.c.b16 %v1041, %v1039
    %v1532 = vpack.c.b16 %v1044, %v1042
    %v1533 = vpack.c.b16 %v1045, %v1043
    %v1534 = vpack.c.b16 %v1048, %v1046
    %v1535 = vpack.c.b16 %v1049, %v1047
    %v1536 = vpack.c.b16 %v1052, %v1050
    %v1537 = vpack.c.b16 %v1053, %v1051
    %v1538 = vpack.c.b16 %v1056, %v1054
    %v1539 = vpack.c.b16 %v1057, %v1055
    %v1540 = vpack.c.b16 %v1060, %v1058
    %v1541 = vpack.c.b16 %v1061, %v1059
    %v1542 = vpack.c.b16 %v1064, %v1062
    %v1543 = vpack.c.b16 %v1065, %v1063
    %v1544 = vpack.c.b16 %v1068, %v1066
    %v1545 = vpack.c.b16 %v1069, %v1067
    %v1546 = vpack.c.b16 %v1072, %v1070
    %v1547 = vpack.c.b16 %v1073, %v1071
    %v1548 = vpack.c.b16 %v1076, %v1074
    %v1549 = vpack.c.b16 %v1077, %v1075
    %v1550 = vpack.c.b16 %v1080, %v1078
    %v1551 = vpack.c.b16 %v1081, %v1079
    %v1552 = vpack.c.b16 %v1084, %v1082
    %v1553 = vpack.c.b16 %v1085, %v1083
    %v1554 = vpack.c.b16 %v1088, %v1086
    %v1555 = vpack.c.b16 %v1089, %v1087
    %v1556 = vpack.c.b16 %v1092, %v1090
    %v1557 = vpack.c.b16 %v1093, %v1091
    %v1558 = vpack.c.b16 %v1096, %v1094
    %v1559 = vpack.c.b16 %v1097, %v1095
    %v1560 = vpack.c.b16 %v1100, %v1098
    %v1561 = vpack.c.b16 %v1101, %v1099
    %v1562 = vpack.c.b16 %v1104, %v1102
    %v1563 = vpack.c.b16 %v1105, %v1103
    %v1564 = vpack.c.b16 %v1108, %v1106
    %v1565 = vpack.c.b16 %v1109, %v1107
    %v1566 = vpack.c.b16 %v1112, %v1110
    %v1567 = vpack.c.b16 %v1113, %v1111
    %v1568 = vpack.c.b16 %v1116, %v1114
    %v1569 = vpack.c.b16 %v1117, %v1115
    %v1570 = vpack.c.b16 %v1120, %v1118
    %v1571 = vpack.c.b16 %v1121, %v1119
    %v1572 = vpack.c.b16 %v1124, %v1122
    %v1573 = vpack.c.b16 %v1125, %v1123
    %v1574 = vpack.c.b16 %v1128, %v1126
    %v1575 = vpack.c.b16 %v1129, %v1127
    %v1576 = vpack.c.b16 %v1132, %v1130
    %v1577 = vpack.c.b16 %v1133, %v1131
    %v1578 = vpack.c.b16 %v1136, %v1134
    %v1579 = vpack.c.b16 %v1137, %v1135
    %v1580 = vpack.c.b16 %v1140, %v1138
    %v1581 = vpack.c.b16 %v1141, %v1139
    %v1582 = vpack.c.b16 %v1144, %v1142
    %v1583 = vpack.c.b16 %v1145, %v1143
    %v1584 = vpack.c.b16 %v1148, %v1146
    %v1585 = vpack.c.b16 %v1149, %v1147
    %v1586 = vpack.c.b16 %v1152, %v1150
    %v1587 = vpack.c.b16 %v1153, %v1151
    %v1588 = vpack.c.b16 %v1156, %v1154
    %v1589 = vpack.c.b16 %v1157, %v1155
    %v1590 = vpack.c.b16 %v1160, %v1158
    %v1591 = vpack.c.b16 %v1161, %v1159
    %v1592 = vpack.c.b16 %v1164, %v1162
    %v1593 = vpack.c.b16 %v1165, %v1163
    %v1594 = vpack.c.b16 %v1168, %v1166
    %v1595 = vpack.c.b16 %v1169, %v1167
    %v1596 = vpack.c.b16 %v1172, %v1170
    %v1597 = vpack.c.b16 %v1173, %v1171
    %v1598 = vpack.c.b16 %v1176, %v1174
    %v1599 = vpack.c.b16 %v1177, %v1175
    %v1600 = vpack.c.b16 %v1180, %v1178
    %v1601 = vpack.c.b16 %v1181, %v1179
    %v1602 = vpack.c.b16 %v1184, %v1182
    %v1603 = vpack.c.b16 %v1185, %v1183
    %v1604 = vpack.c.b16 %v1188, %v1186
    %v1605 = vpack.c.b16 %v1189, %v1187
    %v1606 = vpack.c.b16 %v1192, %v1190
    %v1607 = vpack.c.b16 %v1193, %v1191
    %v1608 = vpack.c.b16 %v1196, %v1194
    %v1609 = vpack.c.b16 %v1197, %v1195
    %v1610 = vpack.c.b16 %v1200, %v1198
    %v1611 = vpack.c.b16 %v1201, %v1199
    %v1612 = vpack.c.b16 %v1204, %v1202
    %v1613 = vpack.c.b16 %v1205, %v1203
    %v1614 = vpack.c.b16 %v1208, %v1206
    %v1615 = vpack.c.b16 %v1209, %v1207
    %v1616 = vpack.c.b16 %v1212, %v1210
    %v1617 = vpack.c.b16 %v1213, %v1211
    %v1618 = vpack.c.b16 %v1216, %v1214
    %v1619 = vpack.c.b16 %v1217, %v1215
    %v1620 = vpack.c.b16 %v1220, %v1218
    %v1621 = vpack.c.b16 %v1221, %v1219
    %v1622 = vpack.c.b16 %v1224, %v1222
    %v1623 = vpack.c.b16 %v1225, %v1223
    %v1624 = vpack.c.b16 %v1228, %v1226
    %v1625 = vpack.c.b16 %v1229, %v1227
    %v1626 = vpack.c.b16 %v1232, %v1230
    %v1627 = vpack.c.b16 %v1233, %v1231
    %v1628 = vpack.c.b16 %v1236, %v1234
    %v1629 = vpack.c.b16 %v1237, %v1235
    %v1630 = vpack.c.b16 %v1240, %v1238
    %v1631 = vpack.c.b16 %v1241, %v1239
    %v1632 = vpack.c.b16 %v1244, %v1242
    %v1633 = vpack.c.b16 %v1245, %v1243
    %v1634 = vpack.c.b16 %v1248, %v1246
    %v1635 = vpack.c.b16 %v1249, %v1247
    %v1636 = vpack.c.b16 %v1252, %v1250
    %v1637 = vpack.c.b16 %v1253, %v1251
    %v1638 = vpack.c.b16 %v1256, %v1254
    %v1639 = vpack.c.b16 %v1257, %v1255
    %v1640 = vpack.c.b16 %v1260, %v1258
    %v1641 = vpack.c.b16 %v1261, %v1259
    %v1642 = vpack.c.b16 %v1264, %v1262
    %v1643 = vpack.c.b16 %v1265, %v1263
    %v1644 = vpack.c.b16 %v1268, %v1266
    %v1645 = vpack.c.b16 %v1269, %v1267
    %v1646 = vpack.c.b16 %v1272, %v1270
    %v1647 = vpack.c.b16 %v1273, %v1271
    %v1648 = vpack.c.b16 %v1276, %v1274
    %v1649 = vpack.c.b16 %v1277, %v1275
    %v1650 = vpack.c.b16 %v1280, %v1278
    %v1651 = vpack.c.b16 %v1281, %v1279
    %v1652 = vpack.c.b16 %v1284, %v1282
    %v1653 = vpack.c.b16 %v1285, %v1283
    %v1654 = vpack.c.b16 %v1288, %v1286
    %v1655 = vpack.c.b16 %v1289, %v1287
    %v1656 = vpack.c.b16 %v1292, %v1290
    %v1657 = vpack.c.b16 %v1293, %v1291
    %v1658 = vpack.c.b16 %v1296, %v1294
    %v1659 = vpack.c.b16 %v1297, %v1295
    %v1660 = vpack.c.b16 %v1300, %v1298
    %v1661 = vpack.c.b16 %v1301, %v1299
    %v1662 = vpack.c.b16 %v1304, %v1302
    %v1663 = vpack.c.b16 %v1305, %v1303
    %v1664 = vpack.c.b16 %v1308, %v1306
    %v1665 = vpack.c.b16 %v1309, %v1307
    %v1666 = vpack.c.b16 %v1312, %v1310
    %v1667 = vpack.c.b16 %v1313, %v1311
    %v1668 = vpack.c.b16 %v1316, %v1314
    %v1669 = vpack.c.b16 %v1317, %v1315
    %v1670 = vpack.c.b16 %v1320, %v1318
    %v1671 = vpack.c.b16 %v1321, %v1319
    %v1672 = vpack.c.b16 %v1324, %v1322
    %v1673 = vpack.c.b16 %v1325, %v1323
    %v1674 = vpack.c.b16 %v1328, %v1326
    %v1675 = vpack.c.b16 %v1329, %v1327
    %v1676 = vpack.c.b16 %v1332, %v1330
    %v1677 = vpack.c.b16 %v1333, %v1331
    %v1678 = vpack.c.b16 %v1336, %v1334
    %v1679 = vpack.c.b16 %v1337, %v1335
    %v1680 = vpack.c.b16 %v1340, %v1338
    %v1681 = vpack.c.b16 %v1341, %v1339
    %v1682 = vpack.c.b16 %v1344, %v1342
    %v1683 = vpack.c.b16 %v1345, %v1343
    %v1684 = vpack.c.b16 %v1348, %v1346
    %v1685 = vpack.c.b16 %v1349, %v1347
    %v1686 = vpack.c.b16 %v1352, %v1350
    %v1687 = vpack.c.b16 %v1353, %v1351
    %v1688 = vpack.c.b16 %v1356, %v1354
    %v1689 = vpack.c.b16 %v1357, %v1355
    %v1690 = vpack.c.b16 %v1360, %v1358
    %v1691 = vpack.c.b16 %v1361, %v1359
    %v1692 = vpack.c.b16 %v1364, %v1362
    %v1693 = vpack.c.b16 %v1365, %v1363
    %v1694 = vpack.c.b16 %v1368, %v1366
    %v1695 = vpack.c.b16 %v1369, %v1367
    %v1696 = vpack.c.b16 %v1372, %v1370
    %v1697 = vpack.c.b16 %v1373, %v1371
    %vm2022 = vcmask 261120
    %v2023 = vsel %vm2022, %v381, 0
    %2025 = vmatpush.bf16.msra.mxu0 %v1388
    %2026 = vmatpush.bf16.msra.mxu0 %v1386
    %2027 = vmatpush.bf16.msra.mxu0 %v1384
    %2028 = vmatpush.bf16.msra.mxu0 %v1382
    %2029 = vmatpush.bf16.msra.mxu0 %v1380
    %2030 = vmatpush.bf16.msra.mxu0 %v1378
    %2031 = vmatpush.bf16.msra.mxu0 %v1376
    %2032 = vmatpush.bf16.msra.mxu0 %v1374
    %2033 = vmatmul.bf16.gmra.mxu0 %v357
    %v2034 = vpop.f32.mrf.mxu0
    %v2035 = vadd.f32 %v351, %v2034
    %v2036 = vpop.f32.mrf.mxu0
    %2037 = vdwg.mxu0
    %2038 = vmatpush.bf16.msra.mxu0 %v1404
    %2039 = vmatpush.bf16.msra.mxu0 %v1402
    %2040 = vmatpush.bf16.msra.mxu0 %v1400
    %2041 = vmatpush.bf16.msra.mxu0 %v1398
    %2042 = vmatpush.bf16.msra.mxu0 %v1396
    %2043 = vmatpush.bf16.msra.mxu0 %v1394
    %2044 = vmatpush.bf16.msra.mxu0 %v1392
    %2045 = vmatpush.bf16.msra.mxu0 %v1390
    %2046 = vmatmul.bf16.gmra.mxu0 %v358
    %v2047 = vpop.f32.mrf.mxu0
    %v2048 = vadd.f32 %v2035, %v2047
    %v2049 = vpop.f32.mrf.mxu0
    %2050 = vdwg.mxu0
    %2051 = vmatpush.bf16.msra.mxu0 %v1420
    %2052 = vmatpush.bf16.msra.mxu0 %v1418
    %2053 = vmatpush.bf16.msra.mxu0 %v1416
    %2054 = vmatpush.bf16.msra.mxu0 %v1414
    %2055 = vmatpush.bf16.msra.mxu0 %v1412
    %2056 = vmatpush.bf16.msra.mxu0 %v1410
    %2057 = vmatpush.bf16.msra.mxu0 %v1408
    %2058 = vmatpush.bf16.msra.mxu0 %v1406
    %2059 = vmatmul.bf16.gmra.mxu0 %v359
    %v2060 = vpop.f32.mrf.mxu0
    %v2061 = vadd.f32 %v2048, %v2060
    %v2062 = vpop.f32.mrf.mxu0
    %2063 = vdwg.mxu0
    %2064 = vmatpush.bf16.msra.mxu0 %v1436
    %2065 = vmatpush.bf16.msra.mxu0 %v1434
    %2066 = vmatpush.bf16.msra.mxu0 %v1432
    %2067 = vmatpush.bf16.msra.mxu0 %v1430
    %2068 = vmatpush.bf16.msra.mxu0 %v1428
    %2069 = vmatpush.bf16.msra.mxu0 %v1426
    %2070 = vmatpush.bf16.msra.mxu0 %v1424
    %2071 = vmatpush.bf16.msra.mxu0 %v1422
    %2072 = vmatmul.bf16.gmra.mxu0 %v360
    %v2073 = vpop.f32.mrf.mxu0
    %v2074 = vadd.f32 %v2061, %v2073
    %v2075 = vpop.f32.mrf.mxu0
    %2076 = vdwg.mxu0
    %2077 = vmatpush.bf16.msra.mxu0 %v1452
    %2078 = vmatpush.bf16.msra.mxu0 %v1450
    %2079 = vmatpush.bf16.msra.mxu0 %v1448
    %2080 = vmatpush.bf16.msra.mxu0 %v1446
    %2081 = vmatpush.bf16.msra.mxu0 %v1444
    %2082 = vmatpush.bf16.msra.mxu0 %v1442
    %2083 = vmatpush.bf16.msra.mxu0 %v1440
    %2084 = vmatpush.bf16.msra.mxu0 %v1438
    %2085 = vmatmul.bf16.gmra.mxu0 %v361
    %v2086 = vpop.f32.mrf.mxu0
    %v2087 = vadd.f32 %v2074, %v2086
    %v2088 = vpop.f32.mrf.mxu0
    %2089 = vdwg.mxu0
    %2090 = vmatpush.bf16.msra.mxu0 %v1468
    %2091 = vmatpush.bf16.msra.mxu0 %v1466
    %2092 = vmatpush.bf16.msra.mxu0 %v1464
    %2093 = vmatpush.bf16.msra.mxu0 %v1462
    %2094 = vmatpush.bf16.msra.mxu0 %v1460
    %2095 = vmatpush.bf16.msra.mxu0 %v1458
    %2096 = vmatpush.bf16.msra.mxu0 %v1456
    %2097 = vmatpush.bf16.msra.mxu0 %v1454
    %2098 = vmatmul.bf16.gmra.mxu0 %v362
    %v2099 = vpop.f32.mrf.mxu0
    %v2100 = vadd.f32 %v2087, %v2099
    %v2101 = vpop.f32.mrf.mxu0
    %2102 = vdwg.mxu0
    %2103 = vmatpush.bf16.msra.mxu0 %v1484
    %2104 = vmatpush.bf16.msra.mxu0 %v1482
    %2105 = vmatpush.bf16.msra.mxu0 %v1480
    %2106 = vmatpush.bf16.msra.mxu0 %v1478
    %2107 = vmatpush.bf16.msra.mxu0 %v1476
    %2108 = vmatpush.bf16.msra.mxu0 %v1474
    %2109 = vmatpush.bf16.msra.mxu0 %v1472
    %2110 = vmatpush.bf16.msra.mxu0 %v1470
    %2111 = vmatmul.bf16.gmra.mxu0 %v363
    %v2112 = vpop.f32.mrf.mxu0
    %v2113 = vadd.f32 %v2100, %v2112
    %v2114 = vpop.f32.mrf.mxu0
    %2115 = vdwg.mxu0
    %2116 = vmatpush.bf16.msra.mxu0 %v1500
    %2117 = vmatpush.bf16.msra.mxu0 %v1498
    %2118 = vmatpush.bf16.msra.mxu0 %v1496
    %2119 = vmatpush.bf16.msra.mxu0 %v1494
    %2120 = vmatpush.bf16.msra.mxu0 %v1492
    %2121 = vmatpush.bf16.msra.mxu0 %v1490
    %2122 = vmatpush.bf16.msra.mxu0 %v1488
    %2123 = vmatpush.bf16.msra.mxu0 %v1486
    %2124 = vmatmul.bf16.gmra.mxu0 %v364
    %v2125 = vpop.f32.mrf.mxu0
    %v2126 = vadd.f32 %v2113, %v2125
    %v2127 = vpop.f32.mrf.mxu0
    %2128 = vdwg.mxu0
    %2129 = vmatpush.bf16.msra.mxu0 %v1516
    %2130 = vmatpush.bf16.msra.mxu0 %v1514
    %2131 = vmatpush.bf16.msra.mxu0 %v1512
    %2132 = vmatpush.bf16.msra.mxu0 %v1510
    %2133 = vmatpush.bf16.msra.mxu0 %v1508
    %2134 = vmatpush.bf16.msra.mxu0 %v1506
    %2135 = vmatpush.bf16.msra.mxu0 %v1504
    %2136 = vmatpush.bf16.msra.mxu0 %v1502
    %2137 = vmatmul.bf16.gmra.mxu0 %v367
    %v2138 = vpop.f32.mrf.mxu0
    %v2139 = vadd.f32 %v2126, %v2138
    %v2140 = vpop.f32.mrf.mxu0
    %2141 = vdwg.mxu0
    %2142 = vmatpush.bf16.msra.mxu0 %v1532
    %2143 = vmatpush.bf16.msra.mxu0 %v1530
    %2144 = vmatpush.bf16.msra.mxu0 %v1528
    %2145 = vmatpush.bf16.msra.mxu0 %v1526
    %2146 = vmatpush.bf16.msra.mxu0 %v1524
    %2147 = vmatpush.bf16.msra.mxu0 %v1522
    %2148 = vmatpush.bf16.msra.mxu0 %v1520
    %2149 = vmatpush.bf16.msra.mxu0 %v1518
    %2150 = vmatmul.bf16.gmra.mxu0 %v368
    %v2151 = vpop.f32.mrf.mxu0
    %v2152 = vadd.f32 %v2139, %v2151
    %v2153 = vpop.f32.mrf.mxu0
    %2154 = vdwg.mxu0
    %2155 = vmatpush.bf16.msra.mxu0 %v1548
    %2156 = vmatpush.bf16.msra.mxu0 %v1546
    %2157 = vmatpush.bf16.msra.mxu0 %v1544
    %2158 = vmatpush.bf16.msra.mxu0 %v1542
    %2159 = vmatpush.bf16.msra.mxu0 %v1540
    %2160 = vmatpush.bf16.msra.mxu0 %v1538
    %2161 = vmatpush.bf16.msra.mxu0 %v1536
    %2162 = vmatpush.bf16.msra.mxu0 %v1534
    %2163 = vmatmul.bf16.gmra.mxu0 %v369
    %v2164 = vpop.f32.mrf.mxu0
    %v2165 = vadd.f32 %v2152, %v2164
    %v2166 = vpop.f32.mrf.mxu0
    %2167 = vdwg.mxu0
    %2168 = vmatpush.bf16.msra.mxu0 %v1564
    %2169 = vmatpush.bf16.msra.mxu0 %v1562
    %2170 = vmatpush.bf16.msra.mxu0 %v1560
    %2171 = vmatpush.bf16.msra.mxu0 %v1558
    %2172 = vmatpush.bf16.msra.mxu0 %v1556
    %2173 = vmatpush.bf16.msra.mxu0 %v1554
    %2174 = vmatpush.bf16.msra.mxu0 %v1552
    %2175 = vmatpush.bf16.msra.mxu0 %v1550
    %2176 = vmatmul.bf16.gmra.mxu0 %v370
    %v2177 = vpop.f32.mrf.mxu0
    %v2178 = vadd.f32 %v2165, %v2177
    %v2179 = vpop.f32.mrf.mxu0
    %2180 = vdwg.mxu0
    %2181 = vmatpush.bf16.msra.mxu0 %v1580
    %2182 = vmatpush.bf16.msra.mxu0 %v1578
    %2183 = vmatpush.bf16.msra.mxu0 %v1576
    %2184 = vmatpush.bf16.msra.mxu0 %v1574
    %2185 = vmatpush.bf16.msra.mxu0 %v1572
    %2186 = vmatpush.bf16.msra.mxu0 %v1570
    %2187 = vmatpush.bf16.msra.mxu0 %v1568
    %2188 = vmatpush.bf16.msra.mxu0 %v1566
    %2189 = vmatmul.bf16.gmra.mxu0 %v371
    %v2190 = vpop.f32.mrf.mxu0
    %v2191 = vadd.f32 %v2178, %v2190
    %v2192 = vpop.f32.mrf.mxu0
    %2193 = vdwg.mxu0
    %2194 = vmatpush.bf16.msra.mxu0 %v1596
    %2195 = vmatpush.bf16.msra.mxu0 %v1594
    %2196 = vmatpush.bf16.msra.mxu0 %v1592
    %2197 = vmatpush.bf16.msra.mxu0 %v1590
    %2198 = vmatpush.bf16.msra.mxu0 %v1588
    %2199 = vmatpush.bf16.msra.mxu0 %v1586
    %2200 = vmatpush.bf16.msra.mxu0 %v1584
    %2201 = vmatpush.bf16.msra.mxu0 %v1582
    %2202 = vmatmul.bf16.gmra.mxu0 %v372
    %v2203 = vpop.f32.mrf.mxu0
    %v2204 = vadd.f32 %v2191, %v2203
    %v2205 = vpop.f32.mrf.mxu0
    %2206 = vdwg.mxu0
    %2207 = vmatpush.bf16.msra.mxu0 %v1612
    %2208 = vmatpush.bf16.msra.mxu0 %v1610
    %2209 = vmatpush.bf16.msra.mxu0 %v1608
    %2210 = vmatpush.bf16.msra.mxu0 %v1606
    %2211 = vmatpush.bf16.msra.mxu0 %v1604
    %2212 = vmatpush.bf16.msra.mxu0 %v1602
    %2213 = vmatpush.bf16.msra.mxu0 %v1600
    %2214 = vmatpush.bf16.msra.mxu0 %v1598
    %2215 = vmatmul.bf16.gmra.mxu0 %v373
    %v2216 = vpop.f32.mrf.mxu0
    %v2217 = vadd.f32 %v2204, %v2216
    %v2218 = vpop.f32.mrf.mxu0
    %2219 = vdwg.mxu0
    %2220 = vmatpush.bf16.msra.mxu0 %v1628
    %2221 = vmatpush.bf16.msra.mxu0 %v1626
    %2222 = vmatpush.bf16.msra.mxu0 %v1624
    %2223 = vmatpush.bf16.msra.mxu0 %v1622
    %2224 = vmatpush.bf16.msra.mxu0 %v1620
    %2225 = vmatpush.bf16.msra.mxu0 %v1618
    %2226 = vmatpush.bf16.msra.mxu0 %v1616
    %2227 = vmatpush.bf16.msra.mxu0 %v1614
    %2228 = vmatmul.bf16.gmra.mxu0 %v374
    %v2229 = vpop.f32.mrf.mxu0
    %v2230 = vadd.f32 %v2217, %v2229
    %v2231 = vpop.f32.mrf.mxu0
    %2232 = vdwg.mxu0
    %2233 = vmatpush.bf16.msra.mxu0 %v1644
    %2234 = vmatpush.bf16.msra.mxu0 %v1642
    %2235 = vmatpush.bf16.msra.mxu0 %v1640
    %2236 = vmatpush.bf16.msra.mxu0 %v1638
    %2237 = vmatpush.bf16.msra.mxu0 %v1636
    %2238 = vmatpush.bf16.msra.mxu0 %v1634
    %2239 = vmatpush.bf16.msra.mxu0 %v1632
    %2240 = vmatpush.bf16.msra.mxu0 %v1630
    %2241 = vmatmul.bf16.gmra.mxu0 %v377
    %v2242 = vpop.f32.mrf.mxu0
    %v2243 = vadd.f32 %v2230, %v2242
    %v2244 = vpop.f32.mrf.mxu0
    %2245 = vdwg.mxu0
    %2246 = vmatpush.bf16.msra.mxu0 %v1660
    %2247 = vmatpush.bf16.msra.mxu0 %v1658
    %2248 = vmatpush.bf16.msra.mxu0 %v1656
    %2249 = vmatpush.bf16.msra.mxu0 %v1654
    %2250 = vmatpush.bf16.msra.mxu0 %v1652
    %2251 = vmatpush.bf16.msra.mxu0 %v1650
    %2252 = vmatpush.bf16.msra.mxu0 %v1648
    %2253 = vmatpush.bf16.msra.mxu0 %v1646
    %2254 = vmatmul.bf16.gmra.mxu0 %v378
    %v2255 = vpop.f32.mrf.mxu0
    %v2256 = vadd.f32 %v2243, %v2255
    %v2257 = vpop.f32.mrf.mxu0
    %2258 = vdwg.mxu0
    %2259 = vmatpush.bf16.msra.mxu0 %v1676
    %2260 = vmatpush.bf16.msra.mxu0 %v1674
    %2261 = vmatpush.bf16.msra.mxu0 %v1672
    %2262 = vmatpush.bf16.msra.mxu0 %v1670
    %2263 = vmatpush.bf16.msra.mxu0 %v1668
    %2264 = vmatpush.bf16.msra.mxu0 %v1666
    %2265 = vmatpush.bf16.msra.mxu0 %v1664
    %2266 = vmatpush.bf16.msra.mxu0 %v1662
    %2267 = vmatmul.bf16.gmra.mxu0 %v379
    %v2268 = vpop.f32.mrf.mxu0
    %v2269 = vadd.f32 %v2256, %v2268
    %v2270 = vpop.f32.mrf.mxu0
    %2271 = vdwg.mxu0
    %2272 = vmatpush.bf16.msra.mxu0 %v1692
    %2273 = vmatpush.bf16.msra.mxu0 %v1690
    %2274 = vmatpush.bf16.msra.mxu0 %v1688
    %2275 = vmatpush.bf16.msra.mxu0 %v1686
    %2276 = vmatpush.bf16.msra.mxu0 %v1684
    %2277 = vmatpush.bf16.msra.mxu0 %v1682
    %2278 = vmatpush.bf16.msra.mxu0 %v1680
    %2279 = vmatpush.bf16.msra.mxu0 %v1678
    %2280 = vmatmul.bf16.gmra.mxu0 %v380
    %v2281 = vpop.f32.mrf.mxu0
    %v2282 = vadd.f32 %v2269, %v2281
    %v2283 = vpop.f32.mrf.mxu0
    %2284 = vdwg.mxu0
    %2285 = vmatpush.bf16.msra.mxu0 0
    %2286 = vmatpush.bf16.msra.mxu0 0
    %2287 = vmatpush.bf16.msra.mxu0 0
    %2288 = vmatpush.bf16.msra.mxu0 0
    %2289 = vmatpush.bf16.msra.mxu0 0
    %2290 = vmatpush.bf16.msra.mxu0 0
    %2291 = vmatpush.bf16.msra.mxu0 %v1696
    %2292 = vmatpush.bf16.msra.mxu0 %v1694
    %2293 = vmatmul.bf16.gmra.mxu0 %v2023
    %v2294 = vpop.f32.mrf.mxu0
    %v2295 = vadd.f32 %v2282, %v2294
    %v2296 = vpop.f32.mrf.mxu0
    %2297 = vdwg.mxu0
    %2298 = vmatpush.bf16.msra.mxu0 %v1389
    %2299 = vmatpush.bf16.msra.mxu0 %v1387
    %2300 = vmatpush.bf16.msra.mxu0 %v1385
    %2301 = vmatpush.bf16.msra.mxu0 %v1383
    %2302 = vmatpush.bf16.msra.mxu0 %v1381
    %2303 = vmatpush.bf16.msra.mxu0 %v1379
    %2304 = vmatpush.bf16.msra.mxu0 %v1377
    %2305 = vmatpush.bf16.msra.mxu0 %v1375
    %2306 = vmatmul.bf16.gmra.mxu0 %v357
    %v2307 = vpop.f32.mrf.mxu0
    %v2308 = vadd.f32 %v352, %v2307
    %v2309 = vpop.f32.mrf.mxu0
    %2310 = vdwg.mxu0
    %2311 = vmatpush.bf16.msra.mxu0 %v1405
    %2312 = vmatpush.bf16.msra.mxu0 %v1403
    %2313 = vmatpush.bf16.msra.mxu0 %v1401
    %2314 = vmatpush.bf16.msra.mxu0 %v1399
    %2315 = vmatpush.bf16.msra.mxu0 %v1397
    %2316 = vmatpush.bf16.msra.mxu0 %v1395
    %2317 = vmatpush.bf16.msra.mxu0 %v1393
    %2318 = vmatpush.bf16.msra.mxu0 %v1391
    %2319 = vmatmul.bf16.gmra.mxu0 %v358
    %v2320 = vpop.f32.mrf.mxu0
    %v2321 = vadd.f32 %v2308, %v2320
    %v2322 = vpop.f32.mrf.mxu0
    %2323 = vdwg.mxu0
    %2324 = vmatpush.bf16.msra.mxu0 %v1421
    %2325 = vmatpush.bf16.msra.mxu0 %v1419
    %2326 = vmatpush.bf16.msra.mxu0 %v1417
    %2327 = vmatpush.bf16.msra.mxu0 %v1415
    %2328 = vmatpush.bf16.msra.mxu0 %v1413
    %2329 = vmatpush.bf16.msra.mxu0 %v1411
    %2330 = vmatpush.bf16.msra.mxu0 %v1409
    %2331 = vmatpush.bf16.msra.mxu0 %v1407
    %2332 = vmatmul.bf16.gmra.mxu0 %v359
    %v2333 = vpop.f32.mrf.mxu0
    %v2334 = vadd.f32 %v2321, %v2333
    %v2335 = vpop.f32.mrf.mxu0
    %2336 = vdwg.mxu0
    %2337 = vmatpush.bf16.msra.mxu0 %v1437
    %2338 = vmatpush.bf16.msra.mxu0 %v1435
    %2339 = vmatpush.bf16.msra.mxu0 %v1433
    %2340 = vmatpush.bf16.msra.mxu0 %v1431
    %2341 = vmatpush.bf16.msra.mxu0 %v1429
    %2342 = vmatpush.bf16.msra.mxu0 %v1427
    %2343 = vmatpush.bf16.msra.mxu0 %v1425
    %2344 = vmatpush.bf16.msra.mxu0 %v1423
    %2345 = vmatmul.bf16.gmra.mxu0 %v360
    %v2346 = vpop.f32.mrf.mxu0
    %v2347 = vadd.f32 %v2334, %v2346
    %v2348 = vpop.f32.mrf.mxu0
    %2349 = vdwg.mxu0
    %2350 = vmatpush.bf16.msra.mxu0 %v1453
    %2351 = vmatpush.bf16.msra.mxu0 %v1451
    %2352 = vmatpush.bf16.msra.mxu0 %v1449
    %2353 = vmatpush.bf16.msra.mxu0 %v1447
    %2354 = vmatpush.bf16.msra.mxu0 %v1445
    %2355 = vmatpush.bf16.msra.mxu0 %v1443
    %2356 = vmatpush.bf16.msra.mxu0 %v1441
    %2357 = vmatpush.bf16.msra.mxu0 %v1439
    %2358 = vmatmul.bf16.gmra.mxu0 %v361
    %v2359 = vpop.f32.mrf.mxu0
    %v2360 = vadd.f32 %v2347, %v2359
    %v2361 = vpop.f32.mrf.mxu0
    %2362 = vdwg.mxu0
    %2363 = vmatpush.bf16.msra.mxu0 %v1469
    %2364 = vmatpush.bf16.msra.mxu0 %v1467
    %2365 = vmatpush.bf16.msra.mxu0 %v1465
    %2366 = vmatpush.bf16.msra.mxu0 %v1463
    %2367 = vmatpush.bf16.msra.mxu0 %v1461
    %2368 = vmatpush.bf16.msra.mxu0 %v1459
    %2369 = vmatpush.bf16.msra.mxu0 %v1457
    %2370 = vmatpush.bf16.msra.mxu0 %v1455
    %2371 = vmatmul.bf16.gmra.mxu0 %v362
    %v2372 = vpop.f32.mrf.mxu0
    %v2373 = vadd.f32 %v2360, %v2372
    %v2374 = vpop.f32.mrf.mxu0
    %2375 = vdwg.mxu0
    %2376 = vmatpush.bf16.msra.mxu0 %v1485
    %2377 = vmatpush.bf16.msra.mxu0 %v1483
    %2378 = vmatpush.bf16.msra.mxu0 %v1481
    %2379 = vmatpush.bf16.msra.mxu0 %v1479
    %2380 = vmatpush.bf16.msra.mxu0 %v1477
    %2381 = vmatpush.bf16.msra.mxu0 %v1475
    %2382 = vmatpush.bf16.msra.mxu0 %v1473
    %2383 = vmatpush.bf16.msra.mxu0 %v1471
    %2384 = vmatmul.bf16.gmra.mxu0 %v363
    %v2385 = vpop.f32.mrf.mxu0
    %v2386 = vadd.f32 %v2373, %v2385
    %v2387 = vpop.f32.mrf.mxu0
    %2388 = vdwg.mxu0
    %2389 = vmatpush.bf16.msra.mxu0 %v1501
    %2390 = vmatpush.bf16.msra.mxu0 %v1499
    %2391 = vmatpush.bf16.msra.mxu0 %v1497
    %2392 = vmatpush.bf16.msra.mxu0 %v1495
    %2393 = vmatpush.bf16.msra.mxu0 %v1493
    %2394 = vmatpush.bf16.msra.mxu0 %v1491
    %2395 = vmatpush.bf16.msra.mxu0 %v1489
    %2396 = vmatpush.bf16.msra.mxu0 %v1487
    %2397 = vmatmul.bf16.gmra.mxu0 %v364
    %v2398 = vpop.f32.mrf.mxu0
    %v2399 = vadd.f32 %v2386, %v2398
    %v2400 = vpop.f32.mrf.mxu0
    %2401 = vdwg.mxu0
    %2402 = vmatpush.bf16.msra.mxu0 %v1517
    %2403 = vmatpush.bf16.msra.mxu0 %v1515
    %2404 = vmatpush.bf16.msra.mxu0 %v1513
    %2405 = vmatpush.bf16.msra.mxu0 %v1511
    %2406 = vmatpush.bf16.msra.mxu0 %v1509
    %2407 = vmatpush.bf16.msra.mxu0 %v1507
    %2408 = vmatpush.bf16.msra.mxu0 %v1505
    %2409 = vmatpush.bf16.msra.mxu0 %v1503
    %2410 = vmatmul.bf16.gmra.mxu0 %v367
    %v2411 = vpop.f32.mrf.mxu0
    %v2412 = vadd.f32 %v2399, %v2411
    %v2413 = vpop.f32.mrf.mxu0
    %2414 = vdwg.mxu0
    %2415 = vmatpush.bf16.msra.mxu0 %v1533
    %2416 = vmatpush.bf16.msra.mxu0 %v1531
    %2417 = vmatpush.bf16.msra.mxu0 %v1529
    %2418 = vmatpush.bf16.msra.mxu0 %v1527
    %2419 = vmatpush.bf16.msra.mxu0 %v1525
    %2420 = vmatpush.bf16.msra.mxu0 %v1523
    %2421 = vmatpush.bf16.msra.mxu0 %v1521
    %2422 = vmatpush.bf16.msra.mxu0 %v1519
    %2423 = vmatmul.bf16.gmra.mxu0 %v368
    %v2424 = vpop.f32.mrf.mxu0
    %v2425 = vadd.f32 %v2412, %v2424
    %v2426 = vpop.f32.mrf.mxu0
    %2427 = vdwg.mxu0
    %2428 = vmatpush.bf16.msra.mxu0 %v1549
    %2429 = vmatpush.bf16.msra.mxu0 %v1547
    %2430 = vmatpush.bf16.msra.mxu0 %v1545
    %2431 = vmatpush.bf16.msra.mxu0 %v1543
    %2432 = vmatpush.bf16.msra.mxu0 %v1541
    %2433 = vmatpush.bf16.msra.mxu0 %v1539
    %2434 = vmatpush.bf16.msra.mxu0 %v1537
    %2435 = vmatpush.bf16.msra.mxu0 %v1535
    %2436 = vmatmul.bf16.gmra.mxu0 %v369
    %v2437 = vpop.f32.mrf.mxu0
    %v2438 = vadd.f32 %v2425, %v2437
    %v2439 = vpop.f32.mrf.mxu0
    %2440 = vdwg.mxu0
    %2441 = vmatpush.bf16.msra.mxu0 %v1565
    %2442 = vmatpush.bf16.msra.mxu0 %v1563
    %2443 = vmatpush.bf16.msra.mxu0 %v1561
    %2444 = vmatpush.bf16.msra.mxu0 %v1559
    %2445 = vmatpush.bf16.msra.mxu0 %v1557
    %2446 = vmatpush.bf16.msra.mxu0 %v1555
    %2447 = vmatpush.bf16.msra.mxu0 %v1553
    %2448 = vmatpush.bf16.msra.mxu0 %v1551
    %2449 = vmatmul.bf16.gmra.mxu0 %v370
    %v2450 = vpop.f32.mrf.mxu0
    %v2451 = vadd.f32 %v2438, %v2450
    %v2452 = vpop.f32.mrf.mxu0
    %2453 = vdwg.mxu0
    %2454 = vmatpush.bf16.msra.mxu0 %v1581
    %2455 = vmatpush.bf16.msra.mxu0 %v1579
    %2456 = vmatpush.bf16.msra.mxu0 %v1577
    %2457 = vmatpush.bf16.msra.mxu0 %v1575
    %2458 = vmatpush.bf16.msra.mxu0 %v1573
    %2459 = vmatpush.bf16.msra.mxu0 %v1571
    %2460 = vmatpush.bf16.msra.mxu0 %v1569
    %2461 = vmatpush.bf16.msra.mxu0 %v1567
    %2462 = vmatmul.bf16.gmra.mxu0 %v371
    %v2463 = vpop.f32.mrf.mxu0
    %v2464 = vadd.f32 %v2451, %v2463
    %v2465 = vpop.f32.mrf.mxu0
    %2466 = vdwg.mxu0
    %2467 = vmatpush.bf16.msra.mxu0 %v1597
    %2468 = vmatpush.bf16.msra.mxu0 %v1595
    %2469 = vmatpush.bf16.msra.mxu0 %v1593
    %2470 = vmatpush.bf16.msra.mxu0 %v1591
    %2471 = vmatpush.bf16.msra.mxu0 %v1589
    %2472 = vmatpush.bf16.msra.mxu0 %v1587
    %2473 = vmatpush.bf16.msra.mxu0 %v1585
    %2474 = vmatpush.bf16.msra.mxu0 %v1583
    %2475 = vmatmul.bf16.gmra.mxu0 %v372
    %v2476 = vpop.f32.mrf.mxu0
    %v2477 = vadd.f32 %v2464, %v2476
    %v2478 = vpop.f32.mrf.mxu0
    %2479 = vdwg.mxu0
    %2480 = vmatpush.bf16.msra.mxu0 %v1613
    %2481 = vmatpush.bf16.msra.mxu0 %v1611
    %2482 = vmatpush.bf16.msra.mxu0 %v1609
    %2483 = vmatpush.bf16.msra.mxu0 %v1607
    %2484 = vmatpush.bf16.msra.mxu0 %v1605
    %2485 = vmatpush.bf16.msra.mxu0 %v1603
    %2486 = vmatpush.bf16.msra.mxu0 %v1601
    %2487 = vmatpush.bf16.msra.mxu0 %v1599
    %2488 = vmatmul.bf16.gmra.mxu0 %v373
    %v2489 = vpop.f32.mrf.mxu0
    %v2490 = vadd.f32 %v2477, %v2489
    %v2491 = vpop.f32.mrf.mxu0
    %2492 = vdwg.mxu0
    %2493 = vmatpush.bf16.msra.mxu0 %v1629
    %2494 = vmatpush.bf16.msra.mxu0 %v1627
    %2495 = vmatpush.bf16.msra.mxu0 %v1625
    %2496 = vmatpush.bf16.msra.mxu0 %v1623
    %2497 = vmatpush.bf16.msra.mxu0 %v1621
    %2498 = vmatpush.bf16.msra.mxu0 %v1619
    %2499 = vmatpush.bf16.msra.mxu0 %v1617
    %2500 = vmatpush.bf16.msra.mxu0 %v1615
    %2501 = vmatmul.bf16.gmra.mxu0 %v374
    %v2502 = vpop.f32.mrf.mxu0
    %v2503 = vadd.f32 %v2490, %v2502
    %v2504 = vpop.f32.mrf.mxu0
    %2505 = vdwg.mxu0
    %2506 = vmatpush.bf16.msra.mxu0 %v1645
    %2507 = vmatpush.bf16.msra.mxu0 %v1643
    %2508 = vmatpush.bf16.msra.mxu0 %v1641
    %2509 = vmatpush.bf16.msra.mxu0 %v1639
    %2510 = vmatpush.bf16.msra.mxu0 %v1637
    %2511 = vmatpush.bf16.msra.mxu0 %v1635
    %2512 = vmatpush.bf16.msra.mxu0 %v1633
    %2513 = vmatpush.bf16.msra.mxu0 %v1631
    %2514 = vmatmul.bf16.gmra.mxu0 %v377
    %v2515 = vpop.f32.mrf.mxu0
    %v2516 = vadd.f32 %v2503, %v2515
    %v2517 = vpop.f32.mrf.mxu0
    %2518 = vdwg.mxu0
    %2519 = vmatpush.bf16.msra.mxu0 %v1661
    %2520 = vmatpush.bf16.msra.mxu0 %v1659
    %2521 = vmatpush.bf16.msra.mxu0 %v1657
    %2522 = vmatpush.bf16.msra.mxu0 %v1655
    %2523 = vmatpush.bf16.msra.mxu0 %v1653
    %2524 = vmatpush.bf16.msra.mxu0 %v1651
    %2525 = vmatpush.bf16.msra.mxu0 %v1649
    %2526 = vmatpush.bf16.msra.mxu0 %v1647
    %2527 = vmatmul.bf16.gmra.mxu0 %v378
    %v2528 = vpop.f32.mrf.mxu0
    %v2529 = vadd.f32 %v2516, %v2528
    %v2530 = vpop.f32.mrf.mxu0
    %2531 = vdwg.mxu0
    %2532 = vmatpush.bf16.msra.mxu0 %v1677
    %2533 = vmatpush.bf16.msra.mxu0 %v1675
    %2534 = vmatpush.bf16.msra.mxu0 %v1673
    %2535 = vmatpush.bf16.msra.mxu0 %v1671
    %2536 = vmatpush.bf16.msra.mxu0 %v1669
    %2537 = vmatpush.bf16.msra.mxu0 %v1667
    %2538 = vmatpush.bf16.msra.mxu0 %v1665
    %2539 = vmatpush.bf16.msra.mxu0 %v1663
    %2540 = vmatmul.bf16.gmra.mxu0 %v379
    %v2541 = vpop.f32.mrf.mxu0
    %v2542 = vadd.f32 %v2529, %v2541
    %v2543 = vpop.f32.mrf.mxu0
    %2544 = vdwg.mxu0
    %2545 = vmatpush.bf16.msra.mxu0 %v1693
    %2546 = vmatpush.bf16.msra.mxu0 %v1691
    %2547 = vmatpush.bf16.msra.mxu0 %v1689
    %2548 = vmatpush.bf16.msra.mxu0 %v1687
    %2549 = vmatpush.bf16.msra.mxu0 %v1685
    %2550 = vmatpush.bf16.msra.mxu0 %v1683
    %2551 = vmatpush.bf16.msra.mxu0 %v1681
    %2552 = vmatpush.bf16.msra.mxu0 %v1679
    %2553 = vmatmul.bf16.gmra.mxu0 %v380
    %v2554 = vpop.f32.mrf.mxu0
    %v2555 = vadd.f32 %v2542, %v2554
    %v2556 = vpop.f32.mrf.mxu0
    %2557 = vdwg.mxu0
    %2558 = vmatpush.bf16.msra.mxu0 0
    %2559 = vmatpush.bf16.msra.mxu0 0
    %2560 = vmatpush.bf16.msra.mxu0 0
    %2561 = vmatpush.bf16.msra.mxu0 0
    %2562 = vmatpush.bf16.msra.mxu0 0
    %2563 = vmatpush.bf16.msra.mxu0 0
    %2564 = vmatpush.bf16.msra.mxu0 %v1697
    %2565 = vmatpush.bf16.msra.mxu0 %v1695
    %2566 = vmatmul.bf16.gmra.mxu0 %v2023
    %v2567 = vpop.f32.mrf.mxu0
    %v2568 = vadd.f32 %v2555, %v2567
    %v2569 = vpop.f32.mrf.mxu0
    %2570 = vdwg.mxu0
    %v2571 = vmax.f32 %v2295, 0.0
    %v2572 = vmax.f32 %v2568, 0.0
    %v2573 = vpack.c.bf16 %v2571, %v2571
    %v2574 = vpack.c.bf16 %v2572, %v2572
    %v2575 = vld [vmem:[%s3] sm:$0xf]
    %v2576 = vld [vmem:[%s3 + $0x4] sm:$0xf]
    %v2577 = vld [vmem:[%s3 + $0x8] sm:$0xf]
    %v2578 = vld [vmem:[%s3 + $0xc] sm:$0xf]
    %v2579 = vld [vmem:[%s3 + $0x10] sm:$0xf]
    %v2580 = vld [vmem:[%s3 + $0x14] sm:$0xf]
    %v2581 = vld [vmem:[%s3 + $0x18] sm:$0xf]
    %v2582 = vld [vmem:[%s3 + $0x1c] sm:$0xf]
    %v2583 = vld [vmem:[%s3 + $0x20] sm:$0xf]
    %v2584 = vld [vmem:[%s3 + $0x24] sm:$0xf]
    %v2585 = vld [vmem:[%s3 + $0x28] sm:$0xf]
    %v2586 = vld [vmem:[%s3 + $0x2c] sm:$0xf]
    %v2587 = vld [vmem:[%s3 + $0x30] sm:$0xf]
    %v2588 = vld [vmem:[%s3 + $0x34] sm:$0xf]
    %v2589 = vld [vmem:[%s3 + $0x38] sm:$0xf]
    %v2590 = vld [vmem:[%s3 + $0x3c] sm:$0xf]
    %v2591 = vld [vmem:[%s3 + $0x40] sm:$0xf]
    %v2592 = vld [vmem:[%s3 + $0x44] sm:$0xf]
    %v2593 = vld [vmem:[%s3 + $0x48] sm:$0xf]
    %v2594 = vld [vmem:[%s3 + $0x4c] sm:$0xf]
    %v2595 = vld [vmem:[%s3 + $0x50] sm:$0xf]
    %v2596 = vld [vmem:[%s3 + $0x54] sm:$0xf]
    %v2597 = vld [vmem:[%s3 + $0x58] sm:$0xf]
    %v2598 = vld [vmem:[%s3 + $0x5c] sm:$0xf]
    %v2599 = vld [vmem:[%s3 + $0x60] sm:$0xf]
    %v2600 = vld [vmem:[%s3 + $0x64] sm:$0xf]
    %v2601 = vld [vmem:[%s3 + $0x68] sm:$0xf]
    %v2602 = vld [vmem:[%s3 + $0x6c] sm:$0xf]
    %v2603 = vld [vmem:[%s3 + $0x70] sm:$0xf]
    %v2604 = vld [vmem:[%s3 + $0x74] sm:$0xf]
    %v2605 = vld [vmem:[%s3 + $0x78] sm:$0xf]
    %v2606 = vld [vmem:[%s3 + $0x7c] sm:$0xf]
    %v2607 = vld [vmem:[%s4] sm:$0x1]
    %v2609 = vperm.slane %v2607, 0
    %v2643 = vunpack.c.l.b16 %v2575
    %v2644 = vunpack.c.l.b16 %v2576
    %v2645 = vunpack.c.l.b16 %v2577
    %v2646 = vunpack.c.l.b16 %v2578
    %v2647 = vunpack.c.l.b16 %v2579
    %v2648 = vunpack.c.l.b16 %v2580
    %v2649 = vunpack.c.l.b16 %v2581
    %v2650 = vunpack.c.l.b16 %v2582
    %v2651 = vunpack.c.l.b16 %v2583
    %v2652 = vunpack.c.l.b16 %v2584
    %v2653 = vunpack.c.l.b16 %v2585
    %v2654 = vunpack.c.l.b16 %v2586
    %v2655 = vunpack.c.l.b16 %v2587
    %v2656 = vunpack.c.l.b16 %v2588
    %v2657 = vunpack.c.l.b16 %v2589
    %v2658 = vunpack.c.l.b16 %v2590
    %v2659 = vunpack.c.l.b16 %v2591
    %v2660 = vunpack.c.l.b16 %v2592
    %v2661 = vunpack.c.l.b16 %v2593
    %v2662 = vunpack.c.l.b16 %v2594
    %v2663 = vunpack.c.l.b16 %v2595
    %v2664 = vunpack.c.l.b16 %v2596
    %v2665 = vunpack.c.l.b16 %v2597
    %v2666 = vunpack.c.l.b16 %v2598
    %v2667 = vunpack.c.l.b16 %v2599
    %v2668 = vunpack.c.l.b16 %v2600
    %v2669 = vunpack.c.l.b16 %v2601
    %v2670 = vunpack.c.l.b16 %v2602
    %v2671 = vunpack.c.l.b16 %v2603
    %v2672 = vunpack.c.l.b16 %v2604
    %v2673 = vunpack.c.l.b16 %v2605
    %v2674 = vunpack.c.l.b16 %v2606
    %v2675 = vpack.c.b16 %v2644, %v2643
    %v2676 = vpack.c.b16 %v2646, %v2645
    %v2677 = vpack.c.b16 %v2648, %v2647
    %v2678 = vpack.c.b16 %v2650, %v2649
    %v2679 = vpack.c.b16 %v2652, %v2651
    %v2680 = vpack.c.b16 %v2654, %v2653
    %v2681 = vpack.c.b16 %v2656, %v2655
    %v2682 = vpack.c.b16 %v2658, %v2657
    %v2683 = vpack.c.b16 %v2660, %v2659
    %v2684 = vpack.c.b16 %v2662, %v2661
    %v2685 = vpack.c.b16 %v2664, %v2663
    %v2686 = vpack.c.b16 %v2666, %v2665
    %v2687 = vpack.c.b16 %v2668, %v2667
    %v2688 = vpack.c.b16 %v2670, %v2669
    %v2689 = vpack.c.b16 %v2672, %v2671
    %v2690 = vpack.c.b16 %v2674, %v2673
    %2707 = vmatpush.bf16.msra.mxu0 %v2682
    %2708 = vmatpush.bf16.msra.mxu0 %v2681
    %2709 = vmatpush.bf16.msra.mxu0 %v2680
    %2710 = vmatpush.bf16.msra.mxu0 %v2679
    %2711 = vmatpush.bf16.msra.mxu0 %v2678
    %2712 = vmatpush.bf16.msra.mxu0 %v2677
    %2713 = vmatpush.bf16.msra.mxu0 %v2676
    %2714 = vmatpush.bf16.msra.mxu0 %v2675
    %2715 = vmatmul.bf16.gmra.mxu0 %v2573
    %v2716 = vpop.f32.mrf.mxu0
    %v2717 = vadd.f32 %v2609, %v2716
    %v2718 = vpop.f32.mrf.mxu0
    %2719 = vdwg.mxu0
    %2720 = vmatpush.bf16.msra.mxu0 %v2690
    %2721 = vmatpush.bf16.msra.mxu0 %v2689
    %2722 = vmatpush.bf16.msra.mxu0 %v2688
    %2723 = vmatpush.bf16.msra.mxu0 %v2687
    %2724 = vmatpush.bf16.msra.mxu0 %v2686
    %2725 = vmatpush.bf16.msra.mxu0 %v2685
    %2726 = vmatpush.bf16.msra.mxu0 %v2684
    %2727 = vmatpush.bf16.msra.mxu0 %v2683
    %2728 = vmatmul.bf16.gmra.mxu0 %v2574
    %v2729 = vpop.f32.mrf.mxu0
    %v2730 = vadd.f32 %v2717, %v2729
    %v2731 = vpop.f32.mrf.mxu0
    %2732 = vdwg.mxu0
    %vm2733 = vcmask 1041408
    %v2734 = vsel %vm2733, %v2730, -inf
    %2735 = vmax.xlane.f32.xlu0 %v2734
    %v2736 = vpop.xlane.xlu0 %2735
    %v2737 = vsub.f32 %v2730, %v2736
    %v2738 = vmul.f32 %v2737, 1.442695
    %v2739 = vpow.pop %v2738
    %v2740 = vsel %vm2733, %v2739, 0.0
    %2741 = vadd.xlane.f32.xlu0 %v2740
    %v2742 = vpop.xlane.xlu0 %2741
    %v2743 = vrcp.pop %v2742
    %v2744 = vmul.f32 %v2742, %v2743
    %v2745 = vsub.f32 1.0, %v2744
    %v2746 = vmul.f32 %v2743, %v2745
    %v2747 = vadd.f32 %v2743, %v2746
    %vm2748 = vweird.f32 %v2742
    %vm2749 = vweird.f32 %v2743
    %vm2750 = vmor %vm2748, %vm2749
    %v2751 = vsel %vm2750, %v2743, %v2747
    %v2752 = vand.u32 2147483647, %v2742
    %vm2753 = vcmp.eq.f32.partialorder %v2752, 8.507059e+37
    %v2754 = vand.u32 %v2742, 2147483648
    %v2755 = vor.u32 1.1754944e-38, %v2754
    %v2756 = vsel %vm2753, %v2755, %v2751
    %v2757 = vmul.f32 %v2739, %v2756
    %vm2758 = vcmask 41984
    %2759 = vst.msk [vmem:[#allocation2] sm:$0x3] %vm2758, %v2757
    // Predicated region
    $region22: #{simple_cnn_actor_forward.5} parent=1 // pred_check
      _
    $region23: #{simple_cnn_actor_forward.5} parent=1 // pred_check_branch
      %2761 = sbr.rel (0) target = $region25
    $region24: #{simple_cnn_actor_forward.5} parent=1 // pred_region
      %2763 = vsyncadd [#allocation3], 0
      %s2765 = sshll.u32 [#allocation2], 4
      %s2766 = int_to_ptr.vmem [resolvable:$true] %s2765
      %s2767 = sshll.u32 %s5, 4
      %s2768 = int_to_ptr.hbm [resolvable:$true] %s2767
      %2770 = dma.vmem_to_hbm [thread:$0]  %s2766, 32, %s2768, [#allocation3]
    $region25: #{simple_cnn_actor_forward.5} parent=1 // pred_fallthru
      _
    // Predicated region
    $region26: #{simple_cnn_actor_forward.5} parent=1 // pred_check
      _
    $region27: #{simple_cnn_actor_forward.5} parent=1 // pred_check_branch
      %2772 = sbr.rel (0) target = $region29
    $region28: #{simple_cnn_actor_forward.5} parent=1 // pred_region
      %2774 = dma.done [#allocation3], 32
    $region29: #{simple_cnn_actor_forward.5} parent=1 // pred_fallthru
      _
    %2775 = vsyncpa [#allocation3], 1

</llo_original>
